<compile_context>
chip_gen: v5e
topology: v5e:2x2
jax: 0.10.0
libtpu: 0.0.40
codegen_flags: <defaults>
</compile_context>

<pallas_src>
import functools

import jax
import jax.numpy as jnp
from jax.experimental import pallas as pl
from jax.experimental.pallas import tpu as pltpu


def _lstm_fc_kernel(x_ref, wih0_ref, b0_ref, whh0_ref, w1_ref, b1_ref, wfc_ref, bfc_ref,
                    out_ref, x0_ref):
    B = out_ref.shape[0]
    SB, _ = x_ref.shape            # rows [t*B:(t+1)*B] hold timestep t
    S = SB // B
    HP = whh0_ref.shape[0]         # lane-padded hidden width (multiple of 128)

    # Layer-0 input projection (+ bias) for ALL timesteps in one MXU push, off the serial path.
    # Padded x lanes / weight rows are zero, so padded gate lanes stay exactly 0.
    x0_ref[...] = (jnp.dot(x_ref[...], wih0_ref[...], preferred_element_type=jnp.float32)
                   + b0_ref[...])

    # Hoist the layer-1 bias broadcast out of the time loop (JAX does not CSE broadcast_in_dim).
    b1 = jnp.broadcast_to(b1_ref[...], (B, 4 * HP))

    def gates_to_hc(gates, c_prev):
        # sigmoid(z) = 0.5*tanh(0.5*z) + 0.5; the 0.5 pre-scale is folded into the i/f/o gate
        # columns of W and b at pack time -> one EUP tanh + one VPU FMA per gate.
        # 128-lane-aligned gate slices -> pure VPU/EUP, no cross-lane shuffles.
        i_g = 0.5 * jnp.tanh(gates[:, 0 * HP:1 * HP]) + 0.5
        f_g = 0.5 * jnp.tanh(gates[:, 1 * HP:2 * HP]) + 0.5
        g_g = jnp.tanh(gates[:, 2 * HP:3 * HP])
        o_g = 0.5 * jnp.tanh(gates[:, 3 * HP:4 * HP]) + 0.5
        c_new = f_g * c_prev + i_g * g_g
        h_new = o_g * jnp.tanh(c_new)
        return h_new, c_new

    h1 = jnp.zeros((B, HP), jnp.float32)
    c1 = jnp.zeros((B, HP), jnp.float32)
    h2 = jnp.zeros((B, HP), jnp.float32)
    c2 = jnp.zeros((B, HP), jnp.float32)

    # Strictly serial recurrence; S is small and static -> fully unrolled static loop with static
    # sublane slices into the precomputed projection. (For wide B / long S, bound the unroll or
    # use a chunked grid over S with constant weight index_maps.)
    # NOTE: h is cast to bf16 for the MXU each step (f32 accumulate); validated at S=8 / 1e-2 tol.
    # For much longer sequences keep the h operand f32 (MXU f32 passthrough).
    for t in range(S):
        # Layer 0: precomputed input projection + K=HP recurrent matmul.
        g0 = x0_ref[pl.ds(t * B, B), :] + jnp.dot(
            h1.astype(jnp.bfloat16), whh0_ref[...], preferred_element_type=jnp.float32)
        h1, c1 = gates_to_hc(g0, c1)
        # Layer 1: depends on the fresh h1 -> cannot precompute; fused [h1 | h2] @ [W_ih1; W_hh1].
        xh1 = jnp.concatenate([h1.astype(jnp.bfloat16), h2.astype(jnp.bfloat16)], axis=-1)
        g1 = jnp.dot(xh1, w1_ref[...], preferred_element_type=jnp.float32) + b1
        h2, c2 = gates_to_hc(g1, c2)

    # fc on the last timestep's top-layer hidden state; OP is a multiple of 128 (lane-dense store).
    out_ref[...] = (jnp.dot(h2.astype(jnp.bfloat16), wfc_ref[...],
                            preferred_element_type=jnp.float32) + bfc_ref[...])


def _round_up(n, m):
    return ((n + m - 1) // m) * m


# PyTorch gate order [i, f, g, o]; fold the tanh-form-sigmoid 0.5 pre-scale into i/f/o at pack time.
_GATE_SCALE = (0.5, 0.5, 1.0, 0.5)


def _pack_gates(w, k, kp, h, hp):
    """(k, 4*h) gate-ordered matrix -> (kp, 4*hp): each gate 128-lane aligned, zero-padded, i/f/o
    columns pre-scaled by 0.5. Padded lanes MUST stay exact f32 zeros (padded-c/h-stay-0 invariant)."""
    out = jnp.zeros((kp, 4 * hp), jnp.float32)
    for g in range(4):
        out = out.at[:k, g * hp:g * hp + h].set(_GATE_SCALE[g] * w[:, g * h:(g + 1) * h])
    return out


def pack_params(params):
    """One-time packing of the (pre-transposed) LSTM+FC params into kernel layout. Call at init,
    NOT per forward call."""
    I = params["wih0"].shape[0]
    H = params["whh0"].shape[0]
    O = params["wfc"].shape[1]
    IP, HP, OP = _round_up(I, 128), _round_up(H, 128), _round_up(O, 128)
    return {
        "wih0": _pack_gates(params["wih0"], I, IP, H, HP).astype(jnp.bfloat16),   # (IP, 4HP)
        "b0":   _pack_gates(params["b0"], 1, 1, H, HP),                           # (1, 4HP) f32
        "whh0": _pack_gates(params["whh0"], H, HP, H, HP).astype(jnp.bfloat16),   # (HP, 4HP)
        "w1":   jnp.concatenate([_pack_gates(params["wih1"], H, HP, H, HP),
                                 _pack_gates(params["whh1"], H, HP, H, HP)],
                                axis=0).astype(jnp.bfloat16),                     # (2HP, 4HP)
        "b1":   _pack_gates(params["b1"], 1, 1, H, HP),                           # (1, 4HP) f32
        "wfc":  jnp.zeros((HP, OP), jnp.float32).at[:H, :O].set(params["wfc"]).astype(jnp.bfloat16),
        "bfc":  jnp.zeros((1, OP), jnp.float32).at[:, :O].set(params["bfc"]),     # (1, OP) f32
    }


@functools.partial(jax.jit, static_argnames=("out_size",))
def settlement_predictor_forward(x, packed, *, out_size):
    """x: (B, S, I) float32 (PyTorch batch_first layout). Returns (B, out_size)."""
    B, S, I = x.shape
    IP = packed["wih0"].shape[0]
    HP = packed["whh0"].shape[0]
    OP = packed["wfc"].shape[1]

    # x -> (S*B, IP): seq-major rows (rows t*B..t*B+B-1 = timestep t), zero lane padding, bf16.
    x_sb = jnp.transpose(x, (1, 0, 2)).reshape(S * B, I)
    x_flat = jnp.zeros((S * B, IP), jnp.float32).at[:, :I].set(x_sb).astype(jnp.bfloat16)

    vmem = functools.partial(pl.BlockSpec, memory_space=pltpu.MemorySpace.VMEM)

    # Single invocation (grid=()): no pipelining machinery, every operand single-copy VMEM
    # resident (<1 MiB total — far under the 64/128 MiB physical VMEM on any generation).
    # With one B=2 recurrent chain there is nothing to shard across v7x's 2 TensorCores; for many
    # independent sequences, widen B (near-free up to ~128 rows) and/or add a "parallel" grid axis.
    out = pl.pallas_call(
        _lstm_fc_kernel,
        out_shape=jax.ShapeDtypeStruct((B, OP), jnp.float32),
        in_specs=[vmem() for _ in range(8)],
        out_specs=vmem(),
        scratch_shapes=[pltpu.VMEM((S * B, 4 * HP), jnp.float32)],   # precomputed layer-0 gates
    )(x_flat, packed["wih0"], packed["b0"], packed["whh0"],
      packed["w1"], packed["b1"], packed["wfc"], packed["bfc"])
    return out[:, :out_size]


def _reference_forward(x, params):
    """Pure-JAX f32 reference mirroring torch.nn.LSTM(num_layers=2, batch_first=True) + Linear."""
    B, S, I = x.shape
    H = params["whh0"].shape[0]

    def cell(x_in, h_prev, c_prev, wih, whh, b):
        gates = x_in @ wih + h_prev @ whh + b
        i_g = jax.nn.sigmoid(gates[:, 0 * H:1 * H])
        f_g = jax.nn.sigmoid(gates[:, 1 * H:2 * H])
        g_g = jnp.tanh(gates[:, 2 * H:3 * H])
        o_g = jax.nn.sigmoid(gates[:, 3 * H:4 * H])
        c_new = f_g * c_prev + i_g * g_g
        return o_g * jnp.tanh(c_new), c_new

    h1 = jnp.zeros((B, H), jnp.float32)
    c1 = jnp.zeros((B, H), jnp.float32)
    h2 = jnp.zeros((B, H), jnp.float32)
    c2 = jnp.zeros((B, H), jnp.float32)
    for t in range(S):
        h1, c1 = cell(x[:, t, :], h1, c1, params["wih0"], params["whh0"], params["b0"])
        h2, c2 = cell(h1, h2, c2, params["wih1"], params["whh1"], params["b1"])
    return h2 @ params["wfc"] + params["bfc"]


def init_params(key, input_size, hidden_size, output_size):
    """Deterministic synthetic params. Stored pre-transposed: (in, 4H) / (H, 4H) / (H, O)."""
    ks = jax.random.split(key, 12)
    scale = 0.1
    H = hidden_size
    return {
        "wih0": scale * jax.random.normal(ks[0], (input_size, 4 * H), jnp.float32),
        "whh0": scale * jax.random.normal(ks[1], (H, 4 * H), jnp.float32),
        "b0":   scale * jax.random.normal(ks[2], (1, 4 * H), jnp.float32)
              + scale * jax.random.normal(ks[3], (1, 4 * H), jnp.float32),   # b_ih + b_hh
        "wih1": scale * jax.random.normal(ks[4], (H, 4 * H), jnp.float32),
        "whh1": scale * jax.random.normal(ks[5], (H, 4 * H), jnp.float32),
        "b1":   scale * jax.random.normal(ks[6], (1, 4 * H), jnp.float32)
              + scale * jax.random.normal(ks[7], (1, 4 * H), jnp.float32),
        "wfc":  scale * jax.random.normal(ks[8], (H, output_size), jnp.float32),
        "bfc":  scale * jax.random.normal(ks[9], (1, output_size), jnp.float32),
    }


if __name__ == "__main__":
    # Small shapes consistent with the module: n_features in == out, hidden LSTM state, seq window.
    batch = 2
    seq = 8
    n_features = 4          # input_size == output_size == n_features
    hidden_size = 32        # (module uses 50; both pad to the same 128-lane layout)

    key = jax.random.PRNGKey(0)
    k_x, k_p = jax.random.split(key)
    x = jax.random.normal(k_x, (batch, seq, n_features), jnp.float32)
    params = init_params(k_p, n_features, hidden_size, n_features)

    packed = pack_params(params)                          # one-time packing (init-time, not per call)
    packed = jax.tree_util.tree_map(jax.block_until_ready, packed)

    out = settlement_predictor_forward(x, packed, out_size=n_features)
    out = jax.block_until_ready(out)

    ref = _reference_forward(x, params)
    assert out.shape == (batch, n_features)
    # Kernel uses bf16 MXU operands (f32 accumulate); compare to the pure-f32 reference at ~1e-2.
    assert jnp.allclose(out, ref, rtol=1e-2, atol=1e-2), (out, ref)

    print("KERNEL_OK")
</pallas_src>

<mosaic_0001>
module attributes {stable_mosaic.version = 11 : i64} {
  func.func @_lstm_fc_kernel(%arg0: memref<16x128xbf16, #tpu.memory_space<vmem>>, %arg1: memref<128x512xbf16, #tpu.memory_space<vmem>>, %arg2: memref<1x512xf32, #tpu.memory_space<vmem>>, %arg3: memref<128x512xbf16, #tpu.memory_space<vmem>>, %arg4: memref<256x512xbf16, #tpu.memory_space<vmem>>, %arg5: memref<1x512xf32, #tpu.memory_space<vmem>>, %arg6: memref<128x128xbf16, #tpu.memory_space<vmem>>, %arg7: memref<1x128xf32, #tpu.memory_space<vmem>>, %arg8: memref<2x128xf32, #tpu.memory_space<vmem>>, %arg9: memref<16x512xf32, #tpu.memory_space<vmem>>) attributes {dimension_semantics = [], scalar_prefetch = 0 : i64, scratch_operands = 1 : i64, tpu.core_type = #tpu.core_type<tc>} {
    %c0 = arith.constant 0 : index
    %c0_0 = arith.constant 0 : index
    %0 = vector.load %arg0[%c0, %c0_0] : memref<16x128xbf16, #tpu.memory_space<vmem>>, vector<16x128xbf16>
    %c0_1 = arith.constant 0 : index
    %c0_2 = arith.constant 0 : index
    %1 = vector.load %arg1[%c0_1, %c0_2] : memref<128x512xbf16, #tpu.memory_space<vmem>>, vector<128x512xbf16>
    %cst = arith.constant dense<0.000000e+00> : vector<16x512xf32>
    %2 = tpu.matmul %0, %1, %cst {dimension_numbers = #tpu.dot_dimension_numbers<[1], [0], [0], [1], [0, 0, 1, 1], [], []>} : vector<16x128xbf16>, vector<128x512xbf16>, vector<16x512xf32> -> vector<16x512xf32>
    %c0_3 = arith.constant 0 : index
    %c0_4 = arith.constant 0 : index
    %3 = vector.load %arg2[%c0_3, %c0_4] : memref<1x512xf32, #tpu.memory_space<vmem>>, vector<1x512xf32>
    %4 = vector.broadcast %3 : vector<1x512xf32> to vector<16x512xf32>
    %5 = arith.addf %2, %4 : vector<16x512xf32>
    %c0_5 = arith.constant 0 : index
    %c0_6 = arith.constant 0 : index
    %6 = vector.load %arg9[%c0_5, %c0_6] : memref<16x512xf32, #tpu.memory_space<vmem>>, vector<16x512xf32>
    tpu.vector_store %arg9[%c0_5, %c0_6], %5 {strides = array<i32>} : memref<16x512xf32, #tpu.memory_space<vmem>>, vector<16x512xf32>,
    %c0_7 = arith.constant 0 : index
    %c0_8 = arith.constant 0 : index
    %7 = vector.load %arg5[%c0_7, %c0_8] : memref<1x512xf32, #tpu.memory_space<vmem>>, vector<1x512xf32>
    %8 = vector.shape_cast %7 : vector<1x512xf32> to vector<1x512xf32>
    %9 = vector.broadcast %8 : vector<1x512xf32> to vector<2x512xf32>
    %cst_9 = arith.constant 0.000000e+00 : f32
    %10 = vector.broadcast %cst_9 : f32 to vector<2x128xf32>
    %cst_10 = arith.constant 0.000000e+00 : f32
    %11 = vector.broadcast %cst_10 : f32 to vector<2x128xf32>
    %cst_11 = arith.constant 0.000000e+00 : f32
    %12 = vector.broadcast %cst_11 : f32 to vector<2x128xf32>
    %cst_12 = arith.constant 0.000000e+00 : f32
    %13 = vector.broadcast %cst_12 : f32 to vector<2x128xf32>
    %c0_13 = arith.constant 0 : index
    %c0_14 = arith.constant 0 : index
    %14 = vector.load %arg9[%c0_13, %c0_14] : memref<16x512xf32, #tpu.memory_space<vmem>>, vector<2x512xf32>
    %15 = arith.truncf %10 : vector<2x128xf32> to vector<2x128xbf16>
    %c0_15 = arith.constant 0 : index
    %c0_16 = arith.constant 0 : index
    %16 = vector.load %arg3[%c0_15, %c0_16] : memref<128x512xbf16, #tpu.memory_space<vmem>>, vector<128x512xbf16>
    %cst_17 = arith.constant dense<0.000000e+00> : vector<2x512xf32>
    %17 = tpu.matmul %15, %16, %cst_17 {dimension_numbers = #tpu.dot_dimension_numbers<[1], [0], [0], [1], [0, 0, 1, 1], [], []>} : vector<2x128xbf16>, vector<128x512xbf16>, vector<2x512xf32> -> vector<2x512xf32>
    %18 = arith.addf %14, %17 : vector<2x512xf32>
    %19 = vector.extract_strided_slice %18 {offsets = [0, 0], sizes = [2, 128], strides = [1, 1]} : vector<2x512xf32> to vector<2x128xf32>
    %20 = math.tanh %19 : vector<2x128xf32>
    %cst_18 = arith.constant 5.000000e-01 : f32
    %21 = vector.broadcast %cst_18 : f32 to vector<2x128xf32>
    %22 = arith.mulf %21, %20 : vector<2x128xf32>
    %cst_19 = arith.constant 5.000000e-01 : f32
    %23 = vector.broadcast %cst_19 : f32 to vector<2x128xf32>
    %24 = arith.addf %22, %23 : vector<2x128xf32>
    %25 = vector.extract_strided_slice %18 {offsets = [0, 128], sizes = [2, 128], strides = [1, 1]} : vector<2x512xf32> to vector<2x128xf32>
    %26 = math.tanh %25 : vector<2x128xf32>
    %cst_20 = arith.constant 5.000000e-01 : f32
    %27 = vector.broadcast %cst_20 : f32 to vector<2x128xf32>
    %28 = arith.mulf %27, %26 : vector<2x128xf32>
    %cst_21 = arith.constant 5.000000e-01 : f32
    %29 = vector.broadcast %cst_21 : f32 to vector<2x128xf32>
    %30 = arith.addf %28, %29 : vector<2x128xf32>
    %31 = vector.extract_strided_slice %18 {offsets = [0, 256], sizes = [2, 128], strides = [1, 1]} : vector<2x512xf32> to vector<2x128xf32>
    %32 = math.tanh %31 : vector<2x128xf32>
    %33 = vector.extract_strided_slice %18 {offsets = [0, 384], sizes = [2, 128], strides = [1, 1]} : vector<2x512xf32> to vector<2x128xf32>
    %34 = math.tanh %33 : vector<2x128xf32>
    %cst_22 = arith.constant 5.000000e-01 : f32
    %35 = vector.broadcast %cst_22 : f32 to vector<2x128xf32>
    %36 = arith.mulf %35, %34 : vector<2x128xf32>
    %cst_23 = arith.constant 5.000000e-01 : f32
    %37 = vector.broadcast %cst_23 : f32 to vector<2x128xf32>
    %38 = arith.addf %36, %37 : vector<2x128xf32>
    %39 = arith.mulf %30, %11 : vector<2x128xf32>
    %40 = arith.mulf %24, %32 : vector<2x128xf32>
    %41 = arith.addf %39, %40 : vector<2x128xf32>
    %42 = math.tanh %41 : vector<2x128xf32>
    %43 = arith.mulf %38, %42 : vector<2x128xf32>
    %44 = arith.truncf %43 : vector<2x128xf32> to vector<2x128xbf16>
    %45 = arith.truncf %12 : vector<2x128xf32> to vector<2x128xbf16>
    %46 = tpu.concatenate %44, %45 in 1 : vector<2x128xbf16>, vector<2x128xbf16> -> vector<2x256xbf16>
    %c0_24 = arith.constant 0 : index
    %c0_25 = arith.constant 0 : index
    %47 = vector.load %arg4[%c0_24, %c0_25] : memref<256x512xbf16, #tpu.memory_space<vmem>>, vector<256x512xbf16>
    %cst_26 = arith.constant dense<0.000000e+00> : vector<2x512xf32>
    %48 = tpu.matmul %46, %47, %cst_26 {dimension_numbers = #tpu.dot_dimension_numbers<[1], [0], [0], [1], [0, 0, 1, 1], [], []>} : vector<2x256xbf16>, vector<256x512xbf16>, vector<2x512xf32> -> vector<2x512xf32>
    %49 = arith.addf %48, %9 : vector<2x512xf32>
    %50 = vector.extract_strided_slice %49 {offsets = [0, 0], sizes = [2, 128], strides = [1, 1]} : vector<2x512xf32> to vector<2x128xf32>
    %51 = math.tanh %50 : vector<2x128xf32>
    %cst_27 = arith.constant 5.000000e-01 : f32
    %52 = vector.broadcast %cst_27 : f32 to vector<2x128xf32>
    %53 = arith.mulf %52, %51 : vector<2x128xf32>
    %cst_28 = arith.constant 5.000000e-01 : f32
    %54 = vector.broadcast %cst_28 : f32 to vector<2x128xf32>
    %55 = arith.addf %53, %54 : vector<2x128xf32>
    %56 = vector.extract_strided_slice %49 {offsets = [0, 128], sizes = [2, 128], strides = [1, 1]} : vector<2x512xf32> to vector<2x128xf32>
    %57 = math.tanh %56 : vector<2x128xf32>
    %cst_29 = arith.constant 5.000000e-01 : f32
    %58 = vector.broadcast %cst_29 : f32 to vector<2x128xf32>
    %59 = arith.mulf %58, %57 : vector<2x128xf32>
    %cst_30 = arith.constant 5.000000e-01 : f32
    %60 = vector.broadcast %cst_30 : f32 to vector<2x128xf32>
    %61 = arith.addf %59, %60 : vector<2x128xf32>
    %62 = vector.extract_strided_slice %49 {offsets = [0, 256], sizes = [2, 128], strides = [1, 1]} : vector<2x512xf32> to vector<2x128xf32>
    %63 = math.tanh %62 : vector<2x128xf32>
    %64 = vector.extract_strided_slice %49 {offsets = [0, 384], sizes = [2, 128], strides = [1, 1]} : vector<2x512xf32> to vector<2x128xf32>
    %65 = math.tanh %64 : vector<2x128xf32>
    %cst_31 = arith.constant 5.000000e-01 : f32
    %66 = vector.broadcast %cst_31 : f32 to vector<2x128xf32>
    %67 = arith.mulf %66, %65 : vector<2x128xf32>
    %cst_32 = arith.constant 5.000000e-01 : f32
    %68 = vector.broadcast %cst_32 : f32 to vector<2x128xf32>
    %69 = arith.addf %67, %68 : vector<2x128xf32>
    %70 = arith.mulf %61, %13 : vector<2x128xf32>
    %71 = arith.mulf %55, %63 : vector<2x128xf32>
    %72 = arith.addf %70, %71 : vector<2x128xf32>
    %73 = math.tanh %72 : vector<2x128xf32>
    %74 = arith.mulf %69, %73 : vector<2x128xf32>
    %c2 = arith.constant 2 : index
    %c0_33 = arith.constant 0 : index
    %75 = vector.load %arg9[%c2, %c0_33] : memref<16x512xf32, #tpu.memory_space<vmem>>, vector<2x512xf32>
    %76 = arith.truncf %43 : vector<2x128xf32> to vector<2x128xbf16>
    %c0_34 = arith.constant 0 : index
    %c0_35 = arith.constant 0 : index
    %77 = vector.load %arg3[%c0_34, %c0_35] : memref<128x512xbf16, #tpu.memory_space<vmem>>, vector<128x512xbf16>
    %cst_36 = arith.constant dense<0.000000e+00> : vector<2x512xf32>
    %78 = tpu.matmul %76, %77, %cst_36 {dimension_numbers = #tpu.dot_dimension_numbers<[1], [0], [0], [1], [0, 0, 1, 1], [], []>} : vector<2x128xbf16>, vector<128x512xbf16>, vector<2x512xf32> -> vector<2x512xf32>
    %79 = arith.addf %75, %78 : vector<2x512xf32>
    %80 = vector.extract_strided_slice %79 {offsets = [0, 0], sizes = [2, 128], strides = [1, 1]} : vector<2x512xf32> to vector<2x128xf32>
    %81 = math.tanh %80 : vector<2x128xf32>
    %cst_37 = arith.constant 5.000000e-01 : f32
    %82 = vector.broadcast %cst_37 : f32 to vector<2x128xf32>
    %83 = arith.mulf %82, %81 : vector<2x128xf32>
    %cst_38 = arith.constant 5.000000e-01 : f32
    %84 = vector.broadcast %cst_38 : f32 to vector<2x128xf32>
    %85 = arith.addf %83, %84 : vector<2x128xf32>
    %86 = vector.extract_strided_slice %79 {offsets = [0, 128], sizes = [2, 128], strides = [1, 1]} : vector<2x512xf32> to vector<2x128xf32>
    %87 = math.tanh %86 : vector<2x128xf32>
    %cst_39 = arith.constant 5.000000e-01 : f32
    %88 = vector.broadcast %cst_39 : f32 to vector<2x128xf32>
    %89 = arith.mulf %88, %87 : vector<2x128xf32>
    %cst_40 = arith.constant 5.000000e-01 : f32
    %90 = vector.broadcast %cst_40 : f32 to vector<2x128xf32>
    %91 = arith.addf %89, %90 : vector<2x128xf32>
    %92 = vector.extract_strided_slice %79 {offsets = [0, 256], sizes = [2, 128], strides = [1, 1]} : vector<2x512xf32> to vector<2x128xf32>
    %93 = math.tanh %92 : vector<2x128xf32>
    %94 = vector.extract_strided_slice %79 {offsets = [0, 384], sizes = [2, 128], strides = [1, 1]} : vector<2x512xf32> to vector<2x128xf32>
    %95 = math.tanh %94 : vector<2x128xf32>
    %cst_41 = arith.constant 5.000000e-01 : f32
    %96 = vector.broadcast %cst_41 : f32 to vector<2x128xf32>
    %97 = arith.mulf %96, %95 : vector<2x128xf32>
    %cst_42 = arith.constant 5.000000e-01 : f32
    %98 = vector.broadcast %cst_42 : f32 to vector<2x128xf32>
    %99 = arith.addf %97, %98 : vector<2x128xf32>
    %100 = arith.mulf %91, %41 : vector<2x128xf32>
    %101 = arith.mulf %85, %93 : vector<2x128xf32>
    %102 = arith.addf %100, %101 : vector<2x128xf32>
    %103 = math.tanh %102 : vector<2x128xf32>
    %104 = arith.mulf %99, %103 : vector<2x128xf32>
    %105 = arith.truncf %104 : vector<2x128xf32> to vector<2x128xbf16>
    %106 = arith.truncf %74 : vector<2x128xf32> to vector<2x128xbf16>
    %107 = tpu.concatenate %105, %106 in 1 : vector<2x128xbf16>, vector<2x128xbf16> -> vector<2x256xbf16>
    %c0_43 = arith.constant 0 : index
    %c0_44 = arith.constant 0 : index
    %108 = vector.load %arg4[%c0_43, %c0_44] : memref<256x512xbf16, #tpu.memory_space<vmem>>, vector<256x512xbf16>
    %cst_45 = arith.constant dense<0.000000e+00> : vector<2x512xf32>
    %109 = tpu.matmul %107, %108, %cst_45 {dimension_numbers = #tpu.dot_dimension_numbers<[1], [0], [0], [1], [0, 0, 1, 1], [], []>} : vector<2x256xbf16>, vector<256x512xbf16>, vector<2x512xf32> -> vector<2x512xf32>
    %110 = arith.addf %109, %9 : vector<2x512xf32>
    %111 = vector.extract_strided_slice %110 {offsets = [0, 0], sizes = [2, 128], strides = [1, 1]} : vector<2x512xf32> to vector<2x128xf32>
    %112 = math.tanh %111 : vector<2x128xf32>
    %cst_46 = arith.constant 5.000000e-01 : f32
    %113 = vector.broadcast %cst_46 : f32 to vector<2x128xf32>
    %114 = arith.mulf %113, %112 : vector<2x128xf32>
    %cst_47 = arith.constant 5.000000e-01 : f32
    %115 = vector.broadcast %cst_47 : f32 to vector<2x128xf32>
    %116 = arith.addf %114, %115 : vector<2x128xf32>
    %117 = vector.extract_strided_slice %110 {offsets = [0, 128], sizes = [2, 128], strides = [1, 1]} : vector<2x512xf32> to vector<2x128xf32>
    %118 = math.tanh %117 : vector<2x128xf32>
    %cst_48 = arith.constant 5.000000e-01 : f32
    %119 = vector.broadcast %cst_48 : f32 to vector<2x128xf32>
    %120 = arith.mulf %119, %118 : vector<2x128xf32>
    %cst_49 = arith.constant 5.000000e-01 : f32
    %121 = vector.broadcast %cst_49 : f32 to vector<2x128xf32>
    %122 = arith.addf %120, %121 : vector<2x128xf32>
    %123 = vector.extract_strided_slice %110 {offsets = [0, 256], sizes = [2, 128], strides = [1, 1]} : vector<2x512xf32> to vector<2x128xf32>
    %124 = math.tanh %123 : vector<2x128xf32>
    %125 = vector.extract_strided_slice %110 {offsets = [0, 384], sizes = [2, 128], strides = [1, 1]} : vector<2x512xf32> to vector<2x128xf32>
    %126 = math.tanh %125 : vector<2x128xf32>
    %cst_50 = arith.constant 5.000000e-01 : f32
    %127 = vector.broadcast %cst_50 : f32 to vector<2x128xf32>
    %128 = arith.mulf %127, %126 : vector<2x128xf32>
    %cst_51 = arith.constant 5.000000e-01 : f32
    %129 = vector.broadcast %cst_51 : f32 to vector<2x128xf32>
    %130 = arith.addf %128, %129 : vector<2x128xf32>
    %131 = arith.mulf %122, %72 : vector<2x128xf32>
    %132 = arith.mulf %116, %124 : vector<2x128xf32>
    %133 = arith.addf %131, %132 : vector<2x128xf32>
    %134 = math.tanh %133 : vector<2x128xf32>
    %135 = arith.mulf %130, %134 : vector<2x128xf32>
    %c4 = arith.constant 4 : index
    %c0_52 = arith.constant 0 : index
    %136 = vector.load %arg9[%c4, %c0_52] : memref<16x512xf32, #tpu.memory_space<vmem>>, vector<2x512xf32>
    %137 = arith.truncf %104 : vector<2x128xf32> to vector<2x128xbf16>
    %c0_53 = arith.constant 0 : index
    %c0_54 = arith.constant 0 : index
    %138 = vector.load %arg3[%c0_53, %c0_54] : memref<128x512xbf16, #tpu.memory_space<vmem>>, vector<128x512xbf16>
    %cst_55 = arith.constant dense<0.000000e+00> : vector<2x512xf32>
    %139 = tpu.matmul %137, %138, %cst_55 {dimension_numbers = #tpu.dot_dimension_numbers<[1], [0], [0], [1], [0, 0, 1, 1], [], []>} : vector<2x128xbf16>, vector<128x512xbf16>, vector<2x512xf32> -> vector<2x512xf32>
    %140 = arith.addf %136, %139 : vector<2x512xf32>
    %141 = vector.extract_strided_slice %140 {offsets = [0, 0], sizes = [2, 128], strides = [1, 1]} : vector<2x512xf32> to vector<2x128xf32>
    %142 = math.tanh %141 : vector<2x128xf32>
    %cst_56 = arith.constant 5.000000e-01 : f32
    %143 = vector.broadcast %cst_56 : f32 to vector<2x128xf32>
    %144 = arith.mulf %143, %142 : vector<2x128xf32>
    %cst_57 = arith.constant 5.000000e-01 : f32
    %145 = vector.broadcast %cst_57 : f32 to vector<2x128xf32>
    %146 = arith.addf %144, %145 : vector<2x128xf32>
    %147 = vector.extract_strided_slice %140 {offsets = [0, 128], sizes = [2, 128], strides = [1, 1]} : vector<2x512xf32> to vector<2x128xf32>
    %148 = math.tanh %147 : vector<2x128xf32>
    %cst_58 = arith.constant 5.000000e-01 : f32
    %149 = vector.broadcast %cst_58 : f32 to vector<2x128xf32>
    %150 = arith.mulf %149, %148 : vector<2x128xf32>
    %cst_59 = arith.constant 5.000000e-01 : f32
    %151 = vector.broadcast %cst_59 : f32 to vector<2x128xf32>
    %152 = arith.addf %150, %151 : vector<2x128xf32>
    %153 = vector.extract_strided_slice %140 {offsets = [0, 256], sizes = [2, 128], strides = [1, 1]} : vector<2x512xf32> to vector<2x128xf32>
    %154 = math.tanh %153 : vector<2x128xf32>
    %155 = vector.extract_strided_slice %140 {offsets = [0, 384], sizes = [2, 128], strides = [1, 1]} : vector<2x512xf32> to vector<2x128xf32>
    %156 = math.tanh %155 : vector<2x128xf32>
    %cst_60 = arith.constant 5.000000e-01 : f32
    %157 = vector.broadcast %cst_60 : f32 to vector<2x128xf32>
    %158 = arith.mulf %157, %156 : vector<2x128xf32>
    %cst_61 = arith.constant 5.000000e-01 : f32
    %159 = vector.broadcast %cst_61 : f32 to vector<2x128xf32>
    %160 = arith.addf %158, %159 : vector<2x128xf32>
    %161 = arith.mulf %152, %102 : vector<2x128xf32>
    %162 = arith.mulf %146, %154 : vector<2x128xf32>
    %163 = arith.addf %161, %162 : vector<2x128xf32>
    %164 = math.tanh %163 : vector<2x128xf32>
    %165 = arith.mulf %160, %164 : vector<2x128xf32>
    %166 = arith.truncf %165 : vector<2x128xf32> to vector<2x128xbf16>
    %167 = arith.truncf %135 : vector<2x128xf32> to vector<2x128xbf16>
    %168 = tpu.concatenate %166, %167 in 1 : vector<2x128xbf16>, vector<2x128xbf16> -> vector<2x256xbf16>
    %c0_62 = arith.constant 0 : index
    %c0_63 = arith.constant 0 : index
    %169 = vector.load %arg4[%c0_62, %c0_63] : memref<256x512xbf16, #tpu.memory_space<vmem>>, vector<256x512xbf16>
    %cst_64 = arith.constant dense<0.000000e+00> : vector<2x512xf32>
    %170 = tpu.matmul %168, %169, %cst_64 {dimension_numbers = #tpu.dot_dimension_numbers<[1], [0], [0], [1], [0, 0, 1, 1], [], []>} : vector<2x256xbf16>, vector<256x512xbf16>, vector<2x512xf32> -> vector<2x512xf32>
    %171 = arith.addf %170, %9 : vector<2x512xf32>
    %172 = vector.extract_strided_slice %171 {offsets = [0, 0], sizes = [2, 128], strides = [1, 1]} : vector<2x512xf32> to vector<2x128xf32>
    %173 = math.tanh %172 : vector<2x128xf32>
    %cst_65 = arith.constant 5.000000e-01 : f32
    %174 = vector.broadcast %cst_65 : f32 to vector<2x128xf32>
    %175 = arith.mulf %174, %173 : vector<2x128xf32>
    %cst_66 = arith.constant 5.000000e-01 : f32
    %176 = vector.broadcast %cst_66 : f32 to vector<2x128xf32>
    %177 = arith.addf %175, %176 : vector<2x128xf32>
    %178 = vector.extract_strided_slice %171 {offsets = [0, 128], sizes = [2, 128], strides = [1, 1]} : vector<2x512xf32> to vector<2x128xf32>
    %179 = math.tanh %178 : vector<2x128xf32>
    %cst_67 = arith.constant 5.000000e-01 : f32
    %180 = vector.broadcast %cst_67 : f32 to vector<2x128xf32>
    %181 = arith.mulf %180, %179 : vector<2x128xf32>
    %cst_68 = arith.constant 5.000000e-01 : f32
    %182 = vector.broadcast %cst_68 : f32 to vector<2x128xf32>
    %183 = arith.addf %181, %182 : vector<2x128xf32>
    %184 = vector.extract_strided_slice %171 {offsets = [0, 256], sizes = [2, 128], strides = [1, 1]} : vector<2x512xf32> to vector<2x128xf32>
    %185 = math.tanh %184 : vector<2x128xf32>
    %186 = vector.extract_strided_slice %171 {offsets = [0, 384], sizes = [2, 128], strides = [1, 1]} : vector<2x512xf32> to vector<2x128xf32>
    %187 = math.tanh %186 : vector<2x128xf32>
    %cst_69 = arith.constant 5.000000e-01 : f32
    %188 = vector.broadcast %cst_69 : f32 to vector<2x128xf32>
    %189 = arith.mulf %188, %187 : vector<2x128xf32>
    %cst_70 = arith.constant 5.000000e-01 : f32
    %190 = vector.broadcast %cst_70 : f32 to vector<2x128xf32>
    %191 = arith.addf %189, %190 : vector<2x128xf32>
    %192 = arith.mulf %183, %133 : vector<2x128xf32>
    %193 = arith.mulf %177, %185 : vector<2x128xf32>
    %194 = arith.addf %192, %193 : vector<2x128xf32>
    %195 = math.tanh %194 : vector<2x128xf32>
    %196 = arith.mulf %191, %195 : vector<2x128xf32>
    %c6 = arith.constant 6 : index
    %c0_71 = arith.constant 0 : index
    %197 = vector.load %arg9[%c6, %c0_71] : memref<16x512xf32, #tpu.memory_space<vmem>>, vector<2x512xf32>
    %198 = arith.truncf %165 : vector<2x128xf32> to vector<2x128xbf16>
    %c0_72 = arith.constant 0 : index
    %c0_73 = arith.constant 0 : index
    %199 = vector.load %arg3[%c0_72, %c0_73] : memref<128x512xbf16, #tpu.memory_space<vmem>>, vector<128x512xbf16>
    %cst_74 = arith.constant dense<0.000000e+00> : vector<2x512xf32>
    %200 = tpu.matmul %198, %199, %cst_74 {dimension_numbers = #tpu.dot_dimension_numbers<[1], [0], [0], [1], [0, 0, 1, 1], [], []>} : vector<2x128xbf16>, vector<128x512xbf16>, vector<2x512xf32> -> vector<2x512xf32>
    %201 = arith.addf %197, %200 : vector<2x512xf32>
    %202 = vector.extract_strided_slice %201 {offsets = [0, 0], sizes = [2, 128], strides = [1, 1]} : vector<2x512xf32> to vector<2x128xf32>
    %203 = math.tanh %202 : vector<2x128xf32>
    %cst_75 = arith.constant 5.000000e-01 : f32
    %204 = vector.broadcast %cst_75 : f32 to vector<2x128xf32>
    %205 = arith.mulf %204, %203 : vector<2x128xf32>
    %cst_76 = arith.constant 5.000000e-01 : f32
    %206 = vector.broadcast %cst_76 : f32 to vector<2x128xf32>
    %207 = arith.addf %205, %206 : vector<2x128xf32>
    %208 = vector.extract_strided_slice %201 {offsets = [0, 128], sizes = [2, 128], strides = [1, 1]} : vector<2x512xf32> to vector<2x128xf32>
    %209 = math.tanh %208 : vector<2x128xf32>
    %cst_77 = arith.constant 5.000000e-01 : f32
    %210 = vector.broadcast %cst_77 : f32 to vector<2x128xf32>
    %211 = arith.mulf %210, %209 : vector<2x128xf32>
    %cst_78 = arith.constant 5.000000e-01 : f32
    %212 = vector.broadcast %cst_78 : f32 to vector<2x128xf32>
    %213 = arith.addf %211, %212 : vector<2x128xf32>
    %214 = vector.extract_strided_slice %201 {offsets = [0, 256], sizes = [2, 128], strides = [1, 1]} : vector<2x512xf32> to vector<2x128xf32>
    %215 = math.tanh %214 : vector<2x128xf32>
    %216 = vector.extract_strided_slice %201 {offsets = [0, 384], sizes = [2, 128], strides = [1, 1]} : vector<2x512xf32> to vector<2x128xf32>
    %217 = math.tanh %216 : vector<2x128xf32>
    %cst_79 = arith.constant 5.000000e-01 : f32
    %218 = vector.broadcast %cst_79 : f32 to vector<2x128xf32>
    %219 = arith.mulf %218, %217 : vector<2x128xf32>
    %cst_80 = arith.constant 5.000000e-01 : f32
    %220 = vector.broadcast %cst_80 : f32 to vector<2x128xf32>
    %221 = arith.addf %219, %220 : vector<2x128xf32>
    %222 = arith.mulf %213, %163 : vector<2x128xf32>
    %223 = arith.mulf %207, %215 : vector<2x128xf32>
    %224 = arith.addf %222, %223 : vector<2x128xf32>
    %225 = math.tanh %224 : vector<2x128xf32>
    %226 = arith.mulf %221, %225 : vector<2x128xf32>
    %227 = arith.truncf %226 : vector<2x128xf32> to vector<2x128xbf16>
    %228 = arith.truncf %196 : vector<2x128xf32> to vector<2x128xbf16>
    %229 = tpu.concatenate %227, %228 in 1 : vector<2x128xbf16>, vector<2x128xbf16> -> vector<2x256xbf16>
    %c0_81 = arith.constant 0 : index
    %c0_82 = arith.constant 0 : index
    %230 = vector.load %arg4[%c0_81, %c0_82] : memref<256x512xbf16, #tpu.memory_space<vmem>>, vector<256x512xbf16>
    %cst_83 = arith.constant dense<0.000000e+00> : vector<2x512xf32>
    %231 = tpu.matmul %229, %230, %cst_83 {dimension_numbers = #tpu.dot_dimension_numbers<[1], [0], [0], [1], [0, 0, 1, 1], [], []>} : vector<2x256xbf16>, vector<256x512xbf16>, vector<2x512xf32> -> vector<2x512xf32>
    %232 = arith.addf %231, %9 : vector<2x512xf32>
    %233 = vector.extract_strided_slice %232 {offsets = [0, 0], sizes = [2, 128], strides = [1, 1]} : vector<2x512xf32> to vector<2x128xf32>
    %234 = math.tanh %233 : vector<2x128xf32>
    %cst_84 = arith.constant 5.000000e-01 : f32
    %235 = vector.broadcast %cst_84 : f32 to vector<2x128xf32>
    %236 = arith.mulf %235, %234 : vector<2x128xf32>
    %cst_85 = arith.constant 5.000000e-01 : f32
    %237 = vector.broadcast %cst_85 : f32 to vector<2x128xf32>
    %238 = arith.addf %236, %237 : vector<2x128xf32>
    %239 = vector.extract_strided_slice %232 {offsets = [0, 128], sizes = [2, 128], strides = [1, 1]} : vector<2x512xf32> to vector<2x128xf32>
    %240 = math.tanh %239 : vector<2x128xf32>
    %cst_86 = arith.constant 5.000000e-01 : f32
    %241 = vector.broadcast %cst_86 : f32 to vector<2x128xf32>
    %242 = arith.mulf %241, %240 : vector<2x128xf32>
    %cst_87 = arith.constant 5.000000e-01 : f32
    %243 = vector.broadcast %cst_87 : f32 to vector<2x128xf32>
    %244 = arith.addf %242, %243 : vector<2x128xf32>
    %245 = vector.extract_strided_slice %232 {offsets = [0, 256], sizes = [2, 128], strides = [1, 1]} : vector<2x512xf32> to vector<2x128xf32>
    %246 = math.tanh %245 : vector<2x128xf32>
    %247 = vector.extract_strided_slice %232 {offsets = [0, 384], sizes = [2, 128], strides = [1, 1]} : vector<2x512xf32> to vector<2x128xf32>
    %248 = math.tanh %247 : vector<2x128xf32>
    %cst_88 = arith.constant 5.000000e-01 : f32
    %249 = vector.broadcast %cst_88 : f32 to vector<2x128xf32>
    %250 = arith.mulf %249, %248 : vector<2x128xf32>
    %cst_89 = arith.constant 5.000000e-01 : f32
    %251 = vector.broadcast %cst_89 : f32 to vector<2x128xf32>
    %252 = arith.addf %250, %251 : vector<2x128xf32>
    %253 = arith.mulf %244, %194 : vector<2x128xf32>
    %254 = arith.mulf %238, %246 : vector<2x128xf32>
    %255 = arith.addf %253, %254 : vector<2x128xf32>
    %256 = math.tanh %255 : vector<2x128xf32>
    %257 = arith.mulf %252, %256 : vector<2x128xf32>
    %c8 = arith.constant 8 : index
    %c0_90 = arith.constant 0 : index
    %258 = vector.load %arg9[%c8, %c0_90] : memref<16x512xf32, #tpu.memory_space<vmem>>, vector<2x512xf32>
    %259 = arith.truncf %226 : vector<2x128xf32> to vector<2x128xbf16>
    %c0_91 = arith.constant 0 : index
    %c0_92 = arith.constant 0 : index
    %260 = vector.load %arg3[%c0_91, %c0_92] : memref<128x512xbf16, #tpu.memory_space<vmem>>, vector<128x512xbf16>
    %cst_93 = arith.constant dense<0.000000e+00> : vector<2x512xf32>
    %261 = tpu.matmul %259, %260, %cst_93 {dimension_numbers = #tpu.dot_dimension_numbers<[1], [0], [0], [1], [0, 0, 1, 1], [], []>} : vector<2x128xbf16>, vector<128x512xbf16>, vector<2x512xf32> -> vector<2x512xf32>
    %262 = arith.addf %258, %261 : vector<2x512xf32>
    %263 = vector.extract_strided_slice %262 {offsets = [0, 0], sizes = [2, 128], strides = [1, 1]} : vector<2x512xf32> to vector<2x128xf32>
    %264 = math.tanh %263 : vector<2x128xf32>
    %cst_94 = arith.constant 5.000000e-01 : f32
    %265 = vector.broadcast %cst_94 : f32 to vector<2x128xf32>
    %266 = arith.mulf %265, %264 : vector<2x128xf32>
    %cst_95 = arith.constant 5.000000e-01 : f32
    %267 = vector.broadcast %cst_95 : f32 to vector<2x128xf32>
    %268 = arith.addf %266, %267 : vector<2x128xf32>
    %269 = vector.extract_strided_slice %262 {offsets = [0, 128], sizes = [2, 128], strides = [1, 1]} : vector<2x512xf32> to vector<2x128xf32>
    %270 = math.tanh %269 : vector<2x128xf32>
    %cst_96 = arith.constant 5.000000e-01 : f32
    %271 = vector.broadcast %cst_96 : f32 to vector<2x128xf32>
    %272 = arith.mulf %271, %270 : vector<2x128xf32>
    %cst_97 = arith.constant 5.000000e-01 : f32
    %273 = vector.broadcast %cst_97 : f32 to vector<2x128xf32>
    %274 = arith.addf %272, %273 : vector<2x128xf32>
    %275 = vector.extract_strided_slice %262 {offsets = [0, 256], sizes = [2, 128], strides = [1, 1]} : vector<2x512xf32> to vector<2x128xf32>
    %276 = math.tanh %275 : vector<2x128xf32>
    %277 = vector.extract_strided_slice %262 {offsets = [0, 384], sizes = [2, 128], strides = [1, 1]} : vector<2x512xf32> to vector<2x128xf32>
    %278 = math.tanh %277 : vector<2x128xf32>
    %cst_98 = arith.constant 5.000000e-01 : f32
    %279 = vector.broadcast %cst_98 : f32 to vector<2x128xf32>
    %280 = arith.mulf %279, %278 : vector<2x128xf32>
    %cst_99 = arith.constant 5.000000e-01 : f32
    %281 = vector.broadcast %cst_99 : f32 to vector<2x128xf32>
    %282 = arith.addf %280, %281 : vector<2x128xf32>
    %283 = arith.mulf %274, %224 : vector<2x128xf32>
    %284 = arith.mulf %268, %276 : vector<2x128xf32>
    %285 = arith.addf %283, %284 : vector<2x128xf32>
    %286 = math.tanh %285 : vector<2x128xf32>
    %287 = arith.mulf %282, %286 : vector<2x128xf32>
    %288 = arith.truncf %287 : vector<2x128xf32> to vector<2x128xbf16>
    %289 = arith.truncf %257 : vector<2x128xf32> to vector<2x128xbf16>
    %290 = tpu.concatenate %288, %289 in 1 : vector<2x128xbf16>, vector<2x128xbf16> -> vector<2x256xbf16>
    %c0_100 = arith.constant 0 : index
    %c0_101 = arith.constant 0 : index
    %291 = vector.load %arg4[%c0_100, %c0_101] : memref<256x512xbf16, #tpu.memory_space<vmem>>, vector<256x512xbf16>
    %cst_102 = arith.constant dense<0.000000e+00> : vector<2x512xf32>
    %292 = tpu.matmul %290, %291, %cst_102 {dimension_numbers = #tpu.dot_dimension_numbers<[1], [0], [0], [1], [0, 0, 1, 1], [], []>} : vector<2x256xbf16>, vector<256x512xbf16>, vector<2x512xf32> -> vector<2x512xf32>
    %293 = arith.addf %292, %9 : vector<2x512xf32>
    %294 = vector.extract_strided_slice %293 {offsets = [0, 0], sizes = [2, 128], strides = [1, 1]} : vector<2x512xf32> to vector<2x128xf32>
    %295 = math.tanh %294 : vector<2x128xf32>
    %cst_103 = arith.constant 5.000000e-01 : f32
    %296 = vector.broadcast %cst_103 : f32 to vector<2x128xf32>
    %297 = arith.mulf %296, %295 : vector<2x128xf32>
    %cst_104 = arith.constant 5.000000e-01 : f32
    %298 = vector.broadcast %cst_104 : f32 to vector<2x128xf32>
    %299 = arith.addf %297, %298 : vector<2x128xf32>
    %300 = vector.extract_strided_slice %293 {offsets = [0, 128], sizes = [2, 128], strides = [1, 1]} : vector<2x512xf32> to vector<2x128xf32>
    %301 = math.tanh %300 : vector<2x128xf32>
    %cst_105 = arith.constant 5.000000e-01 : f32
    %302 = vector.broadcast %cst_105 : f32 to vector<2x128xf32>
    %303 = arith.mulf %302, %301 : vector<2x128xf32>
    %cst_106 = arith.constant 5.000000e-01 : f32
    %304 = vector.broadcast %cst_106 : f32 to vector<2x128xf32>
    %305 = arith.addf %303, %304 : vector<2x128xf32>
    %306 = vector.extract_strided_slice %293 {offsets = [0, 256], sizes = [2, 128], strides = [1, 1]} : vector<2x512xf32> to vector<2x128xf32>
    %307 = math.tanh %306 : vector<2x128xf32>
    %308 = vector.extract_strided_slice %293 {offsets = [0, 384], sizes = [2, 128], strides = [1, 1]} : vector<2x512xf32> to vector<2x128xf32>
    %309 = math.tanh %308 : vector<2x128xf32>
    %cst_107 = arith.constant 5.000000e-01 : f32
    %310 = vector.broadcast %cst_107 : f32 to vector<2x128xf32>
    %311 = arith.mulf %310, %309 : vector<2x128xf32>
    %cst_108 = arith.constant 5.000000e-01 : f32
    %312 = vector.broadcast %cst_108 : f32 to vector<2x128xf32>
    %313 = arith.addf %311, %312 : vector<2x128xf32>
    %314 = arith.mulf %305, %255 : vector<2x128xf32>
    %315 = arith.mulf %299, %307 : vector<2x128xf32>
    %316 = arith.addf %314, %315 : vector<2x128xf32>
    %317 = math.tanh %316 : vector<2x128xf32>
    %318 = arith.mulf %313, %317 : vector<2x128xf32>
    %c10 = arith.constant 10 : index
    %c0_109 = arith.constant 0 : index
    %319 = vector.load %arg9[%c10, %c0_109] : memref<16x512xf32, #tpu.memory_space<vmem>>, vector<2x512xf32>
    %320 = arith.truncf %287 : vector<2x128xf32> to vector<2x128xbf16>
    %c0_110 = arith.constant 0 : index
    %c0_111 = arith.constant 0 : index
    %321 = vector.load %arg3[%c0_110, %c0_111] : memref<128x512xbf16, #tpu.memory_space<vmem>>, vector<128x512xbf16>
    %cst_112 = arith.constant dense<0.000000e+00> : vector<2x512xf32>
    %322 = tpu.matmul %320, %321, %cst_112 {dimension_numbers = #tpu.dot_dimension_numbers<[1], [0], [0], [1], [0, 0, 1, 1], [], []>} : vector<2x128xbf16>, vector<128x512xbf16>, vector<2x512xf32> -> vector<2x512xf32>
    %323 = arith.addf %319, %322 : vector<2x512xf32>
    %324 = vector.extract_strided_slice %323 {offsets = [0, 0], sizes = [2, 128], strides = [1, 1]} : vector<2x512xf32> to vector<2x128xf32>
    %325 = math.tanh %324 : vector<2x128xf32>
    %cst_113 = arith.constant 5.000000e-01 : f32
    %326 = vector.broadcast %cst_113 : f32 to vector<2x128xf32>
    %327 = arith.mulf %326, %325 : vector<2x128xf32>
    %cst_114 = arith.constant 5.000000e-01 : f32
    %328 = vector.broadcast %cst_114 : f32 to vector<2x128xf32>
    %329 = arith.addf %327, %328 : vector<2x128xf32>
    %330 = vector.extract_strided_slice %323 {offsets = [0, 128], sizes = [2, 128], strides = [1, 1]} : vector<2x512xf32> to vector<2x128xf32>
    %331 = math.tanh %330 : vector<2x128xf32>
    %cst_115 = arith.constant 5.000000e-01 : f32
    %332 = vector.broadcast %cst_115 : f32 to vector<2x128xf32>
    %333 = arith.mulf %332, %331 : vector<2x128xf32>
    %cst_116 = arith.constant 5.000000e-01 : f32
    %334 = vector.broadcast %cst_116 : f32 to vector<2x128xf32>
    %335 = arith.addf %333, %334 : vector<2x128xf32>
    %336 = vector.extract_strided_slice %323 {offsets = [0, 256], sizes = [2, 128], strides = [1, 1]} : vector<2x512xf32> to vector<2x128xf32>
    %337 = math.tanh %336 : vector<2x128xf32>
    %338 = vector.extract_strided_slice %323 {offsets = [0, 384], sizes = [2, 128], strides = [1, 1]} : vector<2x512xf32> to vector<2x128xf32>
    %339 = math.tanh %338 : vector<2x128xf32>
    %cst_117 = arith.constant 5.000000e-01 : f32
    %340 = vector.broadcast %cst_117 : f32 to vector<2x128xf32>
    %341 = arith.mulf %340, %339 : vector<2x128xf32>
    %cst_118 = arith.constant 5.000000e-01 : f32
    %342 = vector.broadcast %cst_118 : f32 to vector<2x128xf32>
    %343 = arith.addf %341, %342 : vector<2x128xf32>
    %344 = arith.mulf %335, %285 : vector<2x128xf32>
    %345 = arith.mulf %329, %337 : vector<2x128xf32>
    %346 = arith.addf %344, %345 : vector<2x128xf32>
    %347 = math.tanh %346 : vector<2x128xf32>
    %348 = arith.mulf %343, %347 : vector<2x128xf32>
    %349 = arith.truncf %348 : vector<2x128xf32> to vector<2x128xbf16>
    %350 = arith.truncf %318 : vector<2x128xf32> to vector<2x128xbf16>
    %351 = tpu.concatenate %349, %350 in 1 : vector<2x128xbf16>, vector<2x128xbf16> -> vector<2x256xbf16>
    %c0_119 = arith.constant 0 : index
    %c0_120 = arith.constant 0 : index
    %352 = vector.load %arg4[%c0_119, %c0_120] : memref<256x512xbf16, #tpu.memory_space<vmem>>, vector<256x512xbf16>
    %cst_121 = arith.constant dense<0.000000e+00> : vector<2x512xf32>
    %353 = tpu.matmul %351, %352, %cst_121 {dimension_numbers = #tpu.dot_dimension_numbers<[1], [0], [0], [1], [0, 0, 1, 1], [], []>} : vector<2x256xbf16>, vector<256x512xbf16>, vector<2x512xf32> -> vector<2x512xf32>
    %354 = arith.addf %353, %9 : vector<2x512xf32>
    %355 = vector.extract_strided_slice %354 {offsets = [0, 0], sizes = [2, 128], strides = [1, 1]} : vector<2x512xf32> to vector<2x128xf32>
    %356 = math.tanh %355 : vector<2x128xf32>
    %cst_122 = arith.constant 5.000000e-01 : f32
    %357 = vector.broadcast %cst_122 : f32 to vector<2x128xf32>
    %358 = arith.mulf %357, %356 : vector<2x128xf32>
    %cst_123 = arith.constant 5.000000e-01 : f32
    %359 = vector.broadcast %cst_123 : f32 to vector<2x128xf32>
    %360 = arith.addf %358, %359 : vector<2x128xf32>
    %361 = vector.extract_strided_slice %354 {offsets = [0, 128], sizes = [2, 128], strides = [1, 1]} : vector<2x512xf32> to vector<2x128xf32>
    %362 = math.tanh %361 : vector<2x128xf32>
    %cst_124 = arith.constant 5.000000e-01 : f32
    %363 = vector.broadcast %cst_124 : f32 to vector<2x128xf32>
    %364 = arith.mulf %363, %362 : vector<2x128xf32>
    %cst_125 = arith.constant 5.000000e-01 : f32
    %365 = vector.broadcast %cst_125 : f32 to vector<2x128xf32>
    %366 = arith.addf %364, %365 : vector<2x128xf32>
    %367 = vector.extract_strided_slice %354 {offsets = [0, 256], sizes = [2, 128], strides = [1, 1]} : vector<2x512xf32> to vector<2x128xf32>
    %368 = math.tanh %367 : vector<2x128xf32>
    %369 = vector.extract_strided_slice %354 {offsets = [0, 384], sizes = [2, 128], strides = [1, 1]} : vector<2x512xf32> to vector<2x128xf32>
    %370 = math.tanh %369 : vector<2x128xf32>
    %cst_126 = arith.constant 5.000000e-01 : f32
    %371 = vector.broadcast %cst_126 : f32 to vector<2x128xf32>
    %372 = arith.mulf %371, %370 : vector<2x128xf32>
    %cst_127 = arith.constant 5.000000e-01 : f32
    %373 = vector.broadcast %cst_127 : f32 to vector<2x128xf32>
    %374 = arith.addf %372, %373 : vector<2x128xf32>
    %375 = arith.mulf %366, %316 : vector<2x128xf32>
    %376 = arith.mulf %360, %368 : vector<2x128xf32>
    %377 = arith.addf %375, %376 : vector<2x128xf32>
    %378 = math.tanh %377 : vector<2x128xf32>
    %379 = arith.mulf %374, %378 : vector<2x128xf32>
    %c12 = arith.constant 12 : index
    %c0_128 = arith.constant 0 : index
    %380 = vector.load %arg9[%c12, %c0_128] : memref<16x512xf32, #tpu.memory_space<vmem>>, vector<2x512xf32>
    %381 = arith.truncf %348 : vector<2x128xf32> to vector<2x128xbf16>
    %c0_129 = arith.constant 0 : index
    %c0_130 = arith.constant 0 : index
    %382 = vector.load %arg3[%c0_129, %c0_130] : memref<128x512xbf16, #tpu.memory_space<vmem>>, vector<128x512xbf16>
    %cst_131 = arith.constant dense<0.000000e+00> : vector<2x512xf32>
    %383 = tpu.matmul %381, %382, %cst_131 {dimension_numbers = #tpu.dot_dimension_numbers<[1], [0], [0], [1], [0, 0, 1, 1], [], []>} : vector<2x128xbf16>, vector<128x512xbf16>, vector<2x512xf32> -> vector<2x512xf32>
    %384 = arith.addf %380, %383 : vector<2x512xf32>
    %385 = vector.extract_strided_slice %384 {offsets = [0, 0], sizes = [2, 128], strides = [1, 1]} : vector<2x512xf32> to vector<2x128xf32>
    %386 = math.tanh %385 : vector<2x128xf32>
    %cst_132 = arith.constant 5.000000e-01 : f32
    %387 = vector.broadcast %cst_132 : f32 to vector<2x128xf32>
    %388 = arith.mulf %387, %386 : vector<2x128xf32>
    %cst_133 = arith.constant 5.000000e-01 : f32
    %389 = vector.broadcast %cst_133 : f32 to vector<2x128xf32>
    %390 = arith.addf %388, %389 : vector<2x128xf32>
    %391 = vector.extract_strided_slice %384 {offsets = [0, 128], sizes = [2, 128], strides = [1, 1]} : vector<2x512xf32> to vector<2x128xf32>
    %392 = math.tanh %391 : vector<2x128xf32>
    %cst_134 = arith.constant 5.000000e-01 : f32
    %393 = vector.broadcast %cst_134 : f32 to vector<2x128xf32>
    %394 = arith.mulf %393, %392 : vector<2x128xf32>
    %cst_135 = arith.constant 5.000000e-01 : f32
    %395 = vector.broadcast %cst_135 : f32 to vector<2x128xf32>
    %396 = arith.addf %394, %395 : vector<2x128xf32>
    %397 = vector.extract_strided_slice %384 {offsets = [0, 256], sizes = [2, 128], strides = [1, 1]} : vector<2x512xf32> to vector<2x128xf32>
    %398 = math.tanh %397 : vector<2x128xf32>
    %399 = vector.extract_strided_slice %384 {offsets = [0, 384], sizes = [2, 128], strides = [1, 1]} : vector<2x512xf32> to vector<2x128xf32>
    %400 = math.tanh %399 : vector<2x128xf32>
    %cst_136 = arith.constant 5.000000e-01 : f32
    %401 = vector.broadcast %cst_136 : f32 to vector<2x128xf32>
    %402 = arith.mulf %401, %400 : vector<2x128xf32>
    %cst_137 = arith.constant 5.000000e-01 : f32
    %403 = vector.broadcast %cst_137 : f32 to vector<2x128xf32>
    %404 = arith.addf %402, %403 : vector<2x128xf32>
    %405 = arith.mulf %396, %346 : vector<2x128xf32>
    %406 = arith.mulf %390, %398 : vector<2x128xf32>
    %407 = arith.addf %405, %406 : vector<2x128xf32>
    %408 = math.tanh %407 : vector<2x128xf32>
    %409 = arith.mulf %404, %408 : vector<2x128xf32>
    %410 = arith.truncf %409 : vector<2x128xf32> to vector<2x128xbf16>
    %411 = arith.truncf %379 : vector<2x128xf32> to vector<2x128xbf16>
    %412 = tpu.concatenate %410, %411 in 1 : vector<2x128xbf16>, vector<2x128xbf16> -> vector<2x256xbf16>
    %c0_138 = arith.constant 0 : index
    %c0_139 = arith.constant 0 : index
    %413 = vector.load %arg4[%c0_138, %c0_139] : memref<256x512xbf16, #tpu.memory_space<vmem>>, vector<256x512xbf16>
    %cst_140 = arith.constant dense<0.000000e+00> : vector<2x512xf32>
    %414 = tpu.matmul %412, %413, %cst_140 {dimension_numbers = #tpu.dot_dimension_numbers<[1], [0], [0], [1], [0, 0, 1, 1], [], []>} : vector<2x256xbf16>, vector<256x512xbf16>, vector<2x512xf32> -> vector<2x512xf32>
    %415 = arith.addf %414, %9 : vector<2x512xf32>
    %416 = vector.extract_strided_slice %415 {offsets = [0, 0], sizes = [2, 128], strides = [1, 1]} : vector<2x512xf32> to vector<2x128xf32>
    %417 = math.tanh %416 : vector<2x128xf32>
    %cst_141 = arith.constant 5.000000e-01 : f32
    %418 = vector.broadcast %cst_141 : f32 to vector<2x128xf32>
    %419 = arith.mulf %418, %417 : vector<2x128xf32>
    %cst_142 = arith.constant 5.000000e-01 : f32
    %420 = vector.broadcast %cst_142 : f32 to vector<2x128xf32>
    %421 = arith.addf %419, %420 : vector<2x128xf32>
    %422 = vector.extract_strided_slice %415 {offsets = [0, 128], sizes = [2, 128], strides = [1, 1]} : vector<2x512xf32> to vector<2x128xf32>
    %423 = math.tanh %422 : vector<2x128xf32>
    %cst_143 = arith.constant 5.000000e-01 : f32
    %424 = vector.broadcast %cst_143 : f32 to vector<2x128xf32>
    %425 = arith.mulf %424, %423 : vector<2x128xf32>
    %cst_144 = arith.constant 5.000000e-01 : f32
    %426 = vector.broadcast %cst_144 : f32 to vector<2x128xf32>
    %427 = arith.addf %425, %426 : vector<2x128xf32>
    %428 = vector.extract_strided_slice %415 {offsets = [0, 256], sizes = [2, 128], strides = [1, 1]} : vector<2x512xf32> to vector<2x128xf32>
    %429 = math.tanh %428 : vector<2x128xf32>
    %430 = vector.extract_strided_slice %415 {offsets = [0, 384], sizes = [2, 128], strides = [1, 1]} : vector<2x512xf32> to vector<2x128xf32>
    %431 = math.tanh %430 : vector<2x128xf32>
    %cst_145 = arith.constant 5.000000e-01 : f32
    %432 = vector.broadcast %cst_145 : f32 to vector<2x128xf32>
    %433 = arith.mulf %432, %431 : vector<2x128xf32>
    %cst_146 = arith.constant 5.000000e-01 : f32
    %434 = vector.broadcast %cst_146 : f32 to vector<2x128xf32>
    %435 = arith.addf %433, %434 : vector<2x128xf32>
    %436 = arith.mulf %427, %377 : vector<2x128xf32>
    %437 = arith.mulf %421, %429 : vector<2x128xf32>
    %438 = arith.addf %436, %437 : vector<2x128xf32>
    %439 = math.tanh %438 : vector<2x128xf32>
    %440 = arith.mulf %435, %439 : vector<2x128xf32>
    %c14 = arith.constant 14 : index
    %c0_147 = arith.constant 0 : index
    %441 = vector.load %arg9[%c14, %c0_147] : memref<16x512xf32, #tpu.memory_space<vmem>>, vector<2x512xf32>
    %442 = arith.truncf %409 : vector<2x128xf32> to vector<2x128xbf16>
    %c0_148 = arith.constant 0 : index
    %c0_149 = arith.constant 0 : index
    %443 = vector.load %arg3[%c0_148, %c0_149] : memref<128x512xbf16, #tpu.memory_space<vmem>>, vector<128x512xbf16>
    %cst_150 = arith.constant dense<0.000000e+00> : vector<2x512xf32>
    %444 = tpu.matmul %442, %443, %cst_150 {dimension_numbers = #tpu.dot_dimension_numbers<[1], [0], [0], [1], [0, 0, 1, 1], [], []>} : vector<2x128xbf16>, vector<128x512xbf16>, vector<2x512xf32> -> vector<2x512xf32>
    %445 = arith.addf %441, %444 : vector<2x512xf32>
    %446 = vector.extract_strided_slice %445 {offsets = [0, 0], sizes = [2, 128], strides = [1, 1]} : vector<2x512xf32> to vector<2x128xf32>
    %447 = math.tanh %446 : vector<2x128xf32>
    %cst_151 = arith.constant 5.000000e-01 : f32
    %448 = vector.broadcast %cst_151 : f32 to vector<2x128xf32>
    %449 = arith.mulf %448, %447 : vector<2x128xf32>
    %cst_152 = arith.constant 5.000000e-01 : f32
    %450 = vector.broadcast %cst_152 : f32 to vector<2x128xf32>
    %451 = arith.addf %449, %450 : vector<2x128xf32>
    %452 = vector.extract_strided_slice %445 {offsets = [0, 128], sizes = [2, 128], strides = [1, 1]} : vector<2x512xf32> to vector<2x128xf32>
    %453 = math.tanh %452 : vector<2x128xf32>
    %cst_153 = arith.constant 5.000000e-01 : f32
    %454 = vector.broadcast %cst_153 : f32 to vector<2x128xf32>
    %455 = arith.mulf %454, %453 : vector<2x128xf32>
    %cst_154 = arith.constant 5.000000e-01 : f32
    %456 = vector.broadcast %cst_154 : f32 to vector<2x128xf32>
    %457 = arith.addf %455, %456 : vector<2x128xf32>
    %458 = vector.extract_strided_slice %445 {offsets = [0, 256], sizes = [2, 128], strides = [1, 1]} : vector<2x512xf32> to vector<2x128xf32>
    %459 = math.tanh %458 : vector<2x128xf32>
    %460 = vector.extract_strided_slice %445 {offsets = [0, 384], sizes = [2, 128], strides = [1, 1]} : vector<2x512xf32> to vector<2x128xf32>
    %461 = math.tanh %460 : vector<2x128xf32>
    %cst_155 = arith.constant 5.000000e-01 : f32
    %462 = vector.broadcast %cst_155 : f32 to vector<2x128xf32>
    %463 = arith.mulf %462, %461 : vector<2x128xf32>
    %cst_156 = arith.constant 5.000000e-01 : f32
    %464 = vector.broadcast %cst_156 : f32 to vector<2x128xf32>
    %465 = arith.addf %463, %464 : vector<2x128xf32>
    %466 = arith.mulf %457, %407 : vector<2x128xf32>
    %467 = arith.mulf %451, %459 : vector<2x128xf32>
    %468 = arith.addf %466, %467 : vector<2x128xf32>
    %469 = math.tanh %468 : vector<2x128xf32>
    %470 = arith.mulf %465, %469 : vector<2x128xf32>
    %471 = arith.truncf %470 : vector<2x128xf32> to vector<2x128xbf16>
    %472 = arith.truncf %440 : vector<2x128xf32> to vector<2x128xbf16>
    %473 = tpu.concatenate %471, %472 in 1 : vector<2x128xbf16>, vector<2x128xbf16> -> vector<2x256xbf16>
    %c0_157 = arith.constant 0 : index
    %c0_158 = arith.constant 0 : index
    %474 = vector.load %arg4[%c0_157, %c0_158] : memref<256x512xbf16, #tpu.memory_space<vmem>>, vector<256x512xbf16>
    %cst_159 = arith.constant dense<0.000000e+00> : vector<2x512xf32>
    %475 = tpu.matmul %473, %474, %cst_159 {dimension_numbers = #tpu.dot_dimension_numbers<[1], [0], [0], [1], [0, 0, 1, 1], [], []>} : vector<2x256xbf16>, vector<256x512xbf16>, vector<2x512xf32> -> vector<2x512xf32>
    %476 = arith.addf %475, %9 : vector<2x512xf32>
    %477 = vector.extract_strided_slice %476 {offsets = [0, 0], sizes = [2, 128], strides = [1, 1]} : vector<2x512xf32> to vector<2x128xf32>
    %478 = math.tanh %477 : vector<2x128xf32>
    %cst_160 = arith.constant 5.000000e-01 : f32
    %479 = vector.broadcast %cst_160 : f32 to vector<2x128xf32>
    %480 = arith.mulf %479, %478 : vector<2x128xf32>
    %cst_161 = arith.constant 5.000000e-01 : f32
    %481 = vector.broadcast %cst_161 : f32 to vector<2x128xf32>
    %482 = arith.addf %480, %481 : vector<2x128xf32>
    %483 = vector.extract_strided_slice %476 {offsets = [0, 128], sizes = [2, 128], strides = [1, 1]} : vector<2x512xf32> to vector<2x128xf32>
    %484 = math.tanh %483 : vector<2x128xf32>
    %cst_162 = arith.constant 5.000000e-01 : f32
    %485 = vector.broadcast %cst_162 : f32 to vector<2x128xf32>
    %486 = arith.mulf %485, %484 : vector<2x128xf32>
    %cst_163 = arith.constant 5.000000e-01 : f32
    %487 = vector.broadcast %cst_163 : f32 to vector<2x128xf32>
    %488 = arith.addf %486, %487 : vector<2x128xf32>
    %489 = vector.extract_strided_slice %476 {offsets = [0, 256], sizes = [2, 128], strides = [1, 1]} : vector<2x512xf32> to vector<2x128xf32>
    %490 = math.tanh %489 : vector<2x128xf32>
    %491 = vector.extract_strided_slice %476 {offsets = [0, 384], sizes = [2, 128], strides = [1, 1]} : vector<2x512xf32> to vector<2x128xf32>
    %492 = math.tanh %491 : vector<2x128xf32>
    %cst_164 = arith.constant 5.000000e-01 : f32
    %493 = vector.broadcast %cst_164 : f32 to vector<2x128xf32>
    %494 = arith.mulf %493, %492 : vector<2x128xf32>
    %cst_165 = arith.constant 5.000000e-01 : f32
    %495 = vector.broadcast %cst_165 : f32 to vector<2x128xf32>
    %496 = arith.addf %494, %495 : vector<2x128xf32>
    %497 = arith.mulf %488, %438 : vector<2x128xf32>
    %498 = arith.mulf %482, %490 : vector<2x128xf32>
    %499 = arith.addf %497, %498 : vector<2x128xf32>
    %500 = math.tanh %499 : vector<2x128xf32>
    %501 = arith.mulf %496, %500 : vector<2x128xf32>
    %502 = arith.truncf %501 : vector<2x128xf32> to vector<2x128xbf16>
    %c0_166 = arith.constant 0 : index
    %c0_167 = arith.constant 0 : index
    %503 = vector.load %arg6[%c0_166, %c0_167] : memref<128x128xbf16, #tpu.memory_space<vmem>>, vector<128x128xbf16>
    %cst_168 = arith.constant dense<0.000000e+00> : vector<2x128xf32>
    %504 = tpu.matmul %502, %503, %cst_168 {dimension_numbers = #tpu.dot_dimension_numbers<[1], [0], [0], [1], [0, 0, 1, 1], [], []>} : vector<2x128xbf16>, vector<128x128xbf16>, vector<2x128xf32> -> vector<2x128xf32>
    %c0_169 = arith.constant 0 : index
    %c0_170 = arith.constant 0 : index
    %505 = vector.load %arg7[%c0_169, %c0_170] : memref<1x128xf32, #tpu.memory_space<vmem>>, vector<1x128xf32>
    %506 = vector.broadcast %505 : vector<1x128xf32> to vector<2x128xf32>
    %507 = arith.addf %504, %506 : vector<2x128xf32>
    %c0_171 = arith.constant 0 : index
    %c0_172 = arith.constant 0 : index
    %508 = vector.load %arg8[%c0_171, %c0_172] : memref<2x128xf32, #tpu.memory_space<vmem>>, vector<2x128xf32>
    tpu.vector_store %arg8[%c0_171, %c0_172], %507 {strides = array<i32>} : memref<2x128xf32, #tpu.memory_space<vmem>>, vector<2x128xf32>,
    return
  }
}

</mosaic_0001>

<llo_original>
// kernel: settlement_predictor_forward.1
$region0: #{settlement_predictor_forward.1}
  #allocation0 [shape = 'u32[]', space=smem, size = 0x4, offset = 0x4, fixed_abs, tag = 'smem constant byte address 0x4 - core index']
  #allocation1 [shape = 'u32[72,128]{1,0:T(1,128)}', space=vmem, size = 0x9000, scoped, tag = 'internal scratch']
  #allocation2 [shape = 'f32[16,512]{1,0:T(8,128)}', space=vmem, size = 0x8000, scoped, tag = 'scratch operand']
  %s0 = inlined_call_operand.vmem [shape: bf16[16,128], index: 0, kind: input, shape index: {}]
  %s1 = inlined_call_operand.hbm [shape: bf16[128,512], index: 1, kind: input, shape index: {}]
  %s2 = inlined_call_operand.vmem [shape: f32[1,512], index: 2, kind: input, shape index: {}]
  %s3 = inlined_call_operand.hbm [shape: bf16[128,512], index: 3, kind: input, shape index: {}]
  %s4 = inlined_call_operand.hbm [shape: bf16[256,512], index: 4, kind: input, shape index: {}]
  %s5 = inlined_call_operand.vmem [shape: f32[1,512], index: 5, kind: input, shape index: {}]
  %s6 = inlined_call_operand.hbm [shape: bf16[128,128], index: 6, kind: input, shape index: {}]
  %s7 = inlined_call_operand.vmem [shape: f32[1,128], index: 7, kind: input, shape index: {}]
  %s8 = inlined_call_operand.hbm [shape: f32[2,128], index: 8, kind: output, shape index: {}]
  %s9 = sld [smem:[#allocation0]]
  $region58: #{settlement_predictor_forward.1} parent=0
    _
  %s11 = ssub.s32 1, %s9
  %s12 = scalar_select 0, %s11, %s9
  $region1: #{settlement_predictor_forward.1} parent=0
    #allocation3 [shape = 'u8[131072]{0}', space=vmem, size = 0x20000, scoped, tag = 'input window, operand 1, single buffered']
    #allocation4 [shape = 's32[1]{0}', space=sflag, size = 0x4, scoped, tag = 'scoped memory for settlement_predictor_forward.1']
    #allocation5 [shape = 's32[1]{0}', space=sflag, size = 0x4, scoped, tag = 'scoped memory for settlement_predictor_forward.1']
    #allocation6 [shape = 'u8[131072]{0}', space=vmem, size = 0x20000, scoped, tag = 'input window, operand 3, single buffered']
    #allocation7 [shape = 's32[1]{0}', space=sflag, size = 0x4, scoped, tag = 'scoped memory for settlement_predictor_forward.1']
    #allocation8 [shape = 'u8[262144]{0}', space=vmem, size = 0x40000, scoped, tag = 'input window, operand 4, single buffered']
    #allocation9 [shape = 'u8[32768]{0}', space=vmem, size = 0x8000, scoped, tag = 'input window, operand 6, single buffered']
    #allocation10 [shape = 's32[1]{0}', space=sflag, size = 0x4, scoped, tag = 'scoped memory for settlement_predictor_forward.1']
    #allocation11 [shape = 'u8[1024]{0}', space=vmem, size = 0x400, scoped, tag = 'output window, operand 0, single buffered']
    %13 = vsyncpa [#allocation4], 0
    %14 = vsyncpa [#allocation7], 0
    %15 = vsyncpa [#allocation10], 0
    %16 = vsyncpa [#allocation5], 0
    // Predicated region
    $region2: #{settlement_predictor_forward.1} parent=1 // pred_check
      _
    $region3: #{settlement_predictor_forward.1} parent=1 // pred_check_branch
      %18 = sbr.rel (0) target = $region5
    $region4: #{settlement_predictor_forward.1} parent=1 // pred_region
      _
    $region5: #{settlement_predictor_forward.1} parent=1 // pred_fallthru
      _
    // Predicated region
    $region6: #{settlement_predictor_forward.1} parent=1 // pred_check
      _
    $region7: #{settlement_predictor_forward.1} parent=1 // pred_check_branch
      %20 = sbr.rel (0) target = $region9
    $region8: #{settlement_predictor_forward.1} parent=1 // pred_region
      %22 = vsyncadd [#allocation4], 0
      %s23 = sshll.u32 %s1, 4
      %s24 = int_to_ptr.hbm [resolvable:$true] %s23
      %s25 = sshll.u32 [#allocation3], 4
      %s26 = int_to_ptr.vmem [resolvable:$true] %s25
      %31 = dma.hbm_to_vmem [thread:$0]  %s24, 4096, %s26, [#allocation4], 256, 256, 16
    $region9: #{settlement_predictor_forward.1} parent=1 // pred_fallthru
      _
    // Predicated region
    $region10: #{settlement_predictor_forward.1} parent=1 // pred_check
      _
    $region11: #{settlement_predictor_forward.1} parent=1 // pred_check_branch
      %33 = sbr.rel (0) target = $region13
    $region12: #{settlement_predictor_forward.1} parent=1 // pred_region
      _
    $region13: #{settlement_predictor_forward.1} parent=1 // pred_fallthru
      _
    // Predicated region
    $region14: #{settlement_predictor_forward.1} parent=1 // pred_check
      _
    $region15: #{settlement_predictor_forward.1} parent=1 // pred_check_branch
      %35 = sbr.rel (0) target = $region17
    $region16: #{settlement_predictor_forward.1} parent=1 // pred_region
      %37 = vsyncadd [#allocation7], 0
      %s38 = sshll.u32 %s3, 4
      %s39 = int_to_ptr.hbm [resolvable:$true] %s38
      %s40 = sshll.u32 [#allocation6], 4
      %s41 = int_to_ptr.vmem [resolvable:$true] %s40
      %46 = dma.hbm_to_vmem [thread:$0]  %s39, 4096, %s41, [#allocation7], 256, 256, 16
    $region17: #{settlement_predictor_forward.1} parent=1 // pred_fallthru
      _
    // Predicated region
    $region18: #{settlement_predictor_forward.1} parent=1 // pred_check
      _
    $region19: #{settlement_predictor_forward.1} parent=1 // pred_check_branch
      %48 = sbr.rel (0) target = $region21
    $region20: #{settlement_predictor_forward.1} parent=1 // pred_region
      %50 = vsyncadd [#allocation7], 0
      %s51 = sshll.u32 %s4, 4
      %s52 = int_to_ptr.hbm [resolvable:$true] %s51
      %s53 = sshll.u32 [#allocation8], 4
      %s54 = int_to_ptr.vmem [resolvable:$true] %s53
      %59 = dma.hbm_to_vmem [thread:$0]  %s52, 8192, %s54, [#allocation7], 256, 256, 16
    $region21: #{settlement_predictor_forward.1} parent=1 // pred_fallthru
      _
    // Predicated region
    $region22: #{settlement_predictor_forward.1} parent=1 // pred_check
      _
    $region23: #{settlement_predictor_forward.1} parent=1 // pred_check_branch
      %61 = sbr.rel (0) target = $region25
    $region24: #{settlement_predictor_forward.1} parent=1 // pred_region
      _
    $region25: #{settlement_predictor_forward.1} parent=1 // pred_fallthru
      _
    // Predicated region
    $region26: #{settlement_predictor_forward.1} parent=1 // pred_check
      _
    $region27: #{settlement_predictor_forward.1} parent=1 // pred_check_branch
      %63 = sbr.rel (0) target = $region29
    $region28: #{settlement_predictor_forward.1} parent=1 // pred_region
      %65 = vsyncadd [#allocation10], 0
      %s66 = sshll.u32 %s6, 4
      %s67 = int_to_ptr.hbm [resolvable:$true] %s66
      %s68 = sshll.u32 [#allocation9], 4
      %s69 = int_to_ptr.vmem [resolvable:$true] %s68
      %74 = dma.hbm_to_vmem [thread:$0]  %s67, 1024, %s69, [#allocation10], 64, 64, 4
    $region29: #{settlement_predictor_forward.1} parent=1 // pred_fallthru
      _
    // Predicated region
    $region30: #{settlement_predictor_forward.1} parent=1 // pred_check
      _
    $region31: #{settlement_predictor_forward.1} parent=1 // pred_check_branch
      %76 = sbr.rel (0) target = $region33
    $region32: #{settlement_predictor_forward.1} parent=1 // pred_region
      _
    $region33: #{settlement_predictor_forward.1} parent=1 // pred_fallthru
      _
    // Predicated region
    $region34: #{settlement_predictor_forward.1} parent=1 // pred_check
      _
    $region35: #{settlement_predictor_forward.1} parent=1 // pred_check_branch
      %78 = sbr.rel (0) target = $region37
    $region36: #{settlement_predictor_forward.1} parent=1 // pred_region
      %80 = dma.done [#allocation4], 4096
    $region37: #{settlement_predictor_forward.1} parent=1 // pred_fallthru
      _
    // Predicated region
    $region38: #{settlement_predictor_forward.1} parent=1 // pred_check
      _
    $region39: #{settlement_predictor_forward.1} parent=1 // pred_check_branch
      %82 = sbr.rel (0) target = $region41
    $region40: #{settlement_predictor_forward.1} parent=1 // pred_region
      %84 = dma.done [#allocation7], 4096
    $region41: #{settlement_predictor_forward.1} parent=1 // pred_fallthru
      _
    // Predicated region
    $region42: #{settlement_predictor_forward.1} parent=1 // pred_check
      _
    $region43: #{settlement_predictor_forward.1} parent=1 // pred_check_branch
      %86 = sbr.rel (0) target = $region45
    $region44: #{settlement_predictor_forward.1} parent=1 // pred_region
      %88 = dma.done [#allocation7], 8192
    $region45: #{settlement_predictor_forward.1} parent=1 // pred_fallthru
      _
    // Predicated region
    $region46: #{settlement_predictor_forward.1} parent=1 // pred_check
      _
    $region47: #{settlement_predictor_forward.1} parent=1 // pred_check_branch
      %90 = sbr.rel (0) target = $region49
    $region48: #{settlement_predictor_forward.1} parent=1 // pred_region
      %92 = dma.done [#allocation10], 1024
    $region49: #{settlement_predictor_forward.1} parent=1 // pred_fallthru
      _
    %v94 = vld [vmem:[%s0] sm:$0xf]
    %v95 = vld [vmem:[%s0 + $0x4] sm:$0xf]
    %v96 = vld [vmem:[#allocation3] sm:$0xff]
    %v97 = vld [vmem:[#allocation3 + $0x8] sm:$0xff]
    %v98 = vld [vmem:[#allocation3 + $0x10] sm:$0xff]
    %v99 = vld [vmem:[#allocation3 + $0x18] sm:$0xff]
    %v100 = vld [vmem:[#allocation3 + $0x20] sm:$0xff]
    %v101 = vld [vmem:[#allocation3 + $0x28] sm:$0xff]
    %v102 = vld [vmem:[#allocation3 + $0x30] sm:$0xff]
    %v103 = vld [vmem:[#allocation3 + $0x38] sm:$0xff]
    %v104 = vld [vmem:[#allocation3 + $0x40] sm:$0xff]
    %v105 = vld [vmem:[#allocation3 + $0x48] sm:$0xff]
    %v106 = vld [vmem:[#allocation3 + $0x50] sm:$0xff]
    %v107 = vld [vmem:[#allocation3 + $0x58] sm:$0xff]
    %v108 = vld [vmem:[#allocation3 + $0x60] sm:$0xff]
    %v109 = vld [vmem:[#allocation3 + $0x68] sm:$0xff]
    %v110 = vld [vmem:[#allocation3 + $0x70] sm:$0xff]
    %v111 = vld [vmem:[#allocation3 + $0x78] sm:$0xff]
    %v112 = vld [vmem:[#allocation3 + $0x80] sm:$0xff]
    %v113 = vld [vmem:[#allocation3 + $0x88] sm:$0xff]
    %v114 = vld [vmem:[#allocation3 + $0x90] sm:$0xff]
    %v115 = vld [vmem:[#allocation3 + $0x98] sm:$0xff]
    %v116 = vld [vmem:[#allocation3 + $0xa0] sm:$0xff]
    %v117 = vld [vmem:[#allocation3 + $0xa8] sm:$0xff]
    %v118 = vld [vmem:[#allocation3 + $0xb0] sm:$0xff]
    %v119 = vld [vmem:[#allocation3 + $0xb8] sm:$0xff]
    %v120 = vld [vmem:[#allocation3 + $0xc0] sm:$0xff]
    %v121 = vld [vmem:[#allocation3 + $0xc8] sm:$0xff]
    %v122 = vld [vmem:[#allocation3 + $0xd0] sm:$0xff]
    %v123 = vld [vmem:[#allocation3 + $0xd8] sm:$0xff]
    %v124 = vld [vmem:[#allocation3 + $0xe0] sm:$0xff]
    %v125 = vld [vmem:[#allocation3 + $0xe8] sm:$0xff]
    %v126 = vld [vmem:[#allocation3 + $0xf0] sm:$0xff]
    %v127 = vld [vmem:[#allocation3 + $0xf8] sm:$0xff]
    %v128 = vld [vmem:[%s2] sm:$0xf]
    %v130 = vperm.slane %v128, 0
    %v131 = vperm.slane %v128, 1
    %v132 = vperm.slane %v128, 2
    %v133 = vperm.slane %v128, 3
    %v140 = vunpack.c.l.b16 %v94
    %v141 = vunpack.c.l.b16 %v95
    %v142 = vpack.c.b16 %v141, %v140
    %v176 = vunpack.c.l.b16 %v96
    %v177 = vunpack.c.h.b16 %v96
    %v178 = vunpack.c.l.b16 %v97
    %v179 = vunpack.c.h.b16 %v97
    %v180 = vunpack.c.l.b16 %v98
    %v181 = vunpack.c.h.b16 %v98
    %v182 = vunpack.c.l.b16 %v99
    %v183 = vunpack.c.h.b16 %v99
    %v184 = vunpack.c.l.b16 %v100
    %v185 = vunpack.c.h.b16 %v100
    %v186 = vunpack.c.l.b16 %v101
    %v187 = vunpack.c.h.b16 %v101
    %v188 = vunpack.c.l.b16 %v102
    %v189 = vunpack.c.h.b16 %v102
    %v190 = vunpack.c.l.b16 %v103
    %v191 = vunpack.c.h.b16 %v103
    %v192 = vunpack.c.l.b16 %v104
    %v193 = vunpack.c.h.b16 %v104
    %v194 = vunpack.c.l.b16 %v105
    %v195 = vunpack.c.h.b16 %v105
    %v196 = vunpack.c.l.b16 %v106
    %v197 = vunpack.c.h.b16 %v106
    %v198 = vunpack.c.l.b16 %v107
    %v199 = vunpack.c.h.b16 %v107
    %v200 = vunpack.c.l.b16 %v108
    %v201 = vunpack.c.h.b16 %v108
    %v202 = vunpack.c.l.b16 %v109
    %v203 = vunpack.c.h.b16 %v109
    %v204 = vunpack.c.l.b16 %v110
    %v205 = vunpack.c.h.b16 %v110
    %v206 = vunpack.c.l.b16 %v111
    %v207 = vunpack.c.h.b16 %v111
    %v208 = vunpack.c.l.b16 %v112
    %v209 = vunpack.c.h.b16 %v112
    %v210 = vunpack.c.l.b16 %v113
    %v211 = vunpack.c.h.b16 %v113
    %v212 = vunpack.c.l.b16 %v114
    %v213 = vunpack.c.h.b16 %v114
    %v214 = vunpack.c.l.b16 %v115
    %v215 = vunpack.c.h.b16 %v115
    %v216 = vunpack.c.l.b16 %v116
    %v217 = vunpack.c.h.b16 %v116
    %v218 = vunpack.c.l.b16 %v117
    %v219 = vunpack.c.h.b16 %v117
    %v220 = vunpack.c.l.b16 %v118
    %v221 = vunpack.c.h.b16 %v118
    %v222 = vunpack.c.l.b16 %v119
    %v223 = vunpack.c.h.b16 %v119
    %v224 = vunpack.c.l.b16 %v120
    %v225 = vunpack.c.h.b16 %v120
    %v226 = vunpack.c.l.b16 %v121
    %v227 = vunpack.c.h.b16 %v121
    %v228 = vunpack.c.l.b16 %v122
    %v229 = vunpack.c.h.b16 %v122
    %v230 = vunpack.c.l.b16 %v123
    %v231 = vunpack.c.h.b16 %v123
    %v232 = vunpack.c.l.b16 %v124
    %v233 = vunpack.c.h.b16 %v124
    %v234 = vunpack.c.l.b16 %v125
    %v235 = vunpack.c.h.b16 %v125
    %v236 = vunpack.c.l.b16 %v126
    %v237 = vunpack.c.h.b16 %v126
    %v238 = vunpack.c.l.b16 %v127
    %v239 = vunpack.c.h.b16 %v127
    %v240 = vpack.c.b16 %v180, %v176
    %v241 = vpack.c.b16 %v181, %v177
    %v242 = vpack.c.b16 %v182, %v178
    %v243 = vpack.c.b16 %v183, %v179
    %v244 = vpack.c.b16 %v188, %v184
    %v245 = vpack.c.b16 %v189, %v185
    %v246 = vpack.c.b16 %v190, %v186
    %v247 = vpack.c.b16 %v191, %v187
    %v248 = vpack.c.b16 %v196, %v192
    %v249 = vpack.c.b16 %v197, %v193
    %v250 = vpack.c.b16 %v198, %v194
    %v251 = vpack.c.b16 %v199, %v195
    %v252 = vpack.c.b16 %v204, %v200
    %v253 = vpack.c.b16 %v205, %v201
    %v254 = vpack.c.b16 %v206, %v202
    %v255 = vpack.c.b16 %v207, %v203
    %v256 = vpack.c.b16 %v212, %v208
    %v257 = vpack.c.b16 %v213, %v209
    %v258 = vpack.c.b16 %v214, %v210
    %v259 = vpack.c.b16 %v215, %v211
    %v260 = vpack.c.b16 %v220, %v216
    %v261 = vpack.c.b16 %v221, %v217
    %v262 = vpack.c.b16 %v222, %v218
    %v263 = vpack.c.b16 %v223, %v219
    %v264 = vpack.c.b16 %v228, %v224
    %v265 = vpack.c.b16 %v229, %v225
    %v266 = vpack.c.b16 %v230, %v226
    %v267 = vpack.c.b16 %v231, %v227
    %v268 = vpack.c.b16 %v236, %v232
    %v269 = vpack.c.b16 %v237, %v233
    %v270 = vpack.c.b16 %v238, %v234
    %v271 = vpack.c.b16 %v239, %v235
    %304 = vmatpush.bf16.msra.mxu0 %v268
    %305 = vmatpush.bf16.msra.mxu0 %v264
    %306 = vmatpush.bf16.msra.mxu0 %v260
    %307 = vmatpush.bf16.msra.mxu0 %v256
    %308 = vmatpush.bf16.msra.mxu0 %v252
    %309 = vmatpush.bf16.msra.mxu0 %v248
    %310 = vmatpush.bf16.msra.mxu0 %v244
    %311 = vmatpush.bf16.msra.mxu0 %v240
    %312 = vmatmul.bf16.gmra.mxu0 %v142
    %v313 = vpop.f32.mrf.mxu0
    %v314 = vadd.f32 %v130, %v313
    %v315 = vpop.f32.mrf.mxu0
    %v316 = vadd.f32 %v130, %v315
    %317 = vdwg.mxu0
    %318 = vmatpush.bf16.msra.mxu0 %v269
    %319 = vmatpush.bf16.msra.mxu0 %v265
    %320 = vmatpush.bf16.msra.mxu0 %v261
    %321 = vmatpush.bf16.msra.mxu0 %v257
    %322 = vmatpush.bf16.msra.mxu0 %v253
    %323 = vmatpush.bf16.msra.mxu0 %v249
    %324 = vmatpush.bf16.msra.mxu0 %v245
    %325 = vmatpush.bf16.msra.mxu0 %v241
    %326 = vmatmul.bf16.gmra.mxu0 %v142
    %v327 = vpop.f32.mrf.mxu0
    %v328 = vadd.f32 %v131, %v327
    %v329 = vpop.f32.mrf.mxu0
    %v330 = vadd.f32 %v131, %v329
    %331 = vdwg.mxu0
    %332 = vmatpush.bf16.msra.mxu0 %v270
    %333 = vmatpush.bf16.msra.mxu0 %v266
    %334 = vmatpush.bf16.msra.mxu0 %v262
    %335 = vmatpush.bf16.msra.mxu0 %v258
    %336 = vmatpush.bf16.msra.mxu0 %v254
    %337 = vmatpush.bf16.msra.mxu0 %v250
    %338 = vmatpush.bf16.msra.mxu0 %v246
    %339 = vmatpush.bf16.msra.mxu0 %v242
    %340 = vmatmul.bf16.gmra.mxu0 %v142
    %v341 = vpop.f32.mrf.mxu0
    %v342 = vadd.f32 %v132, %v341
    %v343 = vpop.f32.mrf.mxu0
    %v344 = vadd.f32 %v132, %v343
    %345 = vdwg.mxu0
    %346 = vmatpush.bf16.msra.mxu0 %v271
    %347 = vmatpush.bf16.msra.mxu0 %v267
    %348 = vmatpush.bf16.msra.mxu0 %v263
    %349 = vmatpush.bf16.msra.mxu0 %v259
    %350 = vmatpush.bf16.msra.mxu0 %v255
    %351 = vmatpush.bf16.msra.mxu0 %v251
    %352 = vmatpush.bf16.msra.mxu0 %v247
    %353 = vmatpush.bf16.msra.mxu0 %v243
    %354 = vmatmul.bf16.gmra.mxu0 %v142
    %v355 = vpop.f32.mrf.mxu0
    %v356 = vadd.f32 %v133, %v355
    %v357 = vpop.f32.mrf.mxu0
    %v358 = vadd.f32 %v133, %v357
    %359 = vdwg.mxu0
    %360 = vst [vmem:[#allocation2] sm:$0xff] %v314
    %361 = vst [vmem:[#allocation2 + $0x8] sm:$0xff] %v328
    %362 = vst [vmem:[#allocation2 + $0x10] sm:$0xff] %v342
    %363 = vst [vmem:[#allocation2 + $0x18] sm:$0xff] %v356
    %364 = vst [vmem:[#allocation2 + $0x20] sm:$0xff] %v316
    %365 = vst [vmem:[#allocation2 + $0x28] sm:$0xff] %v330
    %366 = vst [vmem:[#allocation2 + $0x30] sm:$0xff] %v344
    %367 = vst [vmem:[#allocation2 + $0x38] sm:$0xff] %v358
    %v368 = vld [vmem:[%s5] sm:$0xf]
    %v370 = vperm.slane %v368, 0
    %v371 = vperm.slane %v368, 1
    %v372 = vperm.slane %v368, 2
    %v373 = vperm.slane %v368, 3
    %v378 = vld [vmem:[#allocation2] sm:$0x3]
    %v379 = vld [vmem:[#allocation2 + $0x8] sm:$0x3]
    %v380 = vld [vmem:[#allocation2 + $0x10] sm:$0x3]
    %v381 = vld [vmem:[#allocation2 + $0x18] sm:$0x3]
    %v382 = vld [vmem:[#allocation6] sm:$0xff]
    %v383 = vld [vmem:[#allocation6 + $0x8] sm:$0xff]
    %v384 = vld [vmem:[#allocation6 + $0x10] sm:$0xff]
    %v385 = vld [vmem:[#allocation6 + $0x18] sm:$0xff]
    %v386 = vld [vmem:[#allocation6 + $0x20] sm:$0xff]
    %v387 = vld [vmem:[#allocation6 + $0x28] sm:$0xff]
    %v388 = vld [vmem:[#allocation6 + $0x30] sm:$0xff]
    %v389 = vld [vmem:[#allocation6 + $0x38] sm:$0xff]
    %v390 = vld [vmem:[#allocation6 + $0x40] sm:$0xff]
    %v391 = vld [vmem:[#allocation6 + $0x48] sm:$0xff]
    %v392 = vld [vmem:[#allocation6 + $0x50] sm:$0xff]
    %v393 = vld [vmem:[#allocation6 + $0x58] sm:$0xff]
    %v394 = vld [vmem:[#allocation6 + $0x60] sm:$0xff]
    %v395 = vld [vmem:[#allocation6 + $0x68] sm:$0xff]
    %v396 = vld [vmem:[#allocation6 + $0x70] sm:$0xff]
    %v397 = vld [vmem:[#allocation6 + $0x78] sm:$0xff]
    %v398 = vld [vmem:[#allocation6 + $0x80] sm:$0xff]
    %v399 = vld [vmem:[#allocation6 + $0x88] sm:$0xff]
    %v400 = vld [vmem:[#allocation6 + $0x90] sm:$0xff]
    %v401 = vld [vmem:[#allocation6 + $0x98] sm:$0xff]
    %v402 = vld [vmem:[#allocation6 + $0xa0] sm:$0xff]
    %v403 = vld [vmem:[#allocation6 + $0xa8] sm:$0xff]
    %v404 = vld [vmem:[#allocation6 + $0xb0] sm:$0xff]
    %v405 = vld [vmem:[#allocation6 + $0xb8] sm:$0xff]
    %v406 = vld [vmem:[#allocation6 + $0xc0] sm:$0xff]
    %v407 = vld [vmem:[#allocation6 + $0xc8] sm:$0xff]
    %v408 = vld [vmem:[#allocation6 + $0xd0] sm:$0xff]
    %v409 = vld [vmem:[#allocation6 + $0xd8] sm:$0xff]
    %v410 = vld [vmem:[#allocation6 + $0xe0] sm:$0xff]
    %v411 = vld [vmem:[#allocation6 + $0xe8] sm:$0xff]
    %v412 = vld [vmem:[#allocation6 + $0xf0] sm:$0xff]
    %v413 = vld [vmem:[#allocation6 + $0xf8] sm:$0xff]
    %v446 = vunpack.c.l.b16 %v382
    %v447 = vunpack.c.h.b16 %v382
    %v448 = vunpack.c.l.b16 %v383
    %v449 = vunpack.c.h.b16 %v383
    %v450 = vunpack.c.l.b16 %v384
    %v451 = vunpack.c.h.b16 %v384
    %v452 = vunpack.c.l.b16 %v385
    %v453 = vunpack.c.h.b16 %v385
    %v454 = vunpack.c.l.b16 %v386
    %v455 = vunpack.c.h.b16 %v386
    %v456 = vunpack.c.l.b16 %v387
    %v457 = vunpack.c.h.b16 %v387
    %v458 = vunpack.c.l.b16 %v388
    %v459 = vunpack.c.h.b16 %v388
    %v460 = vunpack.c.l.b16 %v389
    %v461 = vunpack.c.h.b16 %v389
    %v462 = vunpack.c.l.b16 %v390
    %v463 = vunpack.c.h.b16 %v390
    %v464 = vunpack.c.l.b16 %v391
    %v465 = vunpack.c.h.b16 %v391
    %v466 = vunpack.c.l.b16 %v392
    %v467 = vunpack.c.h.b16 %v392
    %v468 = vunpack.c.l.b16 %v393
    %v469 = vunpack.c.h.b16 %v393
    %v470 = vunpack.c.l.b16 %v394
    %v471 = vunpack.c.h.b16 %v394
    %v472 = vunpack.c.l.b16 %v395
    %v473 = vunpack.c.h.b16 %v395
    %v474 = vunpack.c.l.b16 %v396
    %v475 = vunpack.c.h.b16 %v396
    %v476 = vunpack.c.l.b16 %v397
    %v477 = vunpack.c.h.b16 %v397
    %v478 = vunpack.c.l.b16 %v398
    %v479 = vunpack.c.h.b16 %v398
    %v480 = vunpack.c.l.b16 %v399
    %v481 = vunpack.c.h.b16 %v399
    %v482 = vunpack.c.l.b16 %v400
    %v483 = vunpack.c.h.b16 %v400
    %v484 = vunpack.c.l.b16 %v401
    %v485 = vunpack.c.h.b16 %v401
    %v486 = vunpack.c.l.b16 %v402
    %v487 = vunpack.c.h.b16 %v402
    %v488 = vunpack.c.l.b16 %v403
    %v489 = vunpack.c.h.b16 %v403
    %v490 = vunpack.c.l.b16 %v404
    %v491 = vunpack.c.h.b16 %v404
    %v492 = vunpack.c.l.b16 %v405
    %v493 = vunpack.c.h.b16 %v405
    %v494 = vunpack.c.l.b16 %v406
    %v495 = vunpack.c.h.b16 %v406
    %v496 = vunpack.c.l.b16 %v407
    %v497 = vunpack.c.h.b16 %v407
    %v498 = vunpack.c.l.b16 %v408
    %v499 = vunpack.c.h.b16 %v408
    %v500 = vunpack.c.l.b16 %v409
    %v501 = vunpack.c.h.b16 %v409
    %v502 = vunpack.c.l.b16 %v410
    %v503 = vunpack.c.h.b16 %v410
    %v504 = vunpack.c.l.b16 %v411
    %v505 = vunpack.c.h.b16 %v411
    %v506 = vunpack.c.l.b16 %v412
    %v507 = vunpack.c.h.b16 %v412
    %v508 = vunpack.c.l.b16 %v413
    %v509 = vunpack.c.h.b16 %v413
    %v510 = vpack.c.b16 %v450, %v446
    %v511 = vpack.c.b16 %v451, %v447
    %v512 = vpack.c.b16 %v452, %v448
    %v513 = vpack.c.b16 %v453, %v449
    %v514 = vpack.c.b16 %v458, %v454
    %v515 = vpack.c.b16 %v459, %v455
    %v516 = vpack.c.b16 %v460, %v456
    %v517 = vpack.c.b16 %v461, %v457
    %v518 = vpack.c.b16 %v466, %v462
    %v519 = vpack.c.b16 %v467, %v463
    %v520 = vpack.c.b16 %v468, %v464
    %v521 = vpack.c.b16 %v469, %v465
    %v522 = vpack.c.b16 %v474, %v470
    %v523 = vpack.c.b16 %v475, %v471
    %v524 = vpack.c.b16 %v476, %v472
    %v525 = vpack.c.b16 %v477, %v473
    %v526 = vpack.c.b16 %v482, %v478
    %v527 = vpack.c.b16 %v483, %v479
    %v528 = vpack.c.b16 %v484, %v480
    %v529 = vpack.c.b16 %v485, %v481
    %v530 = vpack.c.b16 %v490, %v486
    %v531 = vpack.c.b16 %v491, %v487
    %v532 = vpack.c.b16 %v492, %v488
    %v533 = vpack.c.b16 %v493, %v489
    %v534 = vpack.c.b16 %v498, %v494
    %v535 = vpack.c.b16 %v499, %v495
    %v536 = vpack.c.b16 %v500, %v496
    %v537 = vpack.c.b16 %v501, %v497
    %v538 = vpack.c.b16 %v506, %v502
    %v539 = vpack.c.b16 %v507, %v503
    %v540 = vpack.c.b16 %v508, %v504
    %v541 = vpack.c.b16 %v509, %v505
    %574 = vmatpush.bf16.msra.mxu0 %v538
    %575 = vmatpush.bf16.msra.mxu0 %v534
    %576 = vmatpush.bf16.msra.mxu0 %v530
    %577 = vmatpush.bf16.msra.mxu0 %v526
    %578 = vmatpush.bf16.msra.mxu0 %v522
    %579 = vmatpush.bf16.msra.mxu0 %v518
    %580 = vmatpush.bf16.msra.mxu0 %v514
    %581 = vmatpush.bf16.msra.mxu0 %v510
    %582 = vmatmul.bf16.gmra.mxu0 0
    %v583 = vpop.f32.mrf.mxu0
    %v584 = vadd.f32 0.0, %v583
    %v585 = vpop.f32.mrf.mxu0
    %586 = vdwg.mxu0
    %587 = vmatpush.bf16.msra.mxu0 %v539
    %588 = vmatpush.bf16.msra.mxu0 %v535
    %589 = vmatpush.bf16.msra.mxu0 %v531
    %590 = vmatpush.bf16.msra.mxu0 %v527
    %591 = vmatpush.bf16.msra.mxu0 %v523
    %592 = vmatpush.bf16.msra.mxu0 %v519
    %593 = vmatpush.bf16.msra.mxu0 %v515
    %594 = vmatpush.bf16.msra.mxu0 %v511
    %595 = vmatmul.bf16.gmra.mxu0 0
    %v596 = vpop.f32.mrf.mxu0
    %v597 = vadd.f32 0.0, %v596
    %v598 = vpop.f32.mrf.mxu0
    %599 = vdwg.mxu0
    %600 = vmatpush.bf16.msra.mxu0 %v540
    %601 = vmatpush.bf16.msra.mxu0 %v536
    %602 = vmatpush.bf16.msra.mxu0 %v532
    %603 = vmatpush.bf16.msra.mxu0 %v528
    %604 = vmatpush.bf16.msra.mxu0 %v524
    %605 = vmatpush.bf16.msra.mxu0 %v520
    %606 = vmatpush.bf16.msra.mxu0 %v516
    %607 = vmatpush.bf16.msra.mxu0 %v512
    %608 = vmatmul.bf16.gmra.mxu0 0
    %v609 = vpop.f32.mrf.mxu0
    %v610 = vadd.f32 0.0, %v609
    %v611 = vpop.f32.mrf.mxu0
    %612 = vdwg.mxu0
    %613 = vmatpush.bf16.msra.mxu0 %v541
    %614 = vmatpush.bf16.msra.mxu0 %v537
    %615 = vmatpush.bf16.msra.mxu0 %v533
    %616 = vmatpush.bf16.msra.mxu0 %v529
    %617 = vmatpush.bf16.msra.mxu0 %v525
    %618 = vmatpush.bf16.msra.mxu0 %v521
    %619 = vmatpush.bf16.msra.mxu0 %v517
    %620 = vmatpush.bf16.msra.mxu0 %v513
    %621 = vmatmul.bf16.gmra.mxu0 0
    %v622 = vpop.f32.mrf.mxu0
    %v623 = vadd.f32 0.0, %v622
    %v624 = vpop.f32.mrf.mxu0
    %625 = vdwg.mxu0
    %v626 = vadd.f32 %v378, %v584
    %v627 = vadd.f32 %v379, %v597
    %v628 = vadd.f32 %v380, %v610
    %v629 = vadd.f32 %v381, %v623
    %v630 = vtanh.pop %v626
    %v631 = vmul.f32 %v630, 0.5
    %v632 = vadd.f32 %v631, 0.5
    %v633 = vtanh.pop %v627
    %v634 = vmul.f32 %v633, 0.5
    %v635 = vadd.f32 %v634, 0.5
    %v636 = vtanh.pop %v628
    %v637 = vtanh.pop %v629
    %v638 = vmul.f32 %v637, 0.5
    %v639 = vadd.f32 %v638, 0.5
    %v640 = vmul.f32 %v635, 0.0
    %v641 = vmul.f32 %v632, %v636
    %v642 = vadd.f32 %v640, %v641
    %v643 = vtanh.pop %v642
    %v644 = vmul.f32 %v639, %v643
    %v645 = vpack.c.bf16 %v644, %v644
    %v646 = vld [vmem:[#allocation8] sm:$0xff]
    %v647 = vld [vmem:[#allocation8 + $0x8] sm:$0xff]
    %v648 = vld [vmem:[#allocation8 + $0x10] sm:$0xff]
    %v649 = vld [vmem:[#allocation8 + $0x18] sm:$0xff]
    %v650 = vld [vmem:[#allocation8 + $0x20] sm:$0xff]
    %v651 = vld [vmem:[#allocation8 + $0x28] sm:$0xff]
    %v652 = vld [vmem:[#allocation8 + $0x30] sm:$0xff]
    %v653 = vld [vmem:[#allocation8 + $0x38] sm:$0xff]
    %v654 = vld [vmem:[#allocation8 + $0x40] sm:$0xff]
    %v655 = vld [vmem:[#allocation8 + $0x48] sm:$0xff]
    %v656 = vld [vmem:[#allocation8 + $0x50] sm:$0xff]
    %v657 = vld [vmem:[#allocation8 + $0x58] sm:$0xff]
    %v658 = vld [vmem:[#allocation8 + $0x60] sm:$0xff]
    %v659 = vld [vmem:[#allocation8 + $0x68] sm:$0xff]
    %v660 = vld [vmem:[#allocation8 + $0x70] sm:$0xff]
    %v661 = vld [vmem:[#allocation8 + $0x78] sm:$0xff]
    %v662 = vld [vmem:[#allocation8 + $0x80] sm:$0xff]
    %v663 = vld [vmem:[#allocation8 + $0x88] sm:$0xff]
    %v664 = vld [vmem:[#allocation8 + $0x90] sm:$0xff]
    %v665 = vld [vmem:[#allocation8 + $0x98] sm:$0xff]
    %v666 = vld [vmem:[#allocation8 + $0xa0] sm:$0xff]
    %v667 = vld [vmem:[#allocation8 + $0xa8] sm:$0xff]
    %v668 = vld [vmem:[#allocation8 + $0xb0] sm:$0xff]
    %v669 = vld [vmem:[#allocation8 + $0xb8] sm:$0xff]
    %v670 = vld [vmem:[#allocation8 + $0xc0] sm:$0xff]
    %v671 = vld [vmem:[#allocation8 + $0xc8] sm:$0xff]
    %v672 = vld [vmem:[#allocation8 + $0xd0] sm:$0xff]
    %v673 = vld [vmem:[#allocation8 + $0xd8] sm:$0xff]
    %v674 = vld [vmem:[#allocation8 + $0xe0] sm:$0xff]
    %v675 = vld [vmem:[#allocation8 + $0xe8] sm:$0xff]
    %v676 = vld [vmem:[#allocation8 + $0xf0] sm:$0xff]
    %v677 = vld [vmem:[#allocation8 + $0xf8] sm:$0xff]
    %v678 = vld [vmem:[#allocation8 + $0x100] sm:$0xff]
    %v679 = vld [vmem:[#allocation8 + $0x108] sm:$0xff]
    %v680 = vld [vmem:[#allocation8 + $0x110] sm:$0xff]
    %v681 = vld [vmem:[#allocation8 + $0x118] sm:$0xff]
    %v682 = vld [vmem:[#allocation8 + $0x120] sm:$0xff]
    %v683 = vld [vmem:[#allocation8 + $0x128] sm:$0xff]
    %v684 = vld [vmem:[#allocation8 + $0x130] sm:$0xff]
    %v685 = vld [vmem:[#allocation8 + $0x138] sm:$0xff]
    %v686 = vld [vmem:[#allocation8 + $0x140] sm:$0xff]
    %v687 = vld [vmem:[#allocation8 + $0x148] sm:$0xff]
    %v688 = vld [vmem:[#allocation8 + $0x150] sm:$0xff]
    %v689 = vld [vmem:[#allocation8 + $0x158] sm:$0xff]
    %v690 = vld [vmem:[#allocation8 + $0x160] sm:$0xff]
    %v691 = vld [vmem:[#allocation8 + $0x168] sm:$0xff]
    %v692 = vld [vmem:[#allocation8 + $0x170] sm:$0xff]
    %v693 = vld [vmem:[#allocation8 + $0x178] sm:$0xff]
    %v694 = vld [vmem:[#allocation8 + $0x180] sm:$0xff]
    %v695 = vld [vmem:[#allocation8 + $0x188] sm:$0xff]
    %v696 = vld [vmem:[#allocation8 + $0x190] sm:$0xff]
    %v697 = vld [vmem:[#allocation8 + $0x198] sm:$0xff]
    %v698 = vld [vmem:[#allocation8 + $0x1a0] sm:$0xff]
    %v699 = vld [vmem:[#allocation8 + $0x1a8] sm:$0xff]
    %v700 = vld [vmem:[#allocation8 + $0x1b0] sm:$0xff]
    %v701 = vld [vmem:[#allocation8 + $0x1b8] sm:$0xff]
    %v702 = vld [vmem:[#allocation8 + $0x1c0] sm:$0xff]
    %v703 = vld [vmem:[#allocation8 + $0x1c8] sm:$0xff]
    %v704 = vld [vmem:[#allocation8 + $0x1d0] sm:$0xff]
    %v705 = vld [vmem:[#allocation8 + $0x1d8] sm:$0xff]
    %v706 = vld [vmem:[#allocation8 + $0x1e0] sm:$0xff]
    %v707 = vld [vmem:[#allocation8 + $0x1e8] sm:$0xff]
    %v708 = vld [vmem:[#allocation8 + $0x1f0] sm:$0xff]
    %v709 = vld [vmem:[#allocation8 + $0x1f8] sm:$0xff]
    %v774 = vunpack.c.l.b16 %v646
    %v775 = vunpack.c.h.b16 %v646
    %v776 = vunpack.c.l.b16 %v647
    %v777 = vunpack.c.h.b16 %v647
    %v778 = vunpack.c.l.b16 %v648
    %v779 = vunpack.c.h.b16 %v648
    %v780 = vunpack.c.l.b16 %v649
    %v781 = vunpack.c.h.b16 %v649
    %v782 = vunpack.c.l.b16 %v650
    %v783 = vunpack.c.h.b16 %v650
    %v784 = vunpack.c.l.b16 %v651
    %v785 = vunpack.c.h.b16 %v651
    %v786 = vunpack.c.l.b16 %v652
    %v787 = vunpack.c.h.b16 %v652
    %v788 = vunpack.c.l.b16 %v653
    %v789 = vunpack.c.h.b16 %v653
    %v790 = vunpack.c.l.b16 %v654
    %v791 = vunpack.c.h.b16 %v654
    %v792 = vunpack.c.l.b16 %v655
    %v793 = vunpack.c.h.b16 %v655
    %v794 = vunpack.c.l.b16 %v656
    %v795 = vunpack.c.h.b16 %v656
    %v796 = vunpack.c.l.b16 %v657
    %v797 = vunpack.c.h.b16 %v657
    %v798 = vunpack.c.l.b16 %v658
    %v799 = vunpack.c.h.b16 %v658
    %v800 = vunpack.c.l.b16 %v659
    %v801 = vunpack.c.h.b16 %v659
    %v802 = vunpack.c.l.b16 %v660
    %v803 = vunpack.c.h.b16 %v660
    %v804 = vunpack.c.l.b16 %v661
    %v805 = vunpack.c.h.b16 %v661
    %v806 = vunpack.c.l.b16 %v662
    %v807 = vunpack.c.h.b16 %v662
    %v808 = vunpack.c.l.b16 %v663
    %v809 = vunpack.c.h.b16 %v663
    %v810 = vunpack.c.l.b16 %v664
    %v811 = vunpack.c.h.b16 %v664
    %v812 = vunpack.c.l.b16 %v665
    %v813 = vunpack.c.h.b16 %v665
    %v814 = vunpack.c.l.b16 %v666
    %v815 = vunpack.c.h.b16 %v666
    %v816 = vunpack.c.l.b16 %v667
    %v817 = vunpack.c.h.b16 %v667
    %v818 = vunpack.c.l.b16 %v668
    %v819 = vunpack.c.h.b16 %v668
    %v820 = vunpack.c.l.b16 %v669
    %v821 = vunpack.c.h.b16 %v669
    %v822 = vunpack.c.l.b16 %v670
    %v823 = vunpack.c.h.b16 %v670
    %v824 = vunpack.c.l.b16 %v671
    %v825 = vunpack.c.h.b16 %v671
    %v826 = vunpack.c.l.b16 %v672
    %v827 = vunpack.c.h.b16 %v672
    %v828 = vunpack.c.l.b16 %v673
    %v829 = vunpack.c.h.b16 %v673
    %v830 = vunpack.c.l.b16 %v674
    %v831 = vunpack.c.h.b16 %v674
    %v832 = vunpack.c.l.b16 %v675
    %v833 = vunpack.c.h.b16 %v675
    %v834 = vunpack.c.l.b16 %v676
    %v835 = vunpack.c.h.b16 %v676
    %v836 = vunpack.c.l.b16 %v677
    %v837 = vunpack.c.h.b16 %v677
    %v838 = vunpack.c.l.b16 %v678
    %v839 = vunpack.c.h.b16 %v678
    %v840 = vunpack.c.l.b16 %v679
    %v841 = vunpack.c.h.b16 %v679
    %v842 = vunpack.c.l.b16 %v680
    %v843 = vunpack.c.h.b16 %v680
    %v844 = vunpack.c.l.b16 %v681
    %v845 = vunpack.c.h.b16 %v681
    %v846 = vunpack.c.l.b16 %v682
    %v847 = vunpack.c.h.b16 %v682
    %v848 = vunpack.c.l.b16 %v683
    %v849 = vunpack.c.h.b16 %v683
    %v850 = vunpack.c.l.b16 %v684
    %v851 = vunpack.c.h.b16 %v684
    %v852 = vunpack.c.l.b16 %v685
    %v853 = vunpack.c.h.b16 %v685
    %v854 = vunpack.c.l.b16 %v686
    %v855 = vunpack.c.h.b16 %v686
    %v856 = vunpack.c.l.b16 %v687
    %v857 = vunpack.c.h.b16 %v687
    %v858 = vunpack.c.l.b16 %v688
    %v859 = vunpack.c.h.b16 %v688
    %v860 = vunpack.c.l.b16 %v689
    %v861 = vunpack.c.h.b16 %v689
    %v862 = vunpack.c.l.b16 %v690
    %v863 = vunpack.c.h.b16 %v690
    %v864 = vunpack.c.l.b16 %v691
    %v865 = vunpack.c.h.b16 %v691
    %v866 = vunpack.c.l.b16 %v692
    %v867 = vunpack.c.h.b16 %v692
    %v868 = vunpack.c.l.b16 %v693
    %v869 = vunpack.c.h.b16 %v693
    %v870 = vunpack.c.l.b16 %v694
    %v871 = vunpack.c.h.b16 %v694
    %v872 = vunpack.c.l.b16 %v695
    %v873 = vunpack.c.h.b16 %v695
    %v874 = vunpack.c.l.b16 %v696
    %v875 = vunpack.c.h.b16 %v696
    %v876 = vunpack.c.l.b16 %v697
    %v877 = vunpack.c.h.b16 %v697
    %v878 = vunpack.c.l.b16 %v698
    %v879 = vunpack.c.h.b16 %v698
    %v880 = vunpack.c.l.b16 %v699
    %v881 = vunpack.c.h.b16 %v699
    %v882 = vunpack.c.l.b16 %v700
    %v883 = vunpack.c.h.b16 %v700
    %v884 = vunpack.c.l.b16 %v701
    %v885 = vunpack.c.h.b16 %v701
    %v886 = vunpack.c.l.b16 %v702
    %v887 = vunpack.c.h.b16 %v702
    %v888 = vunpack.c.l.b16 %v703
    %v889 = vunpack.c.h.b16 %v703
    %v890 = vunpack.c.l.b16 %v704
    %v891 = vunpack.c.h.b16 %v704
    %v892 = vunpack.c.l.b16 %v705
    %v893 = vunpack.c.h.b16 %v705
    %v894 = vunpack.c.l.b16 %v706
    %v895 = vunpack.c.h.b16 %v706
    %v896 = vunpack.c.l.b16 %v707
    %v897 = vunpack.c.h.b16 %v707
    %v898 = vunpack.c.l.b16 %v708
    %v899 = vunpack.c.h.b16 %v708
    %v900 = vunpack.c.l.b16 %v709
    %v901 = vunpack.c.h.b16 %v709
    %v902 = vpack.c.b16 %v778, %v774
    %v903 = vpack.c.b16 %v779, %v775
    %v904 = vpack.c.b16 %v780, %v776
    %v905 = vpack.c.b16 %v781, %v777
    %v906 = vpack.c.b16 %v786, %v782
    %v907 = vpack.c.b16 %v787, %v783
    %v908 = vpack.c.b16 %v788, %v784
    %v909 = vpack.c.b16 %v789, %v785
    %v910 = vpack.c.b16 %v794, %v790
    %v911 = vpack.c.b16 %v795, %v791
    %v912 = vpack.c.b16 %v796, %v792
    %v913 = vpack.c.b16 %v797, %v793
    %v914 = vpack.c.b16 %v802, %v798
    %v915 = vpack.c.b16 %v803, %v799
    %v916 = vpack.c.b16 %v804, %v800
    %v917 = vpack.c.b16 %v805, %v801
    %v918 = vpack.c.b16 %v810, %v806
    %v919 = vpack.c.b16 %v811, %v807
    %v920 = vpack.c.b16 %v812, %v808
    %v921 = vpack.c.b16 %v813, %v809
    %v922 = vpack.c.b16 %v818, %v814
    %v923 = vpack.c.b16 %v819, %v815
    %v924 = vpack.c.b16 %v820, %v816
    %v925 = vpack.c.b16 %v821, %v817
    %v926 = vpack.c.b16 %v826, %v822
    %v927 = vpack.c.b16 %v827, %v823
    %v928 = vpack.c.b16 %v828, %v824
    %v929 = vpack.c.b16 %v829, %v825
    %v930 = vpack.c.b16 %v834, %v830
    %v931 = vpack.c.b16 %v835, %v831
    %v932 = vpack.c.b16 %v836, %v832
    %v933 = vpack.c.b16 %v837, %v833
    %v934 = vpack.c.b16 %v842, %v838
    %v935 = vpack.c.b16 %v843, %v839
    %v936 = vpack.c.b16 %v844, %v840
    %v937 = vpack.c.b16 %v845, %v841
    %v938 = vpack.c.b16 %v850, %v846
    %v939 = vpack.c.b16 %v851, %v847
    %v940 = vpack.c.b16 %v852, %v848
    %v941 = vpack.c.b16 %v853, %v849
    %v942 = vpack.c.b16 %v858, %v854
    %v943 = vpack.c.b16 %v859, %v855
    %v944 = vpack.c.b16 %v860, %v856
    %v945 = vpack.c.b16 %v861, %v857
    %v946 = vpack.c.b16 %v866, %v862
    %v947 = vpack.c.b16 %v867, %v863
    %v948 = vpack.c.b16 %v868, %v864
    %v949 = vpack.c.b16 %v869, %v865
    %v950 = vpack.c.b16 %v874, %v870
    %v951 = vpack.c.b16 %v875, %v871
    %v952 = vpack.c.b16 %v876, %v872
    %v953 = vpack.c.b16 %v877, %v873
    %v954 = vpack.c.b16 %v882, %v878
    %v955 = vpack.c.b16 %v883, %v879
    %v956 = vpack.c.b16 %v884, %v880
    %v957 = vpack.c.b16 %v885, %v881
    %v958 = vpack.c.b16 %v890, %v886
    %v959 = vpack.c.b16 %v891, %v887
    %v960 = vpack.c.b16 %v892, %v888
    %v961 = vpack.c.b16 %v893, %v889
    %v962 = vpack.c.b16 %v898, %v894
    %v963 = vpack.c.b16 %v899, %v895
    %v964 = vpack.c.b16 %v900, %v896
    %v965 = vpack.c.b16 %v901, %v897
    %1030 = vmatpush.bf16.msra.mxu0 %v930
    %1031 = vmatpush.bf16.msra.mxu0 %v926
    %1032 = vmatpush.bf16.msra.mxu0 %v922
    %1033 = vmatpush.bf16.msra.mxu0 %v918
    %1034 = vmatpush.bf16.msra.mxu0 %v914
    %1035 = vmatpush.bf16.msra.mxu0 %v910
    %1036 = vmatpush.bf16.msra.mxu0 %v906
    %1037 = vmatpush.bf16.msra.mxu0 %v902
    %1038 = vmatmul.bf16.gmra.mxu0 %v645
    %v1039 = vpop.f32.mrf.mxu0
    %v1040 = vadd.f32 %v370, %v1039
    %v1041 = vpop.f32.mrf.mxu0
    %1042 = vdwg.mxu0
    %1043 = vmatpush.bf16.msra.mxu0 %v962
    %1044 = vmatpush.bf16.msra.mxu0 %v958
    %1045 = vmatpush.bf16.msra.mxu0 %v954
    %1046 = vmatpush.bf16.msra.mxu0 %v950
    %1047 = vmatpush.bf16.msra.mxu0 %v946
    %1048 = vmatpush.bf16.msra.mxu0 %v942
    %1049 = vmatpush.bf16.msra.mxu0 %v938
    %1050 = vmatpush.bf16.msra.mxu0 %v934
    %1051 = vmatmul.bf16.gmra.mxu0 0
    %v1052 = vpop.f32.mrf.mxu0
    %v1053 = vadd.f32 %v1040, %v1052
    %v1054 = vpop.f32.mrf.mxu0
    %1055 = vdwg.mxu0
    %1056 = vmatpush.bf16.msra.mxu0 %v931
    %1057 = vmatpush.bf16.msra.mxu0 %v927
    %1058 = vmatpush.bf16.msra.mxu0 %v923
    %1059 = vmatpush.bf16.msra.mxu0 %v919
    %1060 = vmatpush.bf16.msra.mxu0 %v915
    %1061 = vmatpush.bf16.msra.mxu0 %v911
    %1062 = vmatpush.bf16.msra.mxu0 %v907
    %1063 = vmatpush.bf16.msra.mxu0 %v903
    %1064 = vmatmul.bf16.gmra.mxu0 %v645
    %v1065 = vpop.f32.mrf.mxu0
    %v1066 = vadd.f32 %v371, %v1065
    %v1067 = vpop.f32.mrf.mxu0
    %1068 = vdwg.mxu0
    %1069 = vmatpush.bf16.msra.mxu0 %v963
    %1070 = vmatpush.bf16.msra.mxu0 %v959
    %1071 = vmatpush.bf16.msra.mxu0 %v955
    %1072 = vmatpush.bf16.msra.mxu0 %v951
    %1073 = vmatpush.bf16.msra.mxu0 %v947
    %1074 = vmatpush.bf16.msra.mxu0 %v943
    %1075 = vmatpush.bf16.msra.mxu0 %v939
    %1076 = vmatpush.bf16.msra.mxu0 %v935
    %1077 = vmatmul.bf16.gmra.mxu0 0
    %v1078 = vpop.f32.mrf.mxu0
    %v1079 = vadd.f32 %v1066, %v1078
    %v1080 = vpop.f32.mrf.mxu0
    %1081 = vdwg.mxu0
    %1082 = vmatpush.bf16.msra.mxu0 %v932
    %1083 = vmatpush.bf16.msra.mxu0 %v928
    %1084 = vmatpush.bf16.msra.mxu0 %v924
    %1085 = vmatpush.bf16.msra.mxu0 %v920
    %1086 = vmatpush.bf16.msra.mxu0 %v916
    %1087 = vmatpush.bf16.msra.mxu0 %v912
    %1088 = vmatpush.bf16.msra.mxu0 %v908
    %1089 = vmatpush.bf16.msra.mxu0 %v904
    %1090 = vmatmul.bf16.gmra.mxu0 %v645
    %v1091 = vpop.f32.mrf.mxu0
    %v1092 = vadd.f32 %v372, %v1091
    %v1093 = vpop.f32.mrf.mxu0
    %1094 = vdwg.mxu0
    %1095 = vmatpush.bf16.msra.mxu0 %v964
    %1096 = vmatpush.bf16.msra.mxu0 %v960
    %1097 = vmatpush.bf16.msra.mxu0 %v956
    %1098 = vmatpush.bf16.msra.mxu0 %v952
    %1099 = vmatpush.bf16.msra.mxu0 %v948
    %1100 = vmatpush.bf16.msra.mxu0 %v944
    %1101 = vmatpush.bf16.msra.mxu0 %v940
    %1102 = vmatpush.bf16.msra.mxu0 %v936
    %1103 = vmatmul.bf16.gmra.mxu0 0
    %v1104 = vpop.f32.mrf.mxu0
    %v1105 = vadd.f32 %v1092, %v1104
    %v1106 = vpop.f32.mrf.mxu0
    %1107 = vdwg.mxu0
    %1108 = vmatpush.bf16.msra.mxu0 %v933
    %1109 = vmatpush.bf16.msra.mxu0 %v929
    %1110 = vmatpush.bf16.msra.mxu0 %v925
    %1111 = vmatpush.bf16.msra.mxu0 %v921
    %1112 = vmatpush.bf16.msra.mxu0 %v917
    %1113 = vmatpush.bf16.msra.mxu0 %v913
    %1114 = vmatpush.bf16.msra.mxu0 %v909
    %1115 = vmatpush.bf16.msra.mxu0 %v905
    %1116 = vmatmul.bf16.gmra.mxu0 %v645
    %v1117 = vpop.f32.mrf.mxu0
    %v1118 = vadd.f32 %v373, %v1117
    %v1119 = vpop.f32.mrf.mxu0
    %1120 = vdwg.mxu0
    %1121 = vmatpush.bf16.msra.mxu0 %v965
    %1122 = vmatpush.bf16.msra.mxu0 %v961
    %1123 = vmatpush.bf16.msra.mxu0 %v957
    %1124 = vmatpush.bf16.msra.mxu0 %v953
    %1125 = vmatpush.bf16.msra.mxu0 %v949
    %1126 = vmatpush.bf16.msra.mxu0 %v945
    %1127 = vmatpush.bf16.msra.mxu0 %v941
    %1128 = vmatpush.bf16.msra.mxu0 %v937
    %1129 = vmatmul.bf16.gmra.mxu0 0
    %v1130 = vpop.f32.mrf.mxu0
    %v1131 = vadd.f32 %v1118, %v1130
    %v1132 = vpop.f32.mrf.mxu0
    %1133 = vdwg.mxu0
    %v1134 = vtanh.pop %v1053
    %v1135 = vmul.f32 %v1134, 0.5
    %v1136 = vadd.f32 %v1135, 0.5
    %v1137 = vtanh.pop %v1079
    %v1138 = vmul.f32 %v1137, 0.5
    %v1139 = vadd.f32 %v1138, 0.5
    %v1140 = vtanh.pop %v1105
    %v1141 = vtanh.pop %v1131
    %v1142 = vmul.f32 %v1141, 0.5
    %v1143 = vadd.f32 %v1142, 0.5
    %v1144 = vmul.f32 %v1139, 0.0
    %v1145 = vmul.f32 %v1136, %v1140
    %v1146 = vadd.f32 %v1144, %v1145
    %v1147 = vtanh.pop %v1146
    %v1148 = vmul.f32 %v1143, %v1147
    %v1149 = vld [vmem:[#allocation2] sm:$0xc]
    %v1150 = vld [vmem:[#allocation2 + $0x8] sm:$0xc]
    %v1151 = vld [vmem:[#allocation2 + $0x10] sm:$0xc]
    %v1152 = vld [vmem:[#allocation2 + $0x18] sm:$0xc]
    %1153 = vmatpush.bf16.msra.mxu0 %v538
    %1154 = vmatpush.bf16.msra.mxu0 %v534
    %1155 = vmatpush.bf16.msra.mxu0 %v530
    %1156 = vmatpush.bf16.msra.mxu0 %v526
    %1157 = vmatpush.bf16.msra.mxu0 %v522
    %1158 = vmatpush.bf16.msra.mxu0 %v518
    %1159 = vmatpush.bf16.msra.mxu0 %v514
    %1160 = vmatpush.bf16.msra.mxu0 %v510
    %1161 = vmatmul.bf16.gmra.mxu0 %v645
    %v1162 = vpop.f32.mrf.mxu0
    %v1163 = vadd.f32 0.0, %v1162
    %v1164 = vpop.f32.mrf.mxu0
    %1165 = vdwg.mxu0
    %1166 = vmatpush.bf16.msra.mxu0 %v539
    %1167 = vmatpush.bf16.msra.mxu0 %v535
    %1168 = vmatpush.bf16.msra.mxu0 %v531
    %1169 = vmatpush.bf16.msra.mxu0 %v527
    %1170 = vmatpush.bf16.msra.mxu0 %v523
    %1171 = vmatpush.bf16.msra.mxu0 %v519
    %1172 = vmatpush.bf16.msra.mxu0 %v515
    %1173 = vmatpush.bf16.msra.mxu0 %v511
    %1174 = vmatmul.bf16.gmra.mxu0 %v645
    %v1175 = vpop.f32.mrf.mxu0
    %v1176 = vadd.f32 0.0, %v1175
    %v1177 = vpop.f32.mrf.mxu0
    %1178 = vdwg.mxu0
    %1179 = vmatpush.bf16.msra.mxu0 %v540
    %1180 = vmatpush.bf16.msra.mxu0 %v536
    %1181 = vmatpush.bf16.msra.mxu0 %v532
    %1182 = vmatpush.bf16.msra.mxu0 %v528
    %1183 = vmatpush.bf16.msra.mxu0 %v524
    %1184 = vmatpush.bf16.msra.mxu0 %v520
    %1185 = vmatpush.bf16.msra.mxu0 %v516
    %1186 = vmatpush.bf16.msra.mxu0 %v512
    %1187 = vmatmul.bf16.gmra.mxu0 %v645
    %v1188 = vpop.f32.mrf.mxu0
    %v1189 = vadd.f32 0.0, %v1188
    %v1190 = vpop.f32.mrf.mxu0
    %1191 = vdwg.mxu0
    %1192 = vmatpush.bf16.msra.mxu0 %v541
    %1193 = vmatpush.bf16.msra.mxu0 %v537
    %1194 = vmatpush.bf16.msra.mxu0 %v533
    %1195 = vmatpush.bf16.msra.mxu0 %v529
    %1196 = vmatpush.bf16.msra.mxu0 %v525
    %1197 = vmatpush.bf16.msra.mxu0 %v521
    %1198 = vmatpush.bf16.msra.mxu0 %v517
    %1199 = vmatpush.bf16.msra.mxu0 %v513
    %1200 = vmatmul.bf16.gmra.mxu0 %v645
    %v1201 = vpop.f32.mrf.mxu0
    %v1202 = vadd.f32 0.0, %v1201
    %v1203 = vpop.f32.mrf.mxu0
    %1204 = vdwg.mxu0
    %v1209 = vrot.slane %v1163, 6
    %v1210 = vrot.slane %v1176, 6
    %v1211 = vrot.slane %v1189, 6
    %v1212 = vrot.slane %v1202, 6
    %v1217 = vadd.f32 %v1149, %v1209
    %v1218 = vadd.f32 %v1150, %v1210
    %v1219 = vadd.f32 %v1151, %v1211
    %v1220 = vadd.f32 %v1152, %v1212
    %v1221 = vtanh.pop %v1217
    %v1222 = vmul.f32 %v1221, 0.5
    %v1223 = vadd.f32 %v1222, 0.5
    %v1224 = vtanh.pop %v1218
    %v1225 = vmul.f32 %v1224, 0.5
    %v1226 = vadd.f32 %v1225, 0.5
    %v1227 = vtanh.pop %v1219
    %v1228 = vtanh.pop %v1220
    %v1229 = vmul.f32 %v1228, 0.5
    %v1230 = vadd.f32 %v1229, 0.5
    %v1232 = vrot.slane %v642, 6
    %v1234 = vmul.f32 %v1226, %v1232
    %v1235 = vmul.f32 %v1223, %v1227
    %v1236 = vadd.f32 %v1234, %v1235
    %v1237 = vtanh.pop %v1236
    %v1238 = vmul.f32 %v1230, %v1237
    %v1239 = vpack.c.bf16 %v1238, %v1238
    %v1240 = vpack.c.bf16 %v1148, %v1148
    %v1242 = vunpack.c.l.b16 %v1240
    %v1243 = vpack.c.b16 %v1242, %v1242
    %v1244 = vrot.slane %v1243, 7
    %v1246 = vrot.slane %v1239, 1
    %v1247 = vrot.slane %v1244, 1
    %1250 = vmatpush.bf16.msra.mxu0 %v930
    %1251 = vmatpush.bf16.msra.mxu0 %v926
    %1252 = vmatpush.bf16.msra.mxu0 %v922
    %1253 = vmatpush.bf16.msra.mxu0 %v918
    %1254 = vmatpush.bf16.msra.mxu0 %v914
    %1255 = vmatpush.bf16.msra.mxu0 %v910
    %1256 = vmatpush.bf16.msra.mxu0 %v906
    %1257 = vmatpush.bf16.msra.mxu0 %v902
    %1258 = vmatmul.bf16.gmra.mxu0 %v1246
    %v1259 = vpop.f32.mrf.mxu0
    %v1260 = vadd.f32 %v370, %v1259
    %v1261 = vpop.f32.mrf.mxu0
    %1262 = vdwg.mxu0
    %1263 = vmatpush.bf16.msra.mxu0 %v962
    %1264 = vmatpush.bf16.msra.mxu0 %v958
    %1265 = vmatpush.bf16.msra.mxu0 %v954
    %1266 = vmatpush.bf16.msra.mxu0 %v950
    %1267 = vmatpush.bf16.msra.mxu0 %v946
    %1268 = vmatpush.bf16.msra.mxu0 %v942
    %1269 = vmatpush.bf16.msra.mxu0 %v938
    %1270 = vmatpush.bf16.msra.mxu0 %v934
    %1271 = vmatmul.bf16.gmra.mxu0 %v1247
    %v1272 = vpop.f32.mrf.mxu0
    %v1273 = vadd.f32 %v1260, %v1272
    %v1274 = vpop.f32.mrf.mxu0
    %1275 = vdwg.mxu0
    %1276 = vmatpush.bf16.msra.mxu0 %v931
    %1277 = vmatpush.bf16.msra.mxu0 %v927
    %1278 = vmatpush.bf16.msra.mxu0 %v923
    %1279 = vmatpush.bf16.msra.mxu0 %v919
    %1280 = vmatpush.bf16.msra.mxu0 %v915
    %1281 = vmatpush.bf16.msra.mxu0 %v911
    %1282 = vmatpush.bf16.msra.mxu0 %v907
    %1283 = vmatpush.bf16.msra.mxu0 %v903
    %1284 = vmatmul.bf16.gmra.mxu0 %v1246
    %v1285 = vpop.f32.mrf.mxu0
    %v1286 = vadd.f32 %v371, %v1285
    %v1287 = vpop.f32.mrf.mxu0
    %1288 = vdwg.mxu0
    %1289 = vmatpush.bf16.msra.mxu0 %v963
    %1290 = vmatpush.bf16.msra.mxu0 %v959
    %1291 = vmatpush.bf16.msra.mxu0 %v955
    %1292 = vmatpush.bf16.msra.mxu0 %v951
    %1293 = vmatpush.bf16.msra.mxu0 %v947
    %1294 = vmatpush.bf16.msra.mxu0 %v943
    %1295 = vmatpush.bf16.msra.mxu0 %v939
    %1296 = vmatpush.bf16.msra.mxu0 %v935
    %1297 = vmatmul.bf16.gmra.mxu0 %v1247
    %v1298 = vpop.f32.mrf.mxu0
    %v1299 = vadd.f32 %v1286, %v1298
    %v1300 = vpop.f32.mrf.mxu0
    %1301 = vdwg.mxu0
    %1302 = vmatpush.bf16.msra.mxu0 %v932
    %1303 = vmatpush.bf16.msra.mxu0 %v928
    %1304 = vmatpush.bf16.msra.mxu0 %v924
    %1305 = vmatpush.bf16.msra.mxu0 %v920
    %1306 = vmatpush.bf16.msra.mxu0 %v916
    %1307 = vmatpush.bf16.msra.mxu0 %v912
    %1308 = vmatpush.bf16.msra.mxu0 %v908
    %1309 = vmatpush.bf16.msra.mxu0 %v904
    %1310 = vmatmul.bf16.gmra.mxu0 %v1246
    %v1311 = vpop.f32.mrf.mxu0
    %v1312 = vadd.f32 %v372, %v1311
    %v1313 = vpop.f32.mrf.mxu0
    %1314 = vdwg.mxu0
    %1315 = vmatpush.bf16.msra.mxu0 %v964
    %1316 = vmatpush.bf16.msra.mxu0 %v960
    %1317 = vmatpush.bf16.msra.mxu0 %v956
    %1318 = vmatpush.bf16.msra.mxu0 %v952
    %1319 = vmatpush.bf16.msra.mxu0 %v948
    %1320 = vmatpush.bf16.msra.mxu0 %v944
    %1321 = vmatpush.bf16.msra.mxu0 %v940
    %1322 = vmatpush.bf16.msra.mxu0 %v936
    %1323 = vmatmul.bf16.gmra.mxu0 %v1247
    %v1324 = vpop.f32.mrf.mxu0
    %v1325 = vadd.f32 %v1312, %v1324
    %v1326 = vpop.f32.mrf.mxu0
    %1327 = vdwg.mxu0
    %1328 = vmatpush.bf16.msra.mxu0 %v933
    %1329 = vmatpush.bf16.msra.mxu0 %v929
    %1330 = vmatpush.bf16.msra.mxu0 %v925
    %1331 = vmatpush.bf16.msra.mxu0 %v921
    %1332 = vmatpush.bf16.msra.mxu0 %v917
    %1333 = vmatpush.bf16.msra.mxu0 %v913
    %1334 = vmatpush.bf16.msra.mxu0 %v909
    %1335 = vmatpush.bf16.msra.mxu0 %v905
    %1336 = vmatmul.bf16.gmra.mxu0 %v1246
    %v1337 = vpop.f32.mrf.mxu0
    %v1338 = vadd.f32 %v373, %v1337
    %v1339 = vpop.f32.mrf.mxu0
    %1340 = vdwg.mxu0
    %1341 = vmatpush.bf16.msra.mxu0 %v965
    %1342 = vmatpush.bf16.msra.mxu0 %v961
    %1343 = vmatpush.bf16.msra.mxu0 %v957
    %1344 = vmatpush.bf16.msra.mxu0 %v953
    %1345 = vmatpush.bf16.msra.mxu0 %v949
    %1346 = vmatpush.bf16.msra.mxu0 %v945
    %1347 = vmatpush.bf16.msra.mxu0 %v941
    %1348 = vmatpush.bf16.msra.mxu0 %v937
    %1349 = vmatmul.bf16.gmra.mxu0 %v1247
    %v1350 = vpop.f32.mrf.mxu0
    %v1351 = vadd.f32 %v1338, %v1350
    %v1352 = vpop.f32.mrf.mxu0
    %1353 = vdwg.mxu0
    %v1354 = vtanh.pop %v1273
    %v1355 = vmul.f32 %v1354, 0.5
    %v1356 = vadd.f32 %v1355, 0.5
    %v1357 = vtanh.pop %v1299
    %v1358 = vmul.f32 %v1357, 0.5
    %v1359 = vadd.f32 %v1358, 0.5
    %v1360 = vtanh.pop %v1325
    %v1361 = vtanh.pop %v1351
    %v1362 = vmul.f32 %v1361, 0.5
    %v1363 = vadd.f32 %v1362, 0.5
    %v1364 = vmul.f32 %v1359, %v1146
    %v1365 = vmul.f32 %v1356, %v1360
    %v1366 = vadd.f32 %v1364, %v1365
    %v1367 = vtanh.pop %v1366
    %v1368 = vmul.f32 %v1363, %v1367
    %v1369 = vld [vmem:[#allocation2] sm:$0x30]
    %v1370 = vld [vmem:[#allocation2 + $0x8] sm:$0x30]
    %v1371 = vld [vmem:[#allocation2 + $0x10] sm:$0x30]
    %v1372 = vld [vmem:[#allocation2 + $0x18] sm:$0x30]
    %v1373 = vunpack.c.l.b16 %v1239
    %v1374 = vpack.c.b16 %v1373, %v1373
    %v1375 = vrot.slane %v1374, 1
    %1377 = vmatpush.bf16.msra.mxu0 %v538
    %1378 = vmatpush.bf16.msra.mxu0 %v534
    %1379 = vmatpush.bf16.msra.mxu0 %v530
    %1380 = vmatpush.bf16.msra.mxu0 %v526
    %1381 = vmatpush.bf16.msra.mxu0 %v522
    %1382 = vmatpush.bf16.msra.mxu0 %v518
    %1383 = vmatpush.bf16.msra.mxu0 %v514
    %1384 = vmatpush.bf16.msra.mxu0 %v510
    %1385 = vmatmul.bf16.gmra.mxu0 %v1375
    %v1386 = vpop.f32.mrf.mxu0
    %v1387 = vadd.f32 0.0, %v1386
    %v1388 = vpop.f32.mrf.mxu0
    %1389 = vdwg.mxu0
    %1390 = vmatpush.bf16.msra.mxu0 %v539
    %1391 = vmatpush.bf16.msra.mxu0 %v535
    %1392 = vmatpush.bf16.msra.mxu0 %v531
    %1393 = vmatpush.bf16.msra.mxu0 %v527
    %1394 = vmatpush.bf16.msra.mxu0 %v523
    %1395 = vmatpush.bf16.msra.mxu0 %v519
    %1396 = vmatpush.bf16.msra.mxu0 %v515
    %1397 = vmatpush.bf16.msra.mxu0 %v511
    %1398 = vmatmul.bf16.gmra.mxu0 %v1375
    %v1399 = vpop.f32.mrf.mxu0
    %v1400 = vadd.f32 0.0, %v1399
    %v1401 = vpop.f32.mrf.mxu0
    %1402 = vdwg.mxu0
    %1403 = vmatpush.bf16.msra.mxu0 %v540
    %1404 = vmatpush.bf16.msra.mxu0 %v536
    %1405 = vmatpush.bf16.msra.mxu0 %v532
    %1406 = vmatpush.bf16.msra.mxu0 %v528
    %1407 = vmatpush.bf16.msra.mxu0 %v524
    %1408 = vmatpush.bf16.msra.mxu0 %v520
    %1409 = vmatpush.bf16.msra.mxu0 %v516
    %1410 = vmatpush.bf16.msra.mxu0 %v512
    %1411 = vmatmul.bf16.gmra.mxu0 %v1375
    %v1412 = vpop.f32.mrf.mxu0
    %v1413 = vadd.f32 0.0, %v1412
    %v1414 = vpop.f32.mrf.mxu0
    %1415 = vdwg.mxu0
    %1416 = vmatpush.bf16.msra.mxu0 %v541
    %1417 = vmatpush.bf16.msra.mxu0 %v537
    %1418 = vmatpush.bf16.msra.mxu0 %v533
    %1419 = vmatpush.bf16.msra.mxu0 %v529
    %1420 = vmatpush.bf16.msra.mxu0 %v525
    %1421 = vmatpush.bf16.msra.mxu0 %v521
    %1422 = vmatpush.bf16.msra.mxu0 %v517
    %1423 = vmatpush.bf16.msra.mxu0 %v513
    %1424 = vmatmul.bf16.gmra.mxu0 %v1375
    %v1425 = vpop.f32.mrf.mxu0
    %v1426 = vadd.f32 0.0, %v1425
    %v1427 = vpop.f32.mrf.mxu0
    %1428 = vdwg.mxu0
    %v1433 = vrot.slane %v1387, 4
    %v1434 = vrot.slane %v1400, 4
    %v1435 = vrot.slane %v1413, 4
    %v1436 = vrot.slane %v1426, 4
    %v1441 = vadd.f32 %v1369, %v1433
    %v1442 = vadd.f32 %v1370, %v1434
    %v1443 = vadd.f32 %v1371, %v1435
    %v1444 = vadd.f32 %v1372, %v1436
    %v1445 = vtanh.pop %v1441
    %v1446 = vmul.f32 %v1445, 0.5
    %v1447 = vadd.f32 %v1446, 0.5
    %v1448 = vtanh.pop %v1442
    %v1449 = vmul.f32 %v1448, 0.5
    %v1450 = vadd.f32 %v1449, 0.5
    %v1451 = vtanh.pop %v1443
    %v1452 = vtanh.pop %v1444
    %v1453 = vmul.f32 %v1452, 0.5
    %v1454 = vadd.f32 %v1453, 0.5
    %v1456 = vrot.slane %v1236, 6
    %v1458 = vmul.f32 %v1450, %v1456
    %v1459 = vmul.f32 %v1447, %v1451
    %v1460 = vadd.f32 %v1458, %v1459
    %v1461 = vtanh.pop %v1460
    %v1462 = vmul.f32 %v1454, %v1461
    %v1463 = vpack.c.bf16 %v1462, %v1462
    %v1464 = vpack.c.bf16 %v1368, %v1368
    %v1466 = vunpack.c.l.b16 %v1464
    %v1467 = vpack.c.b16 %v1466, %v1466
    %v1468 = vrot.slane %v1467, 6
    %v1470 = vrot.slane %v1463, 2
    %v1471 = vrot.slane %v1468, 2
    %1474 = vmatpush.bf16.msra.mxu0 %v930
    %1475 = vmatpush.bf16.msra.mxu0 %v926
    %1476 = vmatpush.bf16.msra.mxu0 %v922
    %1477 = vmatpush.bf16.msra.mxu0 %v918
    %1478 = vmatpush.bf16.msra.mxu0 %v914
    %1479 = vmatpush.bf16.msra.mxu0 %v910
    %1480 = vmatpush.bf16.msra.mxu0 %v906
    %1481 = vmatpush.bf16.msra.mxu0 %v902
    %1482 = vmatmul.bf16.gmra.mxu0 %v1470
    %v1483 = vpop.f32.mrf.mxu0
    %v1484 = vadd.f32 %v370, %v1483
    %v1485 = vpop.f32.mrf.mxu0
    %1486 = vdwg.mxu0
    %1487 = vmatpush.bf16.msra.mxu0 %v962
    %1488 = vmatpush.bf16.msra.mxu0 %v958
    %1489 = vmatpush.bf16.msra.mxu0 %v954
    %1490 = vmatpush.bf16.msra.mxu0 %v950
    %1491 = vmatpush.bf16.msra.mxu0 %v946
    %1492 = vmatpush.bf16.msra.mxu0 %v942
    %1493 = vmatpush.bf16.msra.mxu0 %v938
    %1494 = vmatpush.bf16.msra.mxu0 %v934
    %1495 = vmatmul.bf16.gmra.mxu0 %v1471
    %v1496 = vpop.f32.mrf.mxu0
    %v1497 = vadd.f32 %v1484, %v1496
    %v1498 = vpop.f32.mrf.mxu0
    %1499 = vdwg.mxu0
    %1500 = vmatpush.bf16.msra.mxu0 %v931
    %1501 = vmatpush.bf16.msra.mxu0 %v927
    %1502 = vmatpush.bf16.msra.mxu0 %v923
    %1503 = vmatpush.bf16.msra.mxu0 %v919
    %1504 = vmatpush.bf16.msra.mxu0 %v915
    %1505 = vmatpush.bf16.msra.mxu0 %v911
    %1506 = vmatpush.bf16.msra.mxu0 %v907
    %1507 = vmatpush.bf16.msra.mxu0 %v903
    %1508 = vmatmul.bf16.gmra.mxu0 %v1470
    %v1509 = vpop.f32.mrf.mxu0
    %v1510 = vadd.f32 %v371, %v1509
    %v1511 = vpop.f32.mrf.mxu0
    %1512 = vdwg.mxu0
    %1513 = vmatpush.bf16.msra.mxu0 %v963
    %1514 = vmatpush.bf16.msra.mxu0 %v959
    %1515 = vmatpush.bf16.msra.mxu0 %v955
    %1516 = vmatpush.bf16.msra.mxu0 %v951
    %1517 = vmatpush.bf16.msra.mxu0 %v947
    %1518 = vmatpush.bf16.msra.mxu0 %v943
    %1519 = vmatpush.bf16.msra.mxu0 %v939
    %1520 = vmatpush.bf16.msra.mxu0 %v935
    %1521 = vmatmul.bf16.gmra.mxu0 %v1471
    %v1522 = vpop.f32.mrf.mxu0
    %v1523 = vadd.f32 %v1510, %v1522
    %v1524 = vpop.f32.mrf.mxu0
    %1525 = vdwg.mxu0
    %1526 = vmatpush.bf16.msra.mxu0 %v932
    %1527 = vmatpush.bf16.msra.mxu0 %v928
    %1528 = vmatpush.bf16.msra.mxu0 %v924
    %1529 = vmatpush.bf16.msra.mxu0 %v920
    %1530 = vmatpush.bf16.msra.mxu0 %v916
    %1531 = vmatpush.bf16.msra.mxu0 %v912
    %1532 = vmatpush.bf16.msra.mxu0 %v908
    %1533 = vmatpush.bf16.msra.mxu0 %v904
    %1534 = vmatmul.bf16.gmra.mxu0 %v1470
    %v1535 = vpop.f32.mrf.mxu0
    %v1536 = vadd.f32 %v372, %v1535
    %v1537 = vpop.f32.mrf.mxu0
    %1538 = vdwg.mxu0
    %1539 = vmatpush.bf16.msra.mxu0 %v964
    %1540 = vmatpush.bf16.msra.mxu0 %v960
    %1541 = vmatpush.bf16.msra.mxu0 %v956
    %1542 = vmatpush.bf16.msra.mxu0 %v952
    %1543 = vmatpush.bf16.msra.mxu0 %v948
    %1544 = vmatpush.bf16.msra.mxu0 %v944
    %1545 = vmatpush.bf16.msra.mxu0 %v940
    %1546 = vmatpush.bf16.msra.mxu0 %v936
    %1547 = vmatmul.bf16.gmra.mxu0 %v1471
    %v1548 = vpop.f32.mrf.mxu0
    %v1549 = vadd.f32 %v1536, %v1548
    %v1550 = vpop.f32.mrf.mxu0
    %1551 = vdwg.mxu0
    %1552 = vmatpush.bf16.msra.mxu0 %v933
    %1553 = vmatpush.bf16.msra.mxu0 %v929
    %1554 = vmatpush.bf16.msra.mxu0 %v925
    %1555 = vmatpush.bf16.msra.mxu0 %v921
    %1556 = vmatpush.bf16.msra.mxu0 %v917
    %1557 = vmatpush.bf16.msra.mxu0 %v913
    %1558 = vmatpush.bf16.msra.mxu0 %v909
    %1559 = vmatpush.bf16.msra.mxu0 %v905
    %1560 = vmatmul.bf16.gmra.mxu0 %v1470
    %v1561 = vpop.f32.mrf.mxu0
    %v1562 = vadd.f32 %v373, %v1561
    %v1563 = vpop.f32.mrf.mxu0
    %1564 = vdwg.mxu0
    %1565 = vmatpush.bf16.msra.mxu0 %v965
    %1566 = vmatpush.bf16.msra.mxu0 %v961
    %1567 = vmatpush.bf16.msra.mxu0 %v957
    %1568 = vmatpush.bf16.msra.mxu0 %v953
    %1569 = vmatpush.bf16.msra.mxu0 %v949
    %1570 = vmatpush.bf16.msra.mxu0 %v945
    %1571 = vmatpush.bf16.msra.mxu0 %v941
    %1572 = vmatpush.bf16.msra.mxu0 %v937
    %1573 = vmatmul.bf16.gmra.mxu0 %v1471
    %v1574 = vpop.f32.mrf.mxu0
    %v1575 = vadd.f32 %v1562, %v1574
    %v1576 = vpop.f32.mrf.mxu0
    %1577 = vdwg.mxu0
    %v1578 = vtanh.pop %v1497
    %v1579 = vmul.f32 %v1578, 0.5
    %v1580 = vadd.f32 %v1579, 0.5
    %v1581 = vtanh.pop %v1523
    %v1582 = vmul.f32 %v1581, 0.5
    %v1583 = vadd.f32 %v1582, 0.5
    %v1584 = vtanh.pop %v1549
    %v1585 = vtanh.pop %v1575
    %v1586 = vmul.f32 %v1585, 0.5
    %v1587 = vadd.f32 %v1586, 0.5
    %v1588 = vmul.f32 %v1583, %v1366
    %v1589 = vmul.f32 %v1580, %v1584
    %v1590 = vadd.f32 %v1588, %v1589
    %v1591 = vtanh.pop %v1590
    %v1592 = vmul.f32 %v1587, %v1591
    %v1593 = vld [vmem:[#allocation2] sm:$0xc0]
    %v1594 = vld [vmem:[#allocation2 + $0x8] sm:$0xc0]
    %v1595 = vld [vmem:[#allocation2 + $0x10] sm:$0xc0]
    %v1596 = vld [vmem:[#allocation2 + $0x18] sm:$0xc0]
    %v1597 = vunpack.c.l.b16 %v1463
    %v1598 = vpack.c.b16 %v1597, %v1597
    %v1599 = vrot.slane %v1598, 2
    %1601 = vmatpush.bf16.msra.mxu0 %v538
    %1602 = vmatpush.bf16.msra.mxu0 %v534
    %1603 = vmatpush.bf16.msra.mxu0 %v530
    %1604 = vmatpush.bf16.msra.mxu0 %v526
    %1605 = vmatpush.bf16.msra.mxu0 %v522
    %1606 = vmatpush.bf16.msra.mxu0 %v518
    %1607 = vmatpush.bf16.msra.mxu0 %v514
    %1608 = vmatpush.bf16.msra.mxu0 %v510
    %1609 = vmatmul.bf16.gmra.mxu0 %v1599
    %v1610 = vpop.f32.mrf.mxu0
    %v1611 = vadd.f32 0.0, %v1610
    %v1612 = vpop.f32.mrf.mxu0
    %1613 = vdwg.mxu0
    %1614 = vmatpush.bf16.msra.mxu0 %v539
    %1615 = vmatpush.bf16.msra.mxu0 %v535
    %1616 = vmatpush.bf16.msra.mxu0 %v531
    %1617 = vmatpush.bf16.msra.mxu0 %v527
    %1618 = vmatpush.bf16.msra.mxu0 %v523
    %1619 = vmatpush.bf16.msra.mxu0 %v519
    %1620 = vmatpush.bf16.msra.mxu0 %v515
    %1621 = vmatpush.bf16.msra.mxu0 %v511
    %1622 = vmatmul.bf16.gmra.mxu0 %v1599
    %v1623 = vpop.f32.mrf.mxu0
    %v1624 = vadd.f32 0.0, %v1623
    %v1625 = vpop.f32.mrf.mxu0
    %1626 = vdwg.mxu0
    %1627 = vmatpush.bf16.msra.mxu0 %v540
    %1628 = vmatpush.bf16.msra.mxu0 %v536
    %1629 = vmatpush.bf16.msra.mxu0 %v532
    %1630 = vmatpush.bf16.msra.mxu0 %v528
    %1631 = vmatpush.bf16.msra.mxu0 %v524
    %1632 = vmatpush.bf16.msra.mxu0 %v520
    %1633 = vmatpush.bf16.msra.mxu0 %v516
    %1634 = vmatpush.bf16.msra.mxu0 %v512
    %1635 = vmatmul.bf16.gmra.mxu0 %v1599
    %v1636 = vpop.f32.mrf.mxu0
    %v1637 = vadd.f32 0.0, %v1636
    %v1638 = vpop.f32.mrf.mxu0
    %1639 = vdwg.mxu0
    %1640 = vmatpush.bf16.msra.mxu0 %v541
    %1641 = vmatpush.bf16.msra.mxu0 %v537
    %1642 = vmatpush.bf16.msra.mxu0 %v533
    %1643 = vmatpush.bf16.msra.mxu0 %v529
    %1644 = vmatpush.bf16.msra.mxu0 %v525
    %1645 = vmatpush.bf16.msra.mxu0 %v521
    %1646 = vmatpush.bf16.msra.mxu0 %v517
    %1647 = vmatpush.bf16.msra.mxu0 %v513
    %1648 = vmatmul.bf16.gmra.mxu0 %v1599
    %v1649 = vpop.f32.mrf.mxu0
    %v1650 = vadd.f32 0.0, %v1649
    %v1651 = vpop.f32.mrf.mxu0
    %1652 = vdwg.mxu0
    %v1657 = vrot.slane %v1611, 2
    %v1658 = vrot.slane %v1624, 2
    %v1659 = vrot.slane %v1637, 2
    %v1660 = vrot.slane %v1650, 2
    %v1665 = vadd.f32 %v1593, %v1657
    %v1666 = vadd.f32 %v1594, %v1658
    %v1667 = vadd.f32 %v1595, %v1659
    %v1668 = vadd.f32 %v1596, %v1660
    %v1669 = vtanh.pop %v1665
    %v1670 = vmul.f32 %v1669, 0.5
    %v1671 = vadd.f32 %v1670, 0.5
    %v1672 = vtanh.pop %v1666
    %v1673 = vmul.f32 %v1672, 0.5
    %v1674 = vadd.f32 %v1673, 0.5
    %v1675 = vtanh.pop %v1667
    %v1676 = vtanh.pop %v1668
    %v1677 = vmul.f32 %v1676, 0.5
    %v1678 = vadd.f32 %v1677, 0.5
    %v1680 = vrot.slane %v1460, 6
    %v1682 = vmul.f32 %v1674, %v1680
    %v1683 = vmul.f32 %v1671, %v1675
    %v1684 = vadd.f32 %v1682, %v1683
    %v1685 = vtanh.pop %v1684
    %v1686 = vmul.f32 %v1678, %v1685
    %v1687 = vpack.c.bf16 %v1686, %v1686
    %v1688 = vpack.c.bf16 %v1592, %v1592
    %v1690 = vunpack.c.l.b16 %v1688
    %v1691 = vpack.c.b16 %v1690, %v1690
    %v1692 = vrot.slane %v1691, 5
    %v1694 = vrot.slane %v1687, 3
    %v1695 = vrot.slane %v1692, 3
    %1698 = vmatpush.bf16.msra.mxu0 %v930
    %1699 = vmatpush.bf16.msra.mxu0 %v926
    %1700 = vmatpush.bf16.msra.mxu0 %v922
    %1701 = vmatpush.bf16.msra.mxu0 %v918
    %1702 = vmatpush.bf16.msra.mxu0 %v914
    %1703 = vmatpush.bf16.msra.mxu0 %v910
    %1704 = vmatpush.bf16.msra.mxu0 %v906
    %1705 = vmatpush.bf16.msra.mxu0 %v902
    %1706 = vmatmul.bf16.gmra.mxu0 %v1694
    %v1707 = vpop.f32.mrf.mxu0
    %v1708 = vadd.f32 %v370, %v1707
    %v1709 = vpop.f32.mrf.mxu0
    %1710 = vdwg.mxu0
    %1711 = vmatpush.bf16.msra.mxu0 %v962
    %1712 = vmatpush.bf16.msra.mxu0 %v958
    %1713 = vmatpush.bf16.msra.mxu0 %v954
    %1714 = vmatpush.bf16.msra.mxu0 %v950
    %1715 = vmatpush.bf16.msra.mxu0 %v946
    %1716 = vmatpush.bf16.msra.mxu0 %v942
    %1717 = vmatpush.bf16.msra.mxu0 %v938
    %1718 = vmatpush.bf16.msra.mxu0 %v934
    %1719 = vmatmul.bf16.gmra.mxu0 %v1695
    %v1720 = vpop.f32.mrf.mxu0
    %v1721 = vadd.f32 %v1708, %v1720
    %v1722 = vpop.f32.mrf.mxu0
    %1723 = vdwg.mxu0
    %1724 = vmatpush.bf16.msra.mxu0 %v931
    %1725 = vmatpush.bf16.msra.mxu0 %v927
    %1726 = vmatpush.bf16.msra.mxu0 %v923
    %1727 = vmatpush.bf16.msra.mxu0 %v919
    %1728 = vmatpush.bf16.msra.mxu0 %v915
    %1729 = vmatpush.bf16.msra.mxu0 %v911
    %1730 = vmatpush.bf16.msra.mxu0 %v907
    %1731 = vmatpush.bf16.msra.mxu0 %v903
    %1732 = vmatmul.bf16.gmra.mxu0 %v1694
    %v1733 = vpop.f32.mrf.mxu0
    %v1734 = vadd.f32 %v371, %v1733
    %v1735 = vpop.f32.mrf.mxu0
    %1736 = vdwg.mxu0
    %1737 = vmatpush.bf16.msra.mxu0 %v963
    %1738 = vmatpush.bf16.msra.mxu0 %v959
    %1739 = vmatpush.bf16.msra.mxu0 %v955
    %1740 = vmatpush.bf16.msra.mxu0 %v951
    %1741 = vmatpush.bf16.msra.mxu0 %v947
    %1742 = vmatpush.bf16.msra.mxu0 %v943
    %1743 = vmatpush.bf16.msra.mxu0 %v939
    %1744 = vmatpush.bf16.msra.mxu0 %v935
    %1745 = vmatmul.bf16.gmra.mxu0 %v1695
    %v1746 = vpop.f32.mrf.mxu0
    %v1747 = vadd.f32 %v1734, %v1746
    %v1748 = vpop.f32.mrf.mxu0
    %1749 = vdwg.mxu0
    %1750 = vmatpush.bf16.msra.mxu0 %v932
    %1751 = vmatpush.bf16.msra.mxu0 %v928
    %1752 = vmatpush.bf16.msra.mxu0 %v924
    %1753 = vmatpush.bf16.msra.mxu0 %v920
    %1754 = vmatpush.bf16.msra.mxu0 %v916
    %1755 = vmatpush.bf16.msra.mxu0 %v912
    %1756 = vmatpush.bf16.msra.mxu0 %v908
    %1757 = vmatpush.bf16.msra.mxu0 %v904
    %1758 = vmatmul.bf16.gmra.mxu0 %v1694
    %v1759 = vpop.f32.mrf.mxu0
    %v1760 = vadd.f32 %v372, %v1759
    %v1761 = vpop.f32.mrf.mxu0
    %1762 = vdwg.mxu0
    %1763 = vmatpush.bf16.msra.mxu0 %v964
    %1764 = vmatpush.bf16.msra.mxu0 %v960
    %1765 = vmatpush.bf16.msra.mxu0 %v956
    %1766 = vmatpush.bf16.msra.mxu0 %v952
    %1767 = vmatpush.bf16.msra.mxu0 %v948
    %1768 = vmatpush.bf16.msra.mxu0 %v944
    %1769 = vmatpush.bf16.msra.mxu0 %v940
    %1770 = vmatpush.bf16.msra.mxu0 %v936
    %1771 = vmatmul.bf16.gmra.mxu0 %v1695
    %v1772 = vpop.f32.mrf.mxu0
    %v1773 = vadd.f32 %v1760, %v1772
    %v1774 = vpop.f32.mrf.mxu0
    %1775 = vdwg.mxu0
    %1776 = vmatpush.bf16.msra.mxu0 %v933
    %1777 = vmatpush.bf16.msra.mxu0 %v929
    %1778 = vmatpush.bf16.msra.mxu0 %v925
    %1779 = vmatpush.bf16.msra.mxu0 %v921
    %1780 = vmatpush.bf16.msra.mxu0 %v917
    %1781 = vmatpush.bf16.msra.mxu0 %v913
    %1782 = vmatpush.bf16.msra.mxu0 %v909
    %1783 = vmatpush.bf16.msra.mxu0 %v905
    %1784 = vmatmul.bf16.gmra.mxu0 %v1694
    %v1785 = vpop.f32.mrf.mxu0
    %v1786 = vadd.f32 %v373, %v1785
    %v1787 = vpop.f32.mrf.mxu0
    %1788 = vdwg.mxu0
    %1789 = vmatpush.bf16.msra.mxu0 %v965
    %1790 = vmatpush.bf16.msra.mxu0 %v961
    %1791 = vmatpush.bf16.msra.mxu0 %v957
    %1792 = vmatpush.bf16.msra.mxu0 %v953
    %1793 = vmatpush.bf16.msra.mxu0 %v949
    %1794 = vmatpush.bf16.msra.mxu0 %v945
    %1795 = vmatpush.bf16.msra.mxu0 %v941
    %1796 = vmatpush.bf16.msra.mxu0 %v937
    %1797 = vmatmul.bf16.gmra.mxu0 %v1695
    %v1798 = vpop.f32.mrf.mxu0
    %v1799 = vadd.f32 %v1786, %v1798
    %v1800 = vpop.f32.mrf.mxu0
    %1801 = vdwg.mxu0
    %v1802 = vtanh.pop %v1721
    %v1803 = vmul.f32 %v1802, 0.5
    %v1804 = vadd.f32 %v1803, 0.5
    %v1805 = vtanh.pop %v1747
    %v1806 = vmul.f32 %v1805, 0.5
    %v1807 = vadd.f32 %v1806, 0.5
    %v1808 = vtanh.pop %v1773
    %v1809 = vtanh.pop %v1799
    %v1810 = vmul.f32 %v1809, 0.5
    %v1811 = vadd.f32 %v1810, 0.5
    %v1812 = vmul.f32 %v1807, %v1590
    %v1813 = vmul.f32 %v1804, %v1808
    %v1814 = vadd.f32 %v1812, %v1813
    %v1815 = vtanh.pop %v1814
    %v1816 = vmul.f32 %v1811, %v1815
    %v1817 = vld [vmem:[#allocation2 + $0x20] sm:$0x3]
    %v1818 = vld [vmem:[#allocation2 + $0x28] sm:$0x3]
    %v1819 = vld [vmem:[#allocation2 + $0x30] sm:$0x3]
    %v1820 = vld [vmem:[#allocation2 + $0x38] sm:$0x3]
    %v1821 = vunpack.c.l.b16 %v1687
    %v1822 = vpack.c.b16 %v1821, %v1821
    %v1823 = vrot.slane %v1822, 3
    %1825 = vmatpush.bf16.msra.mxu0 %v538
    %1826 = vmatpush.bf16.msra.mxu0 %v534
    %1827 = vmatpush.bf16.msra.mxu0 %v530
    %1828 = vmatpush.bf16.msra.mxu0 %v526
    %1829 = vmatpush.bf16.msra.mxu0 %v522
    %1830 = vmatpush.bf16.msra.mxu0 %v518
    %1831 = vmatpush.bf16.msra.mxu0 %v514
    %1832 = vmatpush.bf16.msra.mxu0 %v510
    %1833 = vmatmul.bf16.gmra.mxu0 %v1823
    %v1834 = vpop.f32.mrf.mxu0
    %v1835 = vadd.f32 0.0, %v1834
    %v1836 = vpop.f32.mrf.mxu0
    %1837 = vdwg.mxu0
    %1838 = vmatpush.bf16.msra.mxu0 %v539
    %1839 = vmatpush.bf16.msra.mxu0 %v535
    %1840 = vmatpush.bf16.msra.mxu0 %v531
    %1841 = vmatpush.bf16.msra.mxu0 %v527
    %1842 = vmatpush.bf16.msra.mxu0 %v523
    %1843 = vmatpush.bf16.msra.mxu0 %v519
    %1844 = vmatpush.bf16.msra.mxu0 %v515
    %1845 = vmatpush.bf16.msra.mxu0 %v511
    %1846 = vmatmul.bf16.gmra.mxu0 %v1823
    %v1847 = vpop.f32.mrf.mxu0
    %v1848 = vadd.f32 0.0, %v1847
    %v1849 = vpop.f32.mrf.mxu0
    %1850 = vdwg.mxu0
    %1851 = vmatpush.bf16.msra.mxu0 %v540
    %1852 = vmatpush.bf16.msra.mxu0 %v536
    %1853 = vmatpush.bf16.msra.mxu0 %v532
    %1854 = vmatpush.bf16.msra.mxu0 %v528
    %1855 = vmatpush.bf16.msra.mxu0 %v524
    %1856 = vmatpush.bf16.msra.mxu0 %v520
    %1857 = vmatpush.bf16.msra.mxu0 %v516
    %1858 = vmatpush.bf16.msra.mxu0 %v512
    %1859 = vmatmul.bf16.gmra.mxu0 %v1823
    %v1860 = vpop.f32.mrf.mxu0
    %v1861 = vadd.f32 0.0, %v1860
    %v1862 = vpop.f32.mrf.mxu0
    %1863 = vdwg.mxu0
    %1864 = vmatpush.bf16.msra.mxu0 %v541
    %1865 = vmatpush.bf16.msra.mxu0 %v537
    %1866 = vmatpush.bf16.msra.mxu0 %v533
    %1867 = vmatpush.bf16.msra.mxu0 %v529
    %1868 = vmatpush.bf16.msra.mxu0 %v525
    %1869 = vmatpush.bf16.msra.mxu0 %v521
    %1870 = vmatpush.bf16.msra.mxu0 %v517
    %1871 = vmatpush.bf16.msra.mxu0 %v513
    %1872 = vmatmul.bf16.gmra.mxu0 %v1823
    %v1873 = vpop.f32.mrf.mxu0
    %v1874 = vadd.f32 0.0, %v1873
    %v1875 = vpop.f32.mrf.mxu0
    %1876 = vdwg.mxu0
    %v1877 = vadd.f32 %v1817, %v1835
    %v1878 = vadd.f32 %v1818, %v1848
    %v1879 = vadd.f32 %v1819, %v1861
    %v1880 = vadd.f32 %v1820, %v1874
    %v1881 = vtanh.pop %v1877
    %v1882 = vmul.f32 %v1881, 0.5
    %v1883 = vadd.f32 %v1882, 0.5
    %v1884 = vtanh.pop %v1878
    %v1885 = vmul.f32 %v1884, 0.5
    %v1886 = vadd.f32 %v1885, 0.5
    %v1887 = vtanh.pop %v1879
    %v1888 = vtanh.pop %v1880
    %v1889 = vmul.f32 %v1888, 0.5
    %v1890 = vadd.f32 %v1889, 0.5
    %v1892 = vrot.slane %v1684, 6
    %v1894 = vmul.f32 %v1886, %v1892
    %v1895 = vmul.f32 %v1883, %v1887
    %v1896 = vadd.f32 %v1894, %v1895
    %v1897 = vtanh.pop %v1896
    %v1898 = vmul.f32 %v1890, %v1897
    %v1899 = vpack.c.bf16 %v1898, %v1898
    %v1900 = vpack.c.bf16 %v1816, %v1816
    %1901 = vmatpush.bf16.msra.mxu0 %v930
    %1902 = vmatpush.bf16.msra.mxu0 %v926
    %1903 = vmatpush.bf16.msra.mxu0 %v922
    %1904 = vmatpush.bf16.msra.mxu0 %v918
    %1905 = vmatpush.bf16.msra.mxu0 %v914
    %1906 = vmatpush.bf16.msra.mxu0 %v910
    %1907 = vmatpush.bf16.msra.mxu0 %v906
    %1908 = vmatpush.bf16.msra.mxu0 %v902
    %1909 = vmatmul.bf16.gmra.mxu0 %v1899
    %v1910 = vpop.f32.mrf.mxu0
    %v1911 = vadd.f32 %v370, %v1910
    %v1912 = vpop.f32.mrf.mxu0
    %1913 = vdwg.mxu0
    %1914 = vmatpush.bf16.msra.mxu0 %v962
    %1915 = vmatpush.bf16.msra.mxu0 %v958
    %1916 = vmatpush.bf16.msra.mxu0 %v954
    %1917 = vmatpush.bf16.msra.mxu0 %v950
    %1918 = vmatpush.bf16.msra.mxu0 %v946
    %1919 = vmatpush.bf16.msra.mxu0 %v942
    %1920 = vmatpush.bf16.msra.mxu0 %v938
    %1921 = vmatpush.bf16.msra.mxu0 %v934
    %1922 = vmatmul.bf16.gmra.mxu0 %v1900
    %v1923 = vpop.f32.mrf.mxu0
    %v1924 = vadd.f32 %v1911, %v1923
    %v1925 = vpop.f32.mrf.mxu0
    %1926 = vdwg.mxu0
    %1927 = vmatpush.bf16.msra.mxu0 %v931
    %1928 = vmatpush.bf16.msra.mxu0 %v927
    %1929 = vmatpush.bf16.msra.mxu0 %v923
    %1930 = vmatpush.bf16.msra.mxu0 %v919
    %1931 = vmatpush.bf16.msra.mxu0 %v915
    %1932 = vmatpush.bf16.msra.mxu0 %v911
    %1933 = vmatpush.bf16.msra.mxu0 %v907
    %1934 = vmatpush.bf16.msra.mxu0 %v903
    %1935 = vmatmul.bf16.gmra.mxu0 %v1899
    %v1936 = vpop.f32.mrf.mxu0
    %v1937 = vadd.f32 %v371, %v1936
    %v1938 = vpop.f32.mrf.mxu0
    %1939 = vdwg.mxu0
    %1940 = vmatpush.bf16.msra.mxu0 %v963
    %1941 = vmatpush.bf16.msra.mxu0 %v959
    %1942 = vmatpush.bf16.msra.mxu0 %v955
    %1943 = vmatpush.bf16.msra.mxu0 %v951
    %1944 = vmatpush.bf16.msra.mxu0 %v947
    %1945 = vmatpush.bf16.msra.mxu0 %v943
    %1946 = vmatpush.bf16.msra.mxu0 %v939
    %1947 = vmatpush.bf16.msra.mxu0 %v935
    %1948 = vmatmul.bf16.gmra.mxu0 %v1900
    %v1949 = vpop.f32.mrf.mxu0
    %v1950 = vadd.f32 %v1937, %v1949
    %v1951 = vpop.f32.mrf.mxu0
    %1952 = vdwg.mxu0
    %1953 = vmatpush.bf16.msra.mxu0 %v932
    %1954 = vmatpush.bf16.msra.mxu0 %v928
    %1955 = vmatpush.bf16.msra.mxu0 %v924
    %1956 = vmatpush.bf16.msra.mxu0 %v920
    %1957 = vmatpush.bf16.msra.mxu0 %v916
    %1958 = vmatpush.bf16.msra.mxu0 %v912
    %1959 = vmatpush.bf16.msra.mxu0 %v908
    %1960 = vmatpush.bf16.msra.mxu0 %v904
    %1961 = vmatmul.bf16.gmra.mxu0 %v1899
    %v1962 = vpop.f32.mrf.mxu0
    %v1963 = vadd.f32 %v372, %v1962
    %v1964 = vpop.f32.mrf.mxu0
    %1965 = vdwg.mxu0
    %1966 = vmatpush.bf16.msra.mxu0 %v964
    %1967 = vmatpush.bf16.msra.mxu0 %v960
    %1968 = vmatpush.bf16.msra.mxu0 %v956
    %1969 = vmatpush.bf16.msra.mxu0 %v952
    %1970 = vmatpush.bf16.msra.mxu0 %v948
    %1971 = vmatpush.bf16.msra.mxu0 %v944
    %1972 = vmatpush.bf16.msra.mxu0 %v940
    %1973 = vmatpush.bf16.msra.mxu0 %v936
    %1974 = vmatmul.bf16.gmra.mxu0 %v1900
    %v1975 = vpop.f32.mrf.mxu0
    %v1976 = vadd.f32 %v1963, %v1975
    %v1977 = vpop.f32.mrf.mxu0
    %1978 = vdwg.mxu0
    %1979 = vmatpush.bf16.msra.mxu0 %v933
    %1980 = vmatpush.bf16.msra.mxu0 %v929
    %1981 = vmatpush.bf16.msra.mxu0 %v925
    %1982 = vmatpush.bf16.msra.mxu0 %v921
    %1983 = vmatpush.bf16.msra.mxu0 %v917
    %1984 = vmatpush.bf16.msra.mxu0 %v913
    %1985 = vmatpush.bf16.msra.mxu0 %v909
    %1986 = vmatpush.bf16.msra.mxu0 %v905
    %1987 = vmatmul.bf16.gmra.mxu0 %v1899
    %v1988 = vpop.f32.mrf.mxu0
    %v1989 = vadd.f32 %v373, %v1988
    %v1990 = vpop.f32.mrf.mxu0
    %1991 = vdwg.mxu0
    %1992 = vmatpush.bf16.msra.mxu0 %v965
    %1993 = vmatpush.bf16.msra.mxu0 %v961
    %1994 = vmatpush.bf16.msra.mxu0 %v957
    %1995 = vmatpush.bf16.msra.mxu0 %v953
    %1996 = vmatpush.bf16.msra.mxu0 %v949
    %1997 = vmatpush.bf16.msra.mxu0 %v945
    %1998 = vmatpush.bf16.msra.mxu0 %v941
    %1999 = vmatpush.bf16.msra.mxu0 %v937
    %2000 = vmatmul.bf16.gmra.mxu0 %v1900
    %v2001 = vpop.f32.mrf.mxu0
    %v2002 = vadd.f32 %v1989, %v2001
    %v2003 = vpop.f32.mrf.mxu0
    %2004 = vdwg.mxu0
    %v2005 = vtanh.pop %v1924
    %v2006 = vmul.f32 %v2005, 0.5
    %v2007 = vadd.f32 %v2006, 0.5
    %v2008 = vtanh.pop %v1950
    %v2009 = vmul.f32 %v2008, 0.5
    %v2010 = vadd.f32 %v2009, 0.5
    %v2011 = vtanh.pop %v1976
    %v2012 = vtanh.pop %v2002
    %v2013 = vmul.f32 %v2012, 0.5
    %v2014 = vadd.f32 %v2013, 0.5
    %v2015 = vmul.f32 %v2010, %v1814
    %v2016 = vmul.f32 %v2007, %v2011
    %v2017 = vadd.f32 %v2015, %v2016
    %v2018 = vtanh.pop %v2017
    %v2019 = vmul.f32 %v2014, %v2018
    %v2020 = vld [vmem:[#allocation2 + $0x20] sm:$0xc]
    %v2021 = vld [vmem:[#allocation2 + $0x28] sm:$0xc]
    %v2022 = vld [vmem:[#allocation2 + $0x30] sm:$0xc]
    %v2023 = vld [vmem:[#allocation2 + $0x38] sm:$0xc]
    %2024 = vmatpush.bf16.msra.mxu0 %v538
    %2025 = vmatpush.bf16.msra.mxu0 %v534
    %2026 = vmatpush.bf16.msra.mxu0 %v530
    %2027 = vmatpush.bf16.msra.mxu0 %v526
    %2028 = vmatpush.bf16.msra.mxu0 %v522
    %2029 = vmatpush.bf16.msra.mxu0 %v518
    %2030 = vmatpush.bf16.msra.mxu0 %v514
    %2031 = vmatpush.bf16.msra.mxu0 %v510
    %2032 = vmatmul.bf16.gmra.mxu0 %v1899
    %v2033 = vpop.f32.mrf.mxu0
    %v2034 = vadd.f32 0.0, %v2033
    %v2035 = vpop.f32.mrf.mxu0
    %2036 = vdwg.mxu0
    %2037 = vmatpush.bf16.msra.mxu0 %v539
    %2038 = vmatpush.bf16.msra.mxu0 %v535
    %2039 = vmatpush.bf16.msra.mxu0 %v531
    %2040 = vmatpush.bf16.msra.mxu0 %v527
    %2041 = vmatpush.bf16.msra.mxu0 %v523
    %2042 = vmatpush.bf16.msra.mxu0 %v519
    %2043 = vmatpush.bf16.msra.mxu0 %v515
    %2044 = vmatpush.bf16.msra.mxu0 %v511
    %2045 = vmatmul.bf16.gmra.mxu0 %v1899
    %v2046 = vpop.f32.mrf.mxu0
    %v2047 = vadd.f32 0.0, %v2046
    %v2048 = vpop.f32.mrf.mxu0
    %2049 = vdwg.mxu0
    %2050 = vmatpush.bf16.msra.mxu0 %v540
    %2051 = vmatpush.bf16.msra.mxu0 %v536
    %2052 = vmatpush.bf16.msra.mxu0 %v532
    %2053 = vmatpush.bf16.msra.mxu0 %v528
    %2054 = vmatpush.bf16.msra.mxu0 %v524
    %2055 = vmatpush.bf16.msra.mxu0 %v520
    %2056 = vmatpush.bf16.msra.mxu0 %v516
    %2057 = vmatpush.bf16.msra.mxu0 %v512
    %2058 = vmatmul.bf16.gmra.mxu0 %v1899
    %v2059 = vpop.f32.mrf.mxu0
    %v2060 = vadd.f32 0.0, %v2059
    %v2061 = vpop.f32.mrf.mxu0
    %2062 = vdwg.mxu0
    %2063 = vmatpush.bf16.msra.mxu0 %v541
    %2064 = vmatpush.bf16.msra.mxu0 %v537
    %2065 = vmatpush.bf16.msra.mxu0 %v533
    %2066 = vmatpush.bf16.msra.mxu0 %v529
    %2067 = vmatpush.bf16.msra.mxu0 %v525
    %2068 = vmatpush.bf16.msra.mxu0 %v521
    %2069 = vmatpush.bf16.msra.mxu0 %v517
    %2070 = vmatpush.bf16.msra.mxu0 %v513
    %2071 = vmatmul.bf16.gmra.mxu0 %v1899
    %v2072 = vpop.f32.mrf.mxu0
    %v2073 = vadd.f32 0.0, %v2072
    %v2074 = vpop.f32.mrf.mxu0
    %2075 = vdwg.mxu0
    %v2080 = vrot.slane %v2034, 6
    %v2081 = vrot.slane %v2047, 6
    %v2082 = vrot.slane %v2060, 6
    %v2083 = vrot.slane %v2073, 6
    %v2088 = vadd.f32 %v2020, %v2080
    %v2089 = vadd.f32 %v2021, %v2081
    %v2090 = vadd.f32 %v2022, %v2082
    %v2091 = vadd.f32 %v2023, %v2083
    %v2092 = vtanh.pop %v2088
    %v2093 = vmul.f32 %v2092, 0.5
    %v2094 = vadd.f32 %v2093, 0.5
    %v2095 = vtanh.pop %v2089
    %v2096 = vmul.f32 %v2095, 0.5
    %v2097 = vadd.f32 %v2096, 0.5
    %v2098 = vtanh.pop %v2090
    %v2099 = vtanh.pop %v2091
    %v2100 = vmul.f32 %v2099, 0.5
    %v2101 = vadd.f32 %v2100, 0.5
    %v2103 = vrot.slane %v1896, 6
    %v2105 = vmul.f32 %v2097, %v2103
    %v2106 = vmul.f32 %v2094, %v2098
    %v2107 = vadd.f32 %v2105, %v2106
    %v2108 = vtanh.pop %v2107
    %v2109 = vmul.f32 %v2101, %v2108
    %v2110 = vpack.c.bf16 %v2109, %v2109
    %v2111 = vpack.c.bf16 %v2019, %v2019
    %v2113 = vunpack.c.l.b16 %v2111
    %v2114 = vpack.c.b16 %v2113, %v2113
    %v2115 = vrot.slane %v2114, 7
    %v2117 = vrot.slane %v2110, 1
    %v2118 = vrot.slane %v2115, 1
    %2121 = vmatpush.bf16.msra.mxu0 %v930
    %2122 = vmatpush.bf16.msra.mxu0 %v926
    %2123 = vmatpush.bf16.msra.mxu0 %v922
    %2124 = vmatpush.bf16.msra.mxu0 %v918
    %2125 = vmatpush.bf16.msra.mxu0 %v914
    %2126 = vmatpush.bf16.msra.mxu0 %v910
    %2127 = vmatpush.bf16.msra.mxu0 %v906
    %2128 = vmatpush.bf16.msra.mxu0 %v902
    %2129 = vmatmul.bf16.gmra.mxu0 %v2117
    %v2130 = vpop.f32.mrf.mxu0
    %v2131 = vadd.f32 %v370, %v2130
    %v2132 = vpop.f32.mrf.mxu0
    %2133 = vdwg.mxu0
    %2134 = vmatpush.bf16.msra.mxu0 %v962
    %2135 = vmatpush.bf16.msra.mxu0 %v958
    %2136 = vmatpush.bf16.msra.mxu0 %v954
    %2137 = vmatpush.bf16.msra.mxu0 %v950
    %2138 = vmatpush.bf16.msra.mxu0 %v946
    %2139 = vmatpush.bf16.msra.mxu0 %v942
    %2140 = vmatpush.bf16.msra.mxu0 %v938
    %2141 = vmatpush.bf16.msra.mxu0 %v934
    %2142 = vmatmul.bf16.gmra.mxu0 %v2118
    %v2143 = vpop.f32.mrf.mxu0
    %v2144 = vadd.f32 %v2131, %v2143
    %v2145 = vpop.f32.mrf.mxu0
    %2146 = vdwg.mxu0
    %2147 = vmatpush.bf16.msra.mxu0 %v931
    %2148 = vmatpush.bf16.msra.mxu0 %v927
    %2149 = vmatpush.bf16.msra.mxu0 %v923
    %2150 = vmatpush.bf16.msra.mxu0 %v919
    %2151 = vmatpush.bf16.msra.mxu0 %v915
    %2152 = vmatpush.bf16.msra.mxu0 %v911
    %2153 = vmatpush.bf16.msra.mxu0 %v907
    %2154 = vmatpush.bf16.msra.mxu0 %v903
    %2155 = vmatmul.bf16.gmra.mxu0 %v2117
    %v2156 = vpop.f32.mrf.mxu0
    %v2157 = vadd.f32 %v371, %v2156
    %v2158 = vpop.f32.mrf.mxu0
    %2159 = vdwg.mxu0
    %2160 = vmatpush.bf16.msra.mxu0 %v963
    %2161 = vmatpush.bf16.msra.mxu0 %v959
    %2162 = vmatpush.bf16.msra.mxu0 %v955
    %2163 = vmatpush.bf16.msra.mxu0 %v951
    %2164 = vmatpush.bf16.msra.mxu0 %v947
    %2165 = vmatpush.bf16.msra.mxu0 %v943
    %2166 = vmatpush.bf16.msra.mxu0 %v939
    %2167 = vmatpush.bf16.msra.mxu0 %v935
    %2168 = vmatmul.bf16.gmra.mxu0 %v2118
    %v2169 = vpop.f32.mrf.mxu0
    %v2170 = vadd.f32 %v2157, %v2169
    %v2171 = vpop.f32.mrf.mxu0
    %2172 = vdwg.mxu0
    %2173 = vmatpush.bf16.msra.mxu0 %v932
    %2174 = vmatpush.bf16.msra.mxu0 %v928
    %2175 = vmatpush.bf16.msra.mxu0 %v924
    %2176 = vmatpush.bf16.msra.mxu0 %v920
    %2177 = vmatpush.bf16.msra.mxu0 %v916
    %2178 = vmatpush.bf16.msra.mxu0 %v912
    %2179 = vmatpush.bf16.msra.mxu0 %v908
    %2180 = vmatpush.bf16.msra.mxu0 %v904
    %2181 = vmatmul.bf16.gmra.mxu0 %v2117
    %v2182 = vpop.f32.mrf.mxu0
    %v2183 = vadd.f32 %v372, %v2182
    %v2184 = vpop.f32.mrf.mxu0
    %2185 = vdwg.mxu0
    %2186 = vmatpush.bf16.msra.mxu0 %v964
    %2187 = vmatpush.bf16.msra.mxu0 %v960
    %2188 = vmatpush.bf16.msra.mxu0 %v956
    %2189 = vmatpush.bf16.msra.mxu0 %v952
    %2190 = vmatpush.bf16.msra.mxu0 %v948
    %2191 = vmatpush.bf16.msra.mxu0 %v944
    %2192 = vmatpush.bf16.msra.mxu0 %v940
    %2193 = vmatpush.bf16.msra.mxu0 %v936
    %2194 = vmatmul.bf16.gmra.mxu0 %v2118
    %v2195 = vpop.f32.mrf.mxu0
    %v2196 = vadd.f32 %v2183, %v2195
    %v2197 = vpop.f32.mrf.mxu0
    %2198 = vdwg.mxu0
    %2199 = vmatpush.bf16.msra.mxu0 %v933
    %2200 = vmatpush.bf16.msra.mxu0 %v929
    %2201 = vmatpush.bf16.msra.mxu0 %v925
    %2202 = vmatpush.bf16.msra.mxu0 %v921
    %2203 = vmatpush.bf16.msra.mxu0 %v917
    %2204 = vmatpush.bf16.msra.mxu0 %v913
    %2205 = vmatpush.bf16.msra.mxu0 %v909
    %2206 = vmatpush.bf16.msra.mxu0 %v905
    %2207 = vmatmul.bf16.gmra.mxu0 %v2117
    %v2208 = vpop.f32.mrf.mxu0
    %v2209 = vadd.f32 %v373, %v2208
    %v2210 = vpop.f32.mrf.mxu0
    %2211 = vdwg.mxu0
    %2212 = vmatpush.bf16.msra.mxu0 %v965
    %2213 = vmatpush.bf16.msra.mxu0 %v961
    %2214 = vmatpush.bf16.msra.mxu0 %v957
    %2215 = vmatpush.bf16.msra.mxu0 %v953
    %2216 = vmatpush.bf16.msra.mxu0 %v949
    %2217 = vmatpush.bf16.msra.mxu0 %v945
    %2218 = vmatpush.bf16.msra.mxu0 %v941
    %2219 = vmatpush.bf16.msra.mxu0 %v937
    %2220 = vmatmul.bf16.gmra.mxu0 %v2118
    %v2221 = vpop.f32.mrf.mxu0
    %v2222 = vadd.f32 %v2209, %v2221
    %v2223 = vpop.f32.mrf.mxu0
    %2224 = vdwg.mxu0
    %v2225 = vtanh.pop %v2144
    %v2226 = vmul.f32 %v2225, 0.5
    %v2227 = vadd.f32 %v2226, 0.5
    %v2228 = vtanh.pop %v2170
    %v2229 = vmul.f32 %v2228, 0.5
    %v2230 = vadd.f32 %v2229, 0.5
    %v2231 = vtanh.pop %v2196
    %v2232 = vtanh.pop %v2222
    %v2233 = vmul.f32 %v2232, 0.5
    %v2234 = vadd.f32 %v2233, 0.5
    %v2235 = vmul.f32 %v2230, %v2017
    %v2236 = vmul.f32 %v2227, %v2231
    %v2237 = vadd.f32 %v2235, %v2236
    %v2238 = vtanh.pop %v2237
    %v2239 = vmul.f32 %v2234, %v2238
    %v2240 = vld [vmem:[#allocation2 + $0x20] sm:$0x30]
    %v2241 = vld [vmem:[#allocation2 + $0x28] sm:$0x30]
    %v2242 = vld [vmem:[#allocation2 + $0x30] sm:$0x30]
    %v2243 = vld [vmem:[#allocation2 + $0x38] sm:$0x30]
    %v2244 = vunpack.c.l.b16 %v2110
    %v2245 = vpack.c.b16 %v2244, %v2244
    %v2246 = vrot.slane %v2245, 1
    %2248 = vmatpush.bf16.msra.mxu0 %v538
    %2249 = vmatpush.bf16.msra.mxu0 %v534
    %2250 = vmatpush.bf16.msra.mxu0 %v530
    %2251 = vmatpush.bf16.msra.mxu0 %v526
    %2252 = vmatpush.bf16.msra.mxu0 %v522
    %2253 = vmatpush.bf16.msra.mxu0 %v518
    %2254 = vmatpush.bf16.msra.mxu0 %v514
    %2255 = vmatpush.bf16.msra.mxu0 %v510
    %2256 = vmatmul.bf16.gmra.mxu0 %v2246
    %v2257 = vpop.f32.mrf.mxu0
    %v2258 = vadd.f32 0.0, %v2257
    %v2259 = vpop.f32.mrf.mxu0
    %2260 = vdwg.mxu0
    %2261 = vmatpush.bf16.msra.mxu0 %v539
    %2262 = vmatpush.bf16.msra.mxu0 %v535
    %2263 = vmatpush.bf16.msra.mxu0 %v531
    %2264 = vmatpush.bf16.msra.mxu0 %v527
    %2265 = vmatpush.bf16.msra.mxu0 %v523
    %2266 = vmatpush.bf16.msra.mxu0 %v519
    %2267 = vmatpush.bf16.msra.mxu0 %v515
    %2268 = vmatpush.bf16.msra.mxu0 %v511
    %2269 = vmatmul.bf16.gmra.mxu0 %v2246
    %v2270 = vpop.f32.mrf.mxu0
    %v2271 = vadd.f32 0.0, %v2270
    %v2272 = vpop.f32.mrf.mxu0
    %2273 = vdwg.mxu0
    %2274 = vmatpush.bf16.msra.mxu0 %v540
    %2275 = vmatpush.bf16.msra.mxu0 %v536
    %2276 = vmatpush.bf16.msra.mxu0 %v532
    %2277 = vmatpush.bf16.msra.mxu0 %v528
    %2278 = vmatpush.bf16.msra.mxu0 %v524
    %2279 = vmatpush.bf16.msra.mxu0 %v520
    %2280 = vmatpush.bf16.msra.mxu0 %v516
    %2281 = vmatpush.bf16.msra.mxu0 %v512
    %2282 = vmatmul.bf16.gmra.mxu0 %v2246
    %v2283 = vpop.f32.mrf.mxu0
    %v2284 = vadd.f32 0.0, %v2283
    %v2285 = vpop.f32.mrf.mxu0
    %2286 = vdwg.mxu0
    %2287 = vmatpush.bf16.msra.mxu0 %v541
    %2288 = vmatpush.bf16.msra.mxu0 %v537
    %2289 = vmatpush.bf16.msra.mxu0 %v533
    %2290 = vmatpush.bf16.msra.mxu0 %v529
    %2291 = vmatpush.bf16.msra.mxu0 %v525
    %2292 = vmatpush.bf16.msra.mxu0 %v521
    %2293 = vmatpush.bf16.msra.mxu0 %v517
    %2294 = vmatpush.bf16.msra.mxu0 %v513
    %2295 = vmatmul.bf16.gmra.mxu0 %v2246
    %v2296 = vpop.f32.mrf.mxu0
    %v2297 = vadd.f32 0.0, %v2296
    %v2298 = vpop.f32.mrf.mxu0
    %2299 = vdwg.mxu0
    %v2304 = vrot.slane %v2258, 4
    %v2305 = vrot.slane %v2271, 4
    %v2306 = vrot.slane %v2284, 4
    %v2307 = vrot.slane %v2297, 4
    %v2312 = vadd.f32 %v2240, %v2304
    %v2313 = vadd.f32 %v2241, %v2305
    %v2314 = vadd.f32 %v2242, %v2306
    %v2315 = vadd.f32 %v2243, %v2307
    %v2316 = vtanh.pop %v2312
    %v2317 = vmul.f32 %v2316, 0.5
    %v2318 = vadd.f32 %v2317, 0.5
    %v2319 = vtanh.pop %v2313
    %v2320 = vmul.f32 %v2319, 0.5
    %v2321 = vadd.f32 %v2320, 0.5
    %v2322 = vtanh.pop %v2314
    %v2323 = vtanh.pop %v2315
    %v2324 = vmul.f32 %v2323, 0.5
    %v2325 = vadd.f32 %v2324, 0.5
    %v2327 = vrot.slane %v2107, 6
    %v2329 = vmul.f32 %v2321, %v2327
    %v2330 = vmul.f32 %v2318, %v2322
    %v2331 = vadd.f32 %v2329, %v2330
    %v2332 = vtanh.pop %v2331
    %v2333 = vmul.f32 %v2325, %v2332
    %v2334 = vpack.c.bf16 %v2333, %v2333
    %v2335 = vpack.c.bf16 %v2239, %v2239
    %v2337 = vunpack.c.l.b16 %v2335
    %v2338 = vpack.c.b16 %v2337, %v2337
    %v2339 = vrot.slane %v2338, 6
    %v2341 = vrot.slane %v2334, 2
    %v2342 = vrot.slane %v2339, 2
    %2345 = vmatpush.bf16.msra.mxu0 %v930
    %2346 = vmatpush.bf16.msra.mxu0 %v926
    %2347 = vmatpush.bf16.msra.mxu0 %v922
    %2348 = vmatpush.bf16.msra.mxu0 %v918
    %2349 = vmatpush.bf16.msra.mxu0 %v914
    %2350 = vmatpush.bf16.msra.mxu0 %v910
    %2351 = vmatpush.bf16.msra.mxu0 %v906
    %2352 = vmatpush.bf16.msra.mxu0 %v902
    %2353 = vmatmul.bf16.gmra.mxu0 %v2341
    %v2354 = vpop.f32.mrf.mxu0
    %v2355 = vadd.f32 %v370, %v2354
    %v2356 = vpop.f32.mrf.mxu0
    %2357 = vdwg.mxu0
    %2358 = vmatpush.bf16.msra.mxu0 %v962
    %2359 = vmatpush.bf16.msra.mxu0 %v958
    %2360 = vmatpush.bf16.msra.mxu0 %v954
    %2361 = vmatpush.bf16.msra.mxu0 %v950
    %2362 = vmatpush.bf16.msra.mxu0 %v946
    %2363 = vmatpush.bf16.msra.mxu0 %v942
    %2364 = vmatpush.bf16.msra.mxu0 %v938
    %2365 = vmatpush.bf16.msra.mxu0 %v934
    %2366 = vmatmul.bf16.gmra.mxu0 %v2342
    %v2367 = vpop.f32.mrf.mxu0
    %v2368 = vadd.f32 %v2355, %v2367
    %v2369 = vpop.f32.mrf.mxu0
    %2370 = vdwg.mxu0
    %2371 = vmatpush.bf16.msra.mxu0 %v931
    %2372 = vmatpush.bf16.msra.mxu0 %v927
    %2373 = vmatpush.bf16.msra.mxu0 %v923
    %2374 = vmatpush.bf16.msra.mxu0 %v919
    %2375 = vmatpush.bf16.msra.mxu0 %v915
    %2376 = vmatpush.bf16.msra.mxu0 %v911
    %2377 = vmatpush.bf16.msra.mxu0 %v907
    %2378 = vmatpush.bf16.msra.mxu0 %v903
    %2379 = vmatmul.bf16.gmra.mxu0 %v2341
    %v2380 = vpop.f32.mrf.mxu0
    %v2381 = vadd.f32 %v371, %v2380
    %v2382 = vpop.f32.mrf.mxu0
    %2383 = vdwg.mxu0
    %2384 = vmatpush.bf16.msra.mxu0 %v963
    %2385 = vmatpush.bf16.msra.mxu0 %v959
    %2386 = vmatpush.bf16.msra.mxu0 %v955
    %2387 = vmatpush.bf16.msra.mxu0 %v951
    %2388 = vmatpush.bf16.msra.mxu0 %v947
    %2389 = vmatpush.bf16.msra.mxu0 %v943
    %2390 = vmatpush.bf16.msra.mxu0 %v939
    %2391 = vmatpush.bf16.msra.mxu0 %v935
    %2392 = vmatmul.bf16.gmra.mxu0 %v2342
    %v2393 = vpop.f32.mrf.mxu0
    %v2394 = vadd.f32 %v2381, %v2393
    %v2395 = vpop.f32.mrf.mxu0
    %2396 = vdwg.mxu0
    %2397 = vmatpush.bf16.msra.mxu0 %v932
    %2398 = vmatpush.bf16.msra.mxu0 %v928
    %2399 = vmatpush.bf16.msra.mxu0 %v924
    %2400 = vmatpush.bf16.msra.mxu0 %v920
    %2401 = vmatpush.bf16.msra.mxu0 %v916
    %2402 = vmatpush.bf16.msra.mxu0 %v912
    %2403 = vmatpush.bf16.msra.mxu0 %v908
    %2404 = vmatpush.bf16.msra.mxu0 %v904
    %2405 = vmatmul.bf16.gmra.mxu0 %v2341
    %v2406 = vpop.f32.mrf.mxu0
    %v2407 = vadd.f32 %v372, %v2406
    %v2408 = vpop.f32.mrf.mxu0
    %2409 = vdwg.mxu0
    %2410 = vmatpush.bf16.msra.mxu0 %v964
    %2411 = vmatpush.bf16.msra.mxu0 %v960
    %2412 = vmatpush.bf16.msra.mxu0 %v956
    %2413 = vmatpush.bf16.msra.mxu0 %v952
    %2414 = vmatpush.bf16.msra.mxu0 %v948
    %2415 = vmatpush.bf16.msra.mxu0 %v944
    %2416 = vmatpush.bf16.msra.mxu0 %v940
    %2417 = vmatpush.bf16.msra.mxu0 %v936
    %2418 = vmatmul.bf16.gmra.mxu0 %v2342
    %v2419 = vpop.f32.mrf.mxu0
    %v2420 = vadd.f32 %v2407, %v2419
    %v2421 = vpop.f32.mrf.mxu0
    %2422 = vdwg.mxu0
    %2423 = vmatpush.bf16.msra.mxu0 %v933
    %2424 = vmatpush.bf16.msra.mxu0 %v929
    %2425 = vmatpush.bf16.msra.mxu0 %v925
    %2426 = vmatpush.bf16.msra.mxu0 %v921
    %2427 = vmatpush.bf16.msra.mxu0 %v917
    %2428 = vmatpush.bf16.msra.mxu0 %v913
    %2429 = vmatpush.bf16.msra.mxu0 %v909
    %2430 = vmatpush.bf16.msra.mxu0 %v905
    %2431 = vmatmul.bf16.gmra.mxu0 %v2341
    %v2432 = vpop.f32.mrf.mxu0
    %v2433 = vadd.f32 %v373, %v2432
    %v2434 = vpop.f32.mrf.mxu0
    %2435 = vdwg.mxu0
    %2436 = vmatpush.bf16.msra.mxu0 %v965
    %2437 = vmatpush.bf16.msra.mxu0 %v961
    %2438 = vmatpush.bf16.msra.mxu0 %v957
    %2439 = vmatpush.bf16.msra.mxu0 %v953
    %2440 = vmatpush.bf16.msra.mxu0 %v949
    %2441 = vmatpush.bf16.msra.mxu0 %v945
    %2442 = vmatpush.bf16.msra.mxu0 %v941
    %2443 = vmatpush.bf16.msra.mxu0 %v937
    %2444 = vmatmul.bf16.gmra.mxu0 %v2342
    %v2445 = vpop.f32.mrf.mxu0
    %v2446 = vadd.f32 %v2433, %v2445
    %v2447 = vpop.f32.mrf.mxu0
    %2448 = vdwg.mxu0
    %v2449 = vtanh.pop %v2368
    %v2450 = vmul.f32 %v2449, 0.5
    %v2451 = vadd.f32 %v2450, 0.5
    %v2452 = vtanh.pop %v2394
    %v2453 = vmul.f32 %v2452, 0.5
    %v2454 = vadd.f32 %v2453, 0.5
    %v2455 = vtanh.pop %v2420
    %v2456 = vtanh.pop %v2446
    %v2457 = vmul.f32 %v2456, 0.5
    %v2458 = vadd.f32 %v2457, 0.5
    %v2459 = vmul.f32 %v2454, %v2237
    %v2460 = vmul.f32 %v2451, %v2455
    %v2461 = vadd.f32 %v2459, %v2460
    %v2462 = vtanh.pop %v2461
    %v2463 = vmul.f32 %v2458, %v2462
    %v2464 = vld [vmem:[#allocation2 + $0x20] sm:$0xc0]
    %v2465 = vld [vmem:[#allocation2 + $0x28] sm:$0xc0]
    %v2466 = vld [vmem:[#allocation2 + $0x30] sm:$0xc0]
    %v2467 = vld [vmem:[#allocation2 + $0x38] sm:$0xc0]
    %v2468 = vunpack.c.l.b16 %v2334
    %v2469 = vpack.c.b16 %v2468, %v2468
    %v2470 = vrot.slane %v2469, 2
    %2472 = vmatpush.bf16.msra.mxu0 %v538
    %2473 = vmatpush.bf16.msra.mxu0 %v534
    %2474 = vmatpush.bf16.msra.mxu0 %v530
    %2475 = vmatpush.bf16.msra.mxu0 %v526
    %2476 = vmatpush.bf16.msra.mxu0 %v522
    %2477 = vmatpush.bf16.msra.mxu0 %v518
    %2478 = vmatpush.bf16.msra.mxu0 %v514
    %2479 = vmatpush.bf16.msra.mxu0 %v510
    %2480 = vmatmul.bf16.gmra.mxu0 %v2470
    %v2481 = vpop.f32.mrf.mxu0
    %v2482 = vadd.f32 0.0, %v2481
    %v2483 = vpop.f32.mrf.mxu0
    %2484 = vdwg.mxu0
    %2485 = vmatpush.bf16.msra.mxu0 %v539
    %2486 = vmatpush.bf16.msra.mxu0 %v535
    %2487 = vmatpush.bf16.msra.mxu0 %v531
    %2488 = vmatpush.bf16.msra.mxu0 %v527
    %2489 = vmatpush.bf16.msra.mxu0 %v523
    %2490 = vmatpush.bf16.msra.mxu0 %v519
    %2491 = vmatpush.bf16.msra.mxu0 %v515
    %2492 = vmatpush.bf16.msra.mxu0 %v511
    %2493 = vmatmul.bf16.gmra.mxu0 %v2470
    %v2494 = vpop.f32.mrf.mxu0
    %v2495 = vadd.f32 0.0, %v2494
    %v2496 = vpop.f32.mrf.mxu0
    %2497 = vdwg.mxu0
    %2498 = vmatpush.bf16.msra.mxu0 %v540
    %2499 = vmatpush.bf16.msra.mxu0 %v536
    %2500 = vmatpush.bf16.msra.mxu0 %v532
    %2501 = vmatpush.bf16.msra.mxu0 %v528
    %2502 = vmatpush.bf16.msra.mxu0 %v524
    %2503 = vmatpush.bf16.msra.mxu0 %v520
    %2504 = vmatpush.bf16.msra.mxu0 %v516
    %2505 = vmatpush.bf16.msra.mxu0 %v512
    %2506 = vmatmul.bf16.gmra.mxu0 %v2470
    %v2507 = vpop.f32.mrf.mxu0
    %v2508 = vadd.f32 0.0, %v2507
    %v2509 = vpop.f32.mrf.mxu0
    %2510 = vdwg.mxu0
    %2511 = vmatpush.bf16.msra.mxu0 %v541
    %2512 = vmatpush.bf16.msra.mxu0 %v537
    %2513 = vmatpush.bf16.msra.mxu0 %v533
    %2514 = vmatpush.bf16.msra.mxu0 %v529
    %2515 = vmatpush.bf16.msra.mxu0 %v525
    %2516 = vmatpush.bf16.msra.mxu0 %v521
    %2517 = vmatpush.bf16.msra.mxu0 %v517
    %2518 = vmatpush.bf16.msra.mxu0 %v513
    %2519 = vmatmul.bf16.gmra.mxu0 %v2470
    %v2520 = vpop.f32.mrf.mxu0
    %v2521 = vadd.f32 0.0, %v2520
    %v2522 = vpop.f32.mrf.mxu0
    %2523 = vdwg.mxu0
    %v2528 = vrot.slane %v2482, 2
    %v2529 = vrot.slane %v2495, 2
    %v2530 = vrot.slane %v2508, 2
    %v2531 = vrot.slane %v2521, 2
    %v2536 = vadd.f32 %v2464, %v2528
    %v2537 = vadd.f32 %v2465, %v2529
    %v2538 = vadd.f32 %v2466, %v2530
    %v2539 = vadd.f32 %v2467, %v2531
    %v2540 = vtanh.pop %v2536
    %v2541 = vmul.f32 %v2540, 0.5
    %v2542 = vadd.f32 %v2541, 0.5
    %v2543 = vtanh.pop %v2537
    %v2544 = vmul.f32 %v2543, 0.5
    %v2545 = vadd.f32 %v2544, 0.5
    %v2546 = vtanh.pop %v2538
    %v2547 = vtanh.pop %v2539
    %v2548 = vmul.f32 %v2547, 0.5
    %v2549 = vadd.f32 %v2548, 0.5
    %v2551 = vrot.slane %v2331, 6
    %v2553 = vmul.f32 %v2545, %v2551
    %v2554 = vmul.f32 %v2542, %v2546
    %v2555 = vadd.f32 %v2553, %v2554
    %v2556 = vtanh.pop %v2555
    %v2557 = vmul.f32 %v2549, %v2556
    %v2558 = vpack.c.bf16 %v2557, %v2557
    %v2559 = vpack.c.bf16 %v2463, %v2463
    %v2561 = vunpack.c.l.b16 %v2559
    %v2562 = vpack.c.b16 %v2561, %v2561
    %v2563 = vrot.slane %v2562, 5
    %v2565 = vrot.slane %v2558, 3
    %v2566 = vrot.slane %v2563, 3
    %2569 = vmatpush.bf16.msra.mxu0 %v930
    %2570 = vmatpush.bf16.msra.mxu0 %v926
    %2571 = vmatpush.bf16.msra.mxu0 %v922
    %2572 = vmatpush.bf16.msra.mxu0 %v918
    %2573 = vmatpush.bf16.msra.mxu0 %v914
    %2574 = vmatpush.bf16.msra.mxu0 %v910
    %2575 = vmatpush.bf16.msra.mxu0 %v906
    %2576 = vmatpush.bf16.msra.mxu0 %v902
    %2577 = vmatmul.bf16.gmra.mxu0 %v2565
    %v2578 = vpop.f32.mrf.mxu0
    %v2579 = vadd.f32 %v370, %v2578
    %v2580 = vpop.f32.mrf.mxu0
    %2581 = vdwg.mxu0
    %2582 = vmatpush.bf16.msra.mxu0 %v962
    %2583 = vmatpush.bf16.msra.mxu0 %v958
    %2584 = vmatpush.bf16.msra.mxu0 %v954
    %2585 = vmatpush.bf16.msra.mxu0 %v950
    %2586 = vmatpush.bf16.msra.mxu0 %v946
    %2587 = vmatpush.bf16.msra.mxu0 %v942
    %2588 = vmatpush.bf16.msra.mxu0 %v938
    %2589 = vmatpush.bf16.msra.mxu0 %v934
    %2590 = vmatmul.bf16.gmra.mxu0 %v2566
    %v2591 = vpop.f32.mrf.mxu0
    %v2592 = vadd.f32 %v2579, %v2591
    %v2593 = vpop.f32.mrf.mxu0
    %2594 = vdwg.mxu0
    %2595 = vmatpush.bf16.msra.mxu0 %v931
    %2596 = vmatpush.bf16.msra.mxu0 %v927
    %2597 = vmatpush.bf16.msra.mxu0 %v923
    %2598 = vmatpush.bf16.msra.mxu0 %v919
    %2599 = vmatpush.bf16.msra.mxu0 %v915
    %2600 = vmatpush.bf16.msra.mxu0 %v911
    %2601 = vmatpush.bf16.msra.mxu0 %v907
    %2602 = vmatpush.bf16.msra.mxu0 %v903
    %2603 = vmatmul.bf16.gmra.mxu0 %v2565
    %v2604 = vpop.f32.mrf.mxu0
    %v2605 = vadd.f32 %v371, %v2604
    %v2606 = vpop.f32.mrf.mxu0
    %2607 = vdwg.mxu0
    %2608 = vmatpush.bf16.msra.mxu0 %v963
    %2609 = vmatpush.bf16.msra.mxu0 %v959
    %2610 = vmatpush.bf16.msra.mxu0 %v955
    %2611 = vmatpush.bf16.msra.mxu0 %v951
    %2612 = vmatpush.bf16.msra.mxu0 %v947
    %2613 = vmatpush.bf16.msra.mxu0 %v943
    %2614 = vmatpush.bf16.msra.mxu0 %v939
    %2615 = vmatpush.bf16.msra.mxu0 %v935
    %2616 = vmatmul.bf16.gmra.mxu0 %v2566
    %v2617 = vpop.f32.mrf.mxu0
    %v2618 = vadd.f32 %v2605, %v2617
    %v2619 = vpop.f32.mrf.mxu0
    %2620 = vdwg.mxu0
    %2621 = vmatpush.bf16.msra.mxu0 %v932
    %2622 = vmatpush.bf16.msra.mxu0 %v928
    %2623 = vmatpush.bf16.msra.mxu0 %v924
    %2624 = vmatpush.bf16.msra.mxu0 %v920
    %2625 = vmatpush.bf16.msra.mxu0 %v916
    %2626 = vmatpush.bf16.msra.mxu0 %v912
    %2627 = vmatpush.bf16.msra.mxu0 %v908
    %2628 = vmatpush.bf16.msra.mxu0 %v904
    %2629 = vmatmul.bf16.gmra.mxu0 %v2565
    %v2630 = vpop.f32.mrf.mxu0
    %v2631 = vadd.f32 %v372, %v2630
    %v2632 = vpop.f32.mrf.mxu0
    %2633 = vdwg.mxu0
    %2634 = vmatpush.bf16.msra.mxu0 %v964
    %2635 = vmatpush.bf16.msra.mxu0 %v960
    %2636 = vmatpush.bf16.msra.mxu0 %v956
    %2637 = vmatpush.bf16.msra.mxu0 %v952
    %2638 = vmatpush.bf16.msra.mxu0 %v948
    %2639 = vmatpush.bf16.msra.mxu0 %v944
    %2640 = vmatpush.bf16.msra.mxu0 %v940
    %2641 = vmatpush.bf16.msra.mxu0 %v936
    %2642 = vmatmul.bf16.gmra.mxu0 %v2566
    %v2643 = vpop.f32.mrf.mxu0
    %v2644 = vadd.f32 %v2631, %v2643
    %v2645 = vpop.f32.mrf.mxu0
    %2646 = vdwg.mxu0
    %2647 = vmatpush.bf16.msra.mxu0 %v933
    %2648 = vmatpush.bf16.msra.mxu0 %v929
    %2649 = vmatpush.bf16.msra.mxu0 %v925
    %2650 = vmatpush.bf16.msra.mxu0 %v921
    %2651 = vmatpush.bf16.msra.mxu0 %v917
    %2652 = vmatpush.bf16.msra.mxu0 %v913
    %2653 = vmatpush.bf16.msra.mxu0 %v909
    %2654 = vmatpush.bf16.msra.mxu0 %v905
    %2655 = vmatmul.bf16.gmra.mxu0 %v2565
    %v2656 = vpop.f32.mrf.mxu0
    %v2657 = vadd.f32 %v373, %v2656
    %v2658 = vpop.f32.mrf.mxu0
    %2659 = vdwg.mxu0
    %2660 = vmatpush.bf16.msra.mxu0 %v965
    %2661 = vmatpush.bf16.msra.mxu0 %v961
    %2662 = vmatpush.bf16.msra.mxu0 %v957
    %2663 = vmatpush.bf16.msra.mxu0 %v953
    %2664 = vmatpush.bf16.msra.mxu0 %v949
    %2665 = vmatpush.bf16.msra.mxu0 %v945
    %2666 = vmatpush.bf16.msra.mxu0 %v941
    %2667 = vmatpush.bf16.msra.mxu0 %v937
    %2668 = vmatmul.bf16.gmra.mxu0 %v2566
    %v2669 = vpop.f32.mrf.mxu0
    %v2670 = vadd.f32 %v2657, %v2669
    %v2671 = vpop.f32.mrf.mxu0
    %2672 = vdwg.mxu0
    %v2673 = vtanh.pop %v2592
    %v2674 = vmul.f32 %v2673, 0.5
    %v2675 = vadd.f32 %v2674, 0.5
    %v2676 = vtanh.pop %v2618
    %v2677 = vmul.f32 %v2676, 0.5
    %v2678 = vadd.f32 %v2677, 0.5
    %v2679 = vtanh.pop %v2644
    %v2680 = vtanh.pop %v2670
    %v2681 = vmul.f32 %v2680, 0.5
    %v2682 = vadd.f32 %v2681, 0.5
    %v2683 = vmul.f32 %v2678, %v2461
    %v2684 = vmul.f32 %v2675, %v2679
    %v2685 = vadd.f32 %v2683, %v2684
    %v2686 = vtanh.pop %v2685
    %v2687 = vmul.f32 %v2682, %v2686
    %v2688 = vpack.c.bf16 %v2687, %v2687
    %v2689 = vld [vmem:[#allocation9] sm:$0xf]
    %v2690 = vld [vmem:[#allocation9 + $0x4] sm:$0xf]
    %v2691 = vld [vmem:[#allocation9 + $0x8] sm:$0xf]
    %v2692 = vld [vmem:[#allocation9 + $0xc] sm:$0xf]
    %v2693 = vld [vmem:[#allocation9 + $0x10] sm:$0xf]
    %v2694 = vld [vmem:[#allocation9 + $0x14] sm:$0xf]
    %v2695 = vld [vmem:[#allocation9 + $0x18] sm:$0xf]
    %v2696 = vld [vmem:[#allocation9 + $0x1c] sm:$0xf]
    %v2697 = vld [vmem:[#allocation9 + $0x20] sm:$0xf]
    %v2698 = vld [vmem:[#allocation9 + $0x24] sm:$0xf]
    %v2699 = vld [vmem:[#allocation9 + $0x28] sm:$0xf]
    %v2700 = vld [vmem:[#allocation9 + $0x2c] sm:$0xf]
    %v2701 = vld [vmem:[#allocation9 + $0x30] sm:$0xf]
    %v2702 = vld [vmem:[#allocation9 + $0x34] sm:$0xf]
    %v2703 = vld [vmem:[#allocation9 + $0x38] sm:$0xf]
    %v2704 = vld [vmem:[#allocation9 + $0x3c] sm:$0xf]
    %v2705 = vld [vmem:[%s7] sm:$0x1]
    %v2707 = vperm.slane %v2705, 0
    %v2725 = vunpack.c.l.b16 %v2689
    %v2726 = vunpack.c.l.b16 %v2690
    %v2727 = vunpack.c.l.b16 %v2691
    %v2728 = vunpack.c.l.b16 %v2692
    %v2729 = vunpack.c.l.b16 %v2693
    %v2730 = vunpack.c.l.b16 %v2694
    %v2731 = vunpack.c.l.b16 %v2695
    %v2732 = vunpack.c.l.b16 %v2696
    %v2733 = vunpack.c.l.b16 %v2697
    %v2734 = vunpack.c.l.b16 %v2698
    %v2735 = vunpack.c.l.b16 %v2699
    %v2736 = vunpack.c.l.b16 %v2700
    %v2737 = vunpack.c.l.b16 %v2701
    %v2738 = vunpack.c.l.b16 %v2702
    %v2739 = vunpack.c.l.b16 %v2703
    %v2740 = vunpack.c.l.b16 %v2704
    %v2741 = vpack.c.b16 %v2726, %v2725
    %v2742 = vpack.c.b16 %v2728, %v2727
    %v2743 = vpack.c.b16 %v2730, %v2729
    %v2744 = vpack.c.b16 %v2732, %v2731
    %v2745 = vpack.c.b16 %v2734, %v2733
    %v2746 = vpack.c.b16 %v2736, %v2735
    %v2747 = vpack.c.b16 %v2738, %v2737
    %v2748 = vpack.c.b16 %v2740, %v2739
    %2757 = vmatpush.bf16.msra.mxu0 %v2748
    %2758 = vmatpush.bf16.msra.mxu0 %v2747
    %2759 = vmatpush.bf16.msra.mxu0 %v2746
    %2760 = vmatpush.bf16.msra.mxu0 %v2745
    %2761 = vmatpush.bf16.msra.mxu0 %v2744
    %2762 = vmatpush.bf16.msra.mxu0 %v2743
    %2763 = vmatpush.bf16.msra.mxu0 %v2742
    %2764 = vmatpush.bf16.msra.mxu0 %v2741
    %2765 = vmatmul.bf16.gmra.mxu0 %v2688
    %v2766 = vpop.f32.mrf.mxu0
    %v2767 = vadd.f32 %v2707, %v2766
    %v2768 = vpop.f32.mrf.mxu0
    %2769 = vdwg.mxu0
    %2770 = vst [vmem:[#allocation11] sm:$0x3] %v2767
    // Predicated region
    $region50: #{settlement_predictor_forward.1} parent=1 // pred_check
      _
    $region51: #{settlement_predictor_forward.1} parent=1 // pred_check_branch
      %2772 = sbr.rel (0) target = $region53
    $region52: #{settlement_predictor_forward.1} parent=1 // pred_region
      %2774 = vsyncadd [#allocation5], 0
      %s2776 = sshll.u32 [#allocation11], 4
      %s2777 = int_to_ptr.vmem [resolvable:$true] %s2776
      %s2778 = sshll.u32 %s8, 4
      %s2779 = int_to_ptr.hbm [resolvable:$true] %s2778
      %2781 = dma.vmem_to_hbm [thread:$0]  %s2777, 32, %s2779, [#allocation5]
    $region53: #{settlement_predictor_forward.1} parent=1 // pred_fallthru
      _
    // Predicated region
    $region54: #{settlement_predictor_forward.1} parent=1 // pred_check
      _
    $region55: #{settlement_predictor_forward.1} parent=1 // pred_check_branch
      %2783 = sbr.rel (0) target = $region57
    $region56: #{settlement_predictor_forward.1} parent=1 // pred_region
      %2785 = dma.done [#allocation5], 32
    $region57: #{settlement_predictor_forward.1} parent=1 // pred_fallthru
      _
    %2786 = vsyncpa [#allocation4], 1
    %2787 = vsyncpa [#allocation7], 1
    %2788 = vsyncpa [#allocation10], 1
    %2789 = vsyncpa [#allocation5], 1

</llo_original>
